<compile_context>
chip_gen: v7x
topology: tpu7x:2x2x1
jax: 0.10.0
libtpu: 0.0.40
codegen_flags: <defaults>
</compile_context>

<pallas_src>
import functools

import jax
import jax.numpy as jnp
from jax.experimental import pallas as pl
from jax.experimental.pallas import tpu as pltpu


def _round_up(x, m):
    return (x + m - 1) // m * m


# -----------------------------------------------------------------------------
# Pallas kernel
# -----------------------------------------------------------------------------
def _make_lstm_kernel(L, T_chunk, n_t, Hp, Bt, T_total, compute_dtype):
    """Kernel specialized on static layer count / chunk size / tile sizes."""
    needs_mask = (n_t * T_chunk != T_total)

    def _sigmoid(x):
        # One EUP push (tanh) instead of exp + reciprocal.
        return 0.5 * jnp.tanh(0.5 * x) + 0.5

    def kernel(x_ref, *refs):
        # refs = [Wx_0, Wh_0, b_0, ..., Wx_{L-1}, Wh_{L-1}, b_{L-1}, fc_w, fc_b,
        #         out_ref, h_scr, c_scr, seq_scr, pre_scr]
        w_refs = refs[: 3 * L]
        fc_w_ref = refs[3 * L]
        fc_b_ref = refs[3 * L + 1]
        out_ref = refs[3 * L + 2]
        h_ref = refs[3 * L + 3]
        c_ref = refs[3 * L + 4]
        seq_ref = refs[3 * L + 5]
        pre_ref = refs[3 * L + 6]

        t_idx = pl.program_id(1)

        # Initialize recurrent state at the first time chunk of each batch tile.
        @pl.when(t_idx == 0)
        def _init():
            h_ref[...] = jnp.zeros_like(h_ref)
            c_ref[...] = jnp.zeros_like(c_ref)

        # cuDNN-style layer staging: the whole time chunk goes through layer l
        # before layer l+1 starts; only one layer's state / weights are live.
        for l in range(L):
            wx_ref = w_refs[3 * l]
            wh_ref = w_refs[3 * l + 1]
            b_ref = w_refs[3 * l + 2]

            # Hoisted input projection: ONE GEMM with M = T_chunk*Bt rows and the
            # bias folded in (single broadcast per chunk per layer).
            if l == 0:
                xin = x_ref[...].reshape(T_chunk * Bt, x_ref.shape[-1])
            else:
                xin = seq_ref[...]
            pre_ref[...] = (
                jnp.dot(xin.astype(compute_dtype), wx_ref[...],
                        preferred_element_type=jnp.float32)
                + b_ref[...]
            )

            wh = wh_ref[...]                 # read once per chunk, not per step
            h = h_ref[l]
            c = c_ref[l]
            for i in range(T_chunk):         # static unroll; only h @ W_hh remains
                gates = pre_ref[i * Bt:(i + 1) * Bt, :] + jnp.dot(
                    h.astype(compute_dtype), wh,
                    preferred_element_type=jnp.float32)
                i_g = _sigmoid(gates[:, 0 * Hp:1 * Hp])
                f_g = _sigmoid(gates[:, 1 * Hp:2 * Hp])
                g_g = jnp.tanh(gates[:, 2 * Hp:3 * Hp])
                o_g = _sigmoid(gates[:, 3 * Hp:4 * Hp])
                c_new = f_g * c + i_g * g_g
                h_new = o_g * jnp.tanh(c_new)
                if needs_mask:
                    # Padded tail timesteps must never update the state.
                    valid = (t_idx * T_chunk + i) < T_total
                    c = jnp.where(valid, c_new, c)
                    h = jnp.where(valid, h_new, h)
                else:
                    c = c_new
                    h = h_new
                if l < L - 1:                # stage layer output for the next layer
                    seq_ref[i * Bt:(i + 1) * Bt, :] = h.astype(compute_dtype)
            h_ref[l] = h
            c_ref[l] = c

        # Fused Linear on the last valid timestep, written once at the end.
        @pl.when(t_idx == n_t - 1)
        def _final():
            out = (
                jnp.dot(h_ref[L - 1].astype(compute_dtype), fc_w_ref[...],
                        preferred_element_type=jnp.float32)
                + fc_b_ref[...]
            )
            out_ref[...] = out.astype(out_ref.dtype)

    return kernel


# -----------------------------------------------------------------------------
# Wrapper-side one-time weight packing (exact; PyTorch gate order [i, f, g, o])
# -----------------------------------------------------------------------------
def pack_params(params, *, D_in, H, L, D_out, compute_dtype=jnp.bfloat16):
    Hp = _round_up(H, 128)
    Dp = _round_up(D_in, 128)
    Op = _round_up(D_out, 128)

    packed = []
    for l in range(L):
        wih, whh, bih, bhh = params["lstm"][l]   # (4H,in_l), (4H,H), (4H,), (4H,)
        in_dim = D_in if l == 0 else H
        in_pad = Dp if l == 0 else Hp
        Wx = jnp.zeros((in_pad, 4 * Hp), jnp.float32)
        Wh = jnp.zeros((Hp, 4 * Hp), jnp.float32)
        b = jnp.zeros((1, 4 * Hp), jnp.float32)
        for k in range(4):                       # gate k occupies lanes [k*Hp, k*Hp+H)
            Wx = Wx.at[:in_dim, k * Hp:k * Hp + H].set(wih[k * H:(k + 1) * H, :].T)
            Wh = Wh.at[:H, k * Hp:k * Hp + H].set(whh[k * H:(k + 1) * H, :].T)
            b = b.at[0, k * Hp:k * Hp + H].set(
                bih[k * H:(k + 1) * H] + bhh[k * H:(k + 1) * H])
        packed += [Wx.astype(compute_dtype), Wh.astype(compute_dtype), b]  # bias stays f32

    fc_w = jnp.zeros((Hp, Op), jnp.float32).at[:H, :D_out].set(params["fc_w"].T)
    fc_b = jnp.zeros((1, Op), jnp.float32).at[0, :D_out].set(params["fc_b"])
    packed += [fc_w.astype(compute_dtype), fc_b]
    return tuple(packed)


# -----------------------------------------------------------------------------
# Forward wrapper
# -----------------------------------------------------------------------------
@functools.partial(jax.jit, static_argnames=("H", "L", "D_out"))
def trans_lstm_forward(x, packed, *, H, L, D_out):
    """x: (B, T, D_in) float32 (PyTorch batch_first). Returns (B, D_out) float32."""
    B, T, D_in = x.shape
    Hp = _round_up(H, 128)
    Dp = _round_up(D_in, 128)
    Op = _round_up(D_out, 128)
    compute_dtype = packed[0].dtype

    # --- batch tiling --------------------------------------------------------
    Bp = _round_up(B, 8)
    if Bp > 128:
        # TODO(synk): raise this cap to 256 on v6e/v7x when Bp >= 256 to fill the
        # 256-row MXU (keep 128 on v5e).
        Bt = 128
        Bp = _round_up(Bp, Bt)
    elif Bp >= 16:
        Bt = _round_up(Bp // 2, 8)   # >=2 batch tiles: both v7x TensorCores get work
        Bp = _round_up(Bp, Bt)
    else:
        Bt = Bp
    n_b = Bp // Bt
    assert Bp % Bt == 0

    # --- time chunking (cdiv + in-kernel tail masking; no divisor search) ----
    T_chunk = min(T, 32)
    # keep the pre-activation staging scratch modest for very large H
    while T_chunk > 1 and T_chunk * Bt * 4 * Hp * 4 > (8 << 20):
        T_chunk = -(-T_chunk // 2)
    n_t = (T + T_chunk - 1) // T_chunk
    T_pad = n_t * T_chunk

    # Pad batch/time/feature dims and go time-major (single fused copy pass).
    x_pad = jnp.pad(x, ((0, Bp - B), (0, T_pad - T), (0, Dp - D_in)))
    x_tm = jnp.transpose(x_pad, (1, 0, 2))          # (T_pad, Bp, Dp)

    def _const_spec(shape):
        idx = lambda b, t: (0,) * len(shape)
        try:
            # Constant-index weights: single buffer, half the VMEM residency.
            return pl.BlockSpec(shape, idx, pipeline_mode=pl.Buffered(1))
        except TypeError:            # very old jax without pipeline_mode
            return pl.BlockSpec(shape, idx)

    in_specs = [pl.BlockSpec((T_chunk, Bt, Dp), lambda b, t: (t, b, 0))]
    for arr in packed:
        in_specs.append(_const_spec(arr.shape))

    scratch_shapes = [
        pltpu.VMEM((L, Bt, Hp), jnp.float32),             # h state (per layer)
        pltpu.VMEM((L, Bt, Hp), jnp.float32),             # c state (per layer)
        pltpu.VMEM((T_chunk * Bt, Hp), compute_dtype),    # staged layer output sequence
        pltpu.VMEM((T_chunk * Bt, 4 * Hp), jnp.float32),  # hoisted input projection
    ]

    # --- explicit VMEM budget -------------------------------------------------
    cdt_size = jnp.dtype(compute_dtype).itemsize
    weight_bytes = sum(int(a.size) * a.dtype.itemsize for a in packed)
    x_chunk_bytes = T_chunk * Bt * Dp * 4
    scratch_bytes = (2 * L * Bt * Hp * 4
                     + T_chunk * Bt * Hp * cdt_size
                     + T_chunk * Bt * 4 * Hp * 4)
    out_bytes = Bt * Op * 4
    vmem_needed = (weight_bytes + 2 * x_chunk_bytes + scratch_bytes
                   + 2 * out_bytes + (2 << 20))
    vmem_limit = int(min(max(vmem_needed, 16 << 20), 64 << 20))

    # --- cost estimate ----------------------------------------------------------
    flops = n_b * n_t * (
        2 * T_chunk * Bt * (Dp * 4 * Hp + (L - 1) * Hp * 4 * Hp)   # input projections
        + 2 * T_chunk * L * Bt * Hp * 4 * Hp                        # recurrent GEMMs
    ) + n_b * 2 * Bt * Hp * Op
    transcendentals = n_b * n_t * T_chunk * L * Bt * 5 * Hp
    bytes_accessed = 4 * int(x_tm.size) + weight_bytes + 4 * Bp * Op

    out = pl.pallas_call(
        _make_lstm_kernel(L, T_chunk, n_t, Hp, Bt, T, compute_dtype),
        out_shape=jax.ShapeDtypeStruct((Bp, Op), jnp.float32),
        grid_spec=pltpu.PrefetchScalarGridSpec(
            num_scalar_prefetch=0,
            grid=(n_b, n_t),
            in_specs=in_specs,
            out_specs=pl.BlockSpec((Bt, Op), lambda b, t: (b, 0)),
            scratch_shapes=scratch_shapes,
        ),
        compiler_params=pltpu.CompilerParams(
            dimension_semantics=("parallel", "arbitrary"),
            vmem_limit_bytes=vmem_limit),
        cost_estimate=pl.CostEstimate(
            flops=int(flops), transcendentals=int(transcendentals),
            bytes_accessed=int(bytes_accessed)),
    )(x_tm, *packed)

    return out[:B, :D_out]


# -----------------------------------------------------------------------------
# Deterministic parameter init (mirrors PyTorch nn.LSTM / nn.Linear shapes)
# -----------------------------------------------------------------------------
def init_params(key, D_in, H, L, D_out):
    k = 1.0 / jnp.sqrt(jnp.float32(H))
    params = {"lstm": []}
    for l in range(L):
        in_l = D_in if l == 0 else H
        key, k1, k2, k3, k4 = jax.random.split(key, 5)
        wih = jax.random.uniform(k1, (4 * H, in_l), jnp.float32, -k, k)
        whh = jax.random.uniform(k2, (4 * H, H), jnp.float32, -k, k)
        bih = jax.random.uniform(k3, (4 * H,), jnp.float32, -k, k)
        bhh = jax.random.uniform(k4, (4 * H,), jnp.float32, -k, k)
        params["lstm"].append((wih, whh, bih, bhh))
    key, k5, k6 = jax.random.split(key, 3)
    kf = 1.0 / jnp.sqrt(jnp.float32(H))
    params["fc_w"] = jax.random.uniform(k5, (D_out, H), jnp.float32, -kf, kf)
    params["fc_b"] = jax.random.uniform(k6, (D_out,), jnp.float32, -kf, kf)
    return params


# -----------------------------------------------------------------------------
# Pure-JAX reference (same math, no Pallas, no padding) for sanity checks
# -----------------------------------------------------------------------------
def reference_forward(x, params, H, L):
    B, T, D_in = x.shape
    hs = [jnp.zeros((B, H), jnp.float32) for _ in range(L)]
    cs = [jnp.zeros((B, H), jnp.float32) for _ in range(L)]
    for t in range(T):
        layer_in = x[:, t, :]
        for l in range(L):
            wih, whh, bih, bhh = params["lstm"][l]
            gates = layer_in @ wih.T + hs[l] @ whh.T + bih + bhh
            i_g = jax.nn.sigmoid(gates[:, 0 * H:1 * H])
            f_g = jax.nn.sigmoid(gates[:, 1 * H:2 * H])
            g_g = jnp.tanh(gates[:, 2 * H:3 * H])
            o_g = jax.nn.sigmoid(gates[:, 3 * H:4 * H])
            cs[l] = f_g * cs[l] + i_g * g_g
            hs[l] = o_g * jnp.tanh(cs[l])
            layer_in = hs[l]
    return hs[L - 1] @ params["fc_w"].T + params["fc_b"]


# -----------------------------------------------------------------------------
if __name__ == "__main__":
    B, T, D_in = 2, 8, 4          # batch, seq, input_dim
    H, L, D_out = 32, 2, 3        # hidden_num, layer_num, output_dim

    key = jax.random.PRNGKey(0)
    kx, kp = jax.random.split(key)
    x = jax.random.normal(kx, (B, T, D_in), dtype=jnp.float32)
    params = init_params(kp, D_in, H, L, D_out)

    with jax.default_matmul_precision("float32"):
        ref = reference_forward(x, params, H, L)

    # 1) f32-packed path: tight structural/numerical check.
    packed_f32 = pack_params(params, D_in=D_in, H=H, L=L, D_out=D_out,
                             compute_dtype=jnp.float32)
    out_f32 = trans_lstm_forward(x, packed_f32, H=H, L=L, D_out=D_out)
    jax.block_until_ready(out_f32)
    assert out_f32.shape == (B, D_out)
    assert jnp.allclose(out_f32, ref, atol=1e-3, rtol=1e-3), (out_f32, ref)

    # 2) bf16-packed fast path (MXU-friendly): looser tolerance for bf16 drift.
    packed_bf16 = pack_params(params, D_in=D_in, H=H, L=L, D_out=D_out,
                              compute_dtype=jnp.bfloat16)
    out_bf16 = trans_lstm_forward(x, packed_bf16, H=H, L=L, D_out=D_out)
    jax.block_until_ready(out_bf16)
    assert out_bf16.shape == (B, D_out)
    assert jnp.allclose(out_bf16, ref, atol=4e-2, rtol=4e-2), (out_bf16, ref)

    print("KERNEL_OK")
</pallas_src>

<mosaic_0001>
module attributes {stable_mosaic.version = 11 : i64} {
  func.func @kernel(%arg0: i32, %arg1: i32, %arg2: memref<8x8x128xf32, #tpu.memory_space<vmem>>, %arg3: memref<128x512xf32, #tpu.memory_space<vmem>>, %arg4: memref<128x512xf32, #tpu.memory_space<vmem>>, %arg5: memref<1x512xf32, #tpu.memory_space<vmem>>, %arg6: memref<128x512xf32, #tpu.memory_space<vmem>>, %arg7: memref<128x512xf32, #tpu.memory_space<vmem>>, %arg8: memref<1x512xf32, #tpu.memory_space<vmem>>, %arg9: memref<128x128xf32, #tpu.memory_space<vmem>>, %arg10: memref<1x128xf32, #tpu.memory_space<vmem>>, %arg11: memref<8x128xf32, #tpu.memory_space<vmem>>, %arg12: memref<2x8x128xf32, #tpu.memory_space<vmem>>, %arg13: memref<2x8x128xf32, #tpu.memory_space<vmem>>, %arg14: memref<64x128xf32, #tpu.memory_space<vmem>>, %arg15: memref<64x512xf32, #tpu.memory_space<vmem>>) attributes {dimension_semantics = [#tpu.dimension_semantics<parallel>, #tpu.dimension_semantics<arbitrary>], iteration_bounds = array<i64: 1, 1>, scalar_prefetch = 0 : i64, scratch_operands = 4 : i64, tpu.core_type = #tpu.core_type<tc>, window_params = [{transform_indices = @transform_0, window_bounds = array<i64: 8, 8, 128>}, {pipeline_mode = #tpu.pipeline_mode<synchronous>, transform_indices = @transform_1, window_bounds = array<i64: 128, 512>}, {pipeline_mode = #tpu.pipeline_mode<synchronous>, transform_indices = @transform_2, window_bounds = array<i64: 128, 512>}, {pipeline_mode = #tpu.pipeline_mode<synchronous>, transform_indices = @transform_3, window_bounds = array<i64: 1, 512>}, {pipeline_mode = #tpu.pipeline_mode<synchronous>, transform_indices = @transform_4, window_bounds = array<i64: 128, 512>}, {pipeline_mode = #tpu.pipeline_mode<synchronous>, transform_indices = @transform_5, window_bounds = array<i64: 128, 512>}, {pipeline_mode = #tpu.pipeline_mode<synchronous>, transform_indices = @transform_6, window_bounds = array<i64: 1, 512>}, {pipeline_mode = #tpu.pipeline_mode<synchronous>, transform_indices = @transform_7, window_bounds = array<i64: 128, 128>}, {pipeline_mode = #tpu.pipeline_mode<synchronous>, transform_indices = @transform_8, window_bounds = array<i64: 1, 128>}, {transform_indices = @transform_9, window_bounds = array<i64: 8, 128>}]} {
    %c0_i32 = arith.constant 0 : i32
    %0 = arith.cmpi eq, %arg1, %c0_i32 : i32
    %1 = arith.extui %0 : i1 to i32
    %c0_i32_0 = arith.constant 0 : i32
    %2 = arith.cmpi ne, %1, %c0_i32_0 : i32
    scf.if %2 {
      %cst_248 = arith.constant 0.000000e+00 : f32
      %595 = vector.broadcast %cst_248 : f32 to vector<2x8x128xf32>
      %c0_249 = arith.constant 0 : index
      %c0_250 = arith.constant 0 : index
      %c0_251 = arith.constant 0 : index
      %596 = vector.load %arg12[%c0_249, %c0_250, %c0_251] : memref<2x8x128xf32, #tpu.memory_space<vmem>>, vector<2x8x128xf32>
      tpu.vector_store %arg12[%c0_249, %c0_250, %c0_251], %595 {strides = array<i32>} : memref<2x8x128xf32, #tpu.memory_space<vmem>>, vector<2x8x128xf32>,
      %cst_252 = arith.constant 0.000000e+00 : f32
      %597 = vector.broadcast %cst_252 : f32 to vector<2x8x128xf32>
      %c0_253 = arith.constant 0 : index
      %c0_254 = arith.constant 0 : index
      %c0_255 = arith.constant 0 : index
      %598 = vector.load %arg13[%c0_253, %c0_254, %c0_255] : memref<2x8x128xf32, #tpu.memory_space<vmem>>, vector<2x8x128xf32>
      tpu.vector_store %arg13[%c0_253, %c0_254, %c0_255], %597 {strides = array<i32>} : memref<2x8x128xf32, #tpu.memory_space<vmem>>, vector<2x8x128xf32>,
    } else {
    }
    %c0 = arith.constant 0 : index
    %c0_1 = arith.constant 0 : index
    %c0_2 = arith.constant 0 : index
    %3 = vector.load %arg2[%c0, %c0_1, %c0_2] : memref<8x8x128xf32, #tpu.memory_space<vmem>>, vector<8x8x128xf32>
    %4 = vector.shape_cast %3 : vector<8x8x128xf32> to vector<64x128xf32>
    %c0_3 = arith.constant 0 : index
    %c0_4 = arith.constant 0 : index
    %5 = vector.load %arg3[%c0_3, %c0_4] : memref<128x512xf32, #tpu.memory_space<vmem>>, vector<128x512xf32>
    %cst = arith.constant dense<0.000000e+00> : vector<64x512xf32>
    %6 = tpu.matmul %4, %5, %cst {dimension_numbers = #tpu.dot_dimension_numbers<[1], [0], [0], [1], [0, 0, 1, 1], [], []>} : vector<64x128xf32>, vector<128x512xf32>, vector<64x512xf32> -> vector<64x512xf32>
    %c0_5 = arith.constant 0 : index
    %c0_6 = arith.constant 0 : index
    %7 = vector.load %arg5[%c0_5, %c0_6] : memref<1x512xf32, #tpu.memory_space<vmem>>, vector<1x512xf32>
    %8 = vector.broadcast %7 : vector<1x512xf32> to vector<64x512xf32>
    %9 = arith.addf %6, %8 : vector<64x512xf32>
    %c0_7 = arith.constant 0 : index
    %c0_8 = arith.constant 0 : index
    %10 = vector.load %arg15[%c0_7, %c0_8] : memref<64x512xf32, #tpu.memory_space<vmem>>, vector<64x512xf32>
    tpu.vector_store %arg15[%c0_7, %c0_8], %9 {strides = array<i32>} : memref<64x512xf32, #tpu.memory_space<vmem>>, vector<64x512xf32>,
    %c0_9 = arith.constant 0 : index
    %c0_10 = arith.constant 0 : index
    %11 = vector.load %arg4[%c0_9, %c0_10] : memref<128x512xf32, #tpu.memory_space<vmem>>, vector<128x512xf32>
    %c0_11 = arith.constant 0 : index
    %c0_12 = arith.constant 0 : index
    %c0_13 = arith.constant 0 : index
    %12 = vector.load %arg12[%c0_11, %c0_12, %c0_13] : memref<2x8x128xf32, #tpu.memory_space<vmem>>, vector<1x8x128xf32>
    %13 = vector.shape_cast %12 : vector<1x8x128xf32> to vector<8x128xf32>
    %c0_14 = arith.constant 0 : index
    %c0_15 = arith.constant 0 : index
    %c0_16 = arith.constant 0 : index
    %14 = vector.load %arg13[%c0_14, %c0_15, %c0_16] : memref<2x8x128xf32, #tpu.memory_space<vmem>>, vector<1x8x128xf32>
    %15 = vector.shape_cast %14 : vector<1x8x128xf32> to vector<8x128xf32>
    %c0_17 = arith.constant 0 : index
    %c0_18 = arith.constant 0 : index
    %16 = vector.load %arg15[%c0_17, %c0_18] : memref<64x512xf32, #tpu.memory_space<vmem>>, vector<8x512xf32>
    %cst_19 = arith.constant dense<0.000000e+00> : vector<8x512xf32>
    %17 = tpu.matmul %13, %11, %cst_19 {dimension_numbers = #tpu.dot_dimension_numbers<[1], [0], [0], [1], [0, 0, 1, 1], [], []>} : vector<8x128xf32>, vector<128x512xf32>, vector<8x512xf32> -> vector<8x512xf32>
    %18 = arith.addf %16, %17 : vector<8x512xf32>
    %19 = vector.extract_strided_slice %18 {offsets = [0, 0], sizes = [8, 128], strides = [1, 1]} : vector<8x512xf32> to vector<8x128xf32>
    %cst_20 = arith.constant 5.000000e-01 : f32
    %20 = vector.broadcast %cst_20 : f32 to vector<8x128xf32>
    %21 = arith.mulf %20, %19 : vector<8x128xf32>
    %22 = math.tanh %21 : vector<8x128xf32>
    %cst_21 = arith.constant 5.000000e-01 : f32
    %23 = vector.broadcast %cst_21 : f32 to vector<8x128xf32>
    %24 = arith.mulf %23, %22 : vector<8x128xf32>
    %cst_22 = arith.constant 5.000000e-01 : f32
    %25 = vector.broadcast %cst_22 : f32 to vector<8x128xf32>
    %26 = arith.addf %24, %25 : vector<8x128xf32>
    %27 = vector.extract_strided_slice %18 {offsets = [0, 128], sizes = [8, 128], strides = [1, 1]} : vector<8x512xf32> to vector<8x128xf32>
    %cst_23 = arith.constant 5.000000e-01 : f32
    %28 = vector.broadcast %cst_23 : f32 to vector<8x128xf32>
    %29 = arith.mulf %28, %27 : vector<8x128xf32>
    %30 = math.tanh %29 : vector<8x128xf32>
    %cst_24 = arith.constant 5.000000e-01 : f32
    %31 = vector.broadcast %cst_24 : f32 to vector<8x128xf32>
    %32 = arith.mulf %31, %30 : vector<8x128xf32>
    %cst_25 = arith.constant 5.000000e-01 : f32
    %33 = vector.broadcast %cst_25 : f32 to vector<8x128xf32>
    %34 = arith.addf %32, %33 : vector<8x128xf32>
    %35 = vector.extract_strided_slice %18 {offsets = [0, 256], sizes = [8, 128], strides = [1, 1]} : vector<8x512xf32> to vector<8x128xf32>
    %36 = math.tanh %35 : vector<8x128xf32>
    %37 = vector.extract_strided_slice %18 {offsets = [0, 384], sizes = [8, 128], strides = [1, 1]} : vector<8x512xf32> to vector<8x128xf32>
    %cst_26 = arith.constant 5.000000e-01 : f32
    %38 = vector.broadcast %cst_26 : f32 to vector<8x128xf32>
    %39 = arith.mulf %38, %37 : vector<8x128xf32>
    %40 = math.tanh %39 : vector<8x128xf32>
    %cst_27 = arith.constant 5.000000e-01 : f32
    %41 = vector.broadcast %cst_27 : f32 to vector<8x128xf32>
    %42 = arith.mulf %41, %40 : vector<8x128xf32>
    %cst_28 = arith.constant 5.000000e-01 : f32
    %43 = vector.broadcast %cst_28 : f32 to vector<8x128xf32>
    %44 = arith.addf %42, %43 : vector<8x128xf32>
    %45 = arith.mulf %34, %15 : vector<8x128xf32>
    %46 = arith.mulf %26, %36 : vector<8x128xf32>
    %47 = arith.addf %45, %46 : vector<8x128xf32>
    %48 = math.tanh %47 : vector<8x128xf32>
    %49 = arith.mulf %44, %48 : vector<8x128xf32>
    %c0_29 = arith.constant 0 : index
    %c0_30 = arith.constant 0 : index
    %50 = vector.load %arg14[%c0_29, %c0_30] : memref<64x128xf32, #tpu.memory_space<vmem>>, vector<8x128xf32>
    tpu.vector_store %arg14[%c0_29, %c0_30], %49 {strides = array<i32>} : memref<64x128xf32, #tpu.memory_space<vmem>>, vector<8x128xf32>,
    %c8 = arith.constant 8 : index
    %c0_31 = arith.constant 0 : index
    %51 = vector.load %arg15[%c8, %c0_31] : memref<64x512xf32, #tpu.memory_space<vmem>>, vector<8x512xf32>
    %cst_32 = arith.constant dense<0.000000e+00> : vector<8x512xf32>
    %52 = tpu.matmul %49, %11, %cst_32 {dimension_numbers = #tpu.dot_dimension_numbers<[1], [0], [0], [1], [0, 0, 1, 1], [], []>} : vector<8x128xf32>, vector<128x512xf32>, vector<8x512xf32> -> vector<8x512xf32>
    %53 = arith.addf %51, %52 : vector<8x512xf32>
    %54 = vector.extract_strided_slice %53 {offsets = [0, 0], sizes = [8, 128], strides = [1, 1]} : vector<8x512xf32> to vector<8x128xf32>
    %cst_33 = arith.constant 5.000000e-01 : f32
    %55 = vector.broadcast %cst_33 : f32 to vector<8x128xf32>
    %56 = arith.mulf %55, %54 : vector<8x128xf32>
    %57 = math.tanh %56 : vector<8x128xf32>
    %cst_34 = arith.constant 5.000000e-01 : f32
    %58 = vector.broadcast %cst_34 : f32 to vector<8x128xf32>
    %59 = arith.mulf %58, %57 : vector<8x128xf32>
    %cst_35 = arith.constant 5.000000e-01 : f32
    %60 = vector.broadcast %cst_35 : f32 to vector<8x128xf32>
    %61 = arith.addf %59, %60 : vector<8x128xf32>
    %62 = vector.extract_strided_slice %53 {offsets = [0, 128], sizes = [8, 128], strides = [1, 1]} : vector<8x512xf32> to vector<8x128xf32>
    %cst_36 = arith.constant 5.000000e-01 : f32
    %63 = vector.broadcast %cst_36 : f32 to vector<8x128xf32>
    %64 = arith.mulf %63, %62 : vector<8x128xf32>
    %65 = math.tanh %64 : vector<8x128xf32>
    %cst_37 = arith.constant 5.000000e-01 : f32
    %66 = vector.broadcast %cst_37 : f32 to vector<8x128xf32>
    %67 = arith.mulf %66, %65 : vector<8x128xf32>
    %cst_38 = arith.constant 5.000000e-01 : f32
    %68 = vector.broadcast %cst_38 : f32 to vector<8x128xf32>
    %69 = arith.addf %67, %68 : vector<8x128xf32>
    %70 = vector.extract_strided_slice %53 {offsets = [0, 256], sizes = [8, 128], strides = [1, 1]} : vector<8x512xf32> to vector<8x128xf32>
    %71 = math.tanh %70 : vector<8x128xf32>
    %72 = vector.extract_strided_slice %53 {offsets = [0, 384], sizes = [8, 128], strides = [1, 1]} : vector<8x512xf32> to vector<8x128xf32>
    %cst_39 = arith.constant 5.000000e-01 : f32
    %73 = vector.broadcast %cst_39 : f32 to vector<8x128xf32>
    %74 = arith.mulf %73, %72 : vector<8x128xf32>
    %75 = math.tanh %74 : vector<8x128xf32>
    %cst_40 = arith.constant 5.000000e-01 : f32
    %76 = vector.broadcast %cst_40 : f32 to vector<8x128xf32>
    %77 = arith.mulf %76, %75 : vector<8x128xf32>
    %cst_41 = arith.constant 5.000000e-01 : f32
    %78 = vector.broadcast %cst_41 : f32 to vector<8x128xf32>
    %79 = arith.addf %77, %78 : vector<8x128xf32>
    %80 = arith.mulf %69, %47 : vector<8x128xf32>
    %81 = arith.mulf %61, %71 : vector<8x128xf32>
    %82 = arith.addf %80, %81 : vector<8x128xf32>
    %83 = math.tanh %82 : vector<8x128xf32>
    %84 = arith.mulf %79, %83 : vector<8x128xf32>
    %c8_42 = arith.constant 8 : index
    %c0_43 = arith.constant 0 : index
    %85 = vector.load %arg14[%c8_42, %c0_43] : memref<64x128xf32, #tpu.memory_space<vmem>>, vector<8x128xf32>
    tpu.vector_store %arg14[%c8_42, %c0_43], %84 {strides = array<i32>} : memref<64x128xf32, #tpu.memory_space<vmem>>, vector<8x128xf32>,
    %c16 = arith.constant 16 : index
    %c0_44 = arith.constant 0 : index
    %86 = vector.load %arg15[%c16, %c0_44] : memref<64x512xf32, #tpu.memory_space<vmem>>, vector<8x512xf32>
    %cst_45 = arith.constant dense<0.000000e+00> : vector<8x512xf32>
    %87 = tpu.matmul %84, %11, %cst_45 {dimension_numbers = #tpu.dot_dimension_numbers<[1], [0], [0], [1], [0, 0, 1, 1], [], []>} : vector<8x128xf32>, vector<128x512xf32>, vector<8x512xf32> -> vector<8x512xf32>
    %88 = arith.addf %86, %87 : vector<8x512xf32>
    %89 = vector.extract_strided_slice %88 {offsets = [0, 0], sizes = [8, 128], strides = [1, 1]} : vector<8x512xf32> to vector<8x128xf32>
    %cst_46 = arith.constant 5.000000e-01 : f32
    %90 = vector.broadcast %cst_46 : f32 to vector<8x128xf32>
    %91 = arith.mulf %90, %89 : vector<8x128xf32>
    %92 = math.tanh %91 : vector<8x128xf32>
    %cst_47 = arith.constant 5.000000e-01 : f32
    %93 = vector.broadcast %cst_47 : f32 to vector<8x128xf32>
    %94 = arith.mulf %93, %92 : vector<8x128xf32>
    %cst_48 = arith.constant 5.000000e-01 : f32
    %95 = vector.broadcast %cst_48 : f32 to vector<8x128xf32>
    %96 = arith.addf %94, %95 : vector<8x128xf32>
    %97 = vector.extract_strided_slice %88 {offsets = [0, 128], sizes = [8, 128], strides = [1, 1]} : vector<8x512xf32> to vector<8x128xf32>
    %cst_49 = arith.constant 5.000000e-01 : f32
    %98 = vector.broadcast %cst_49 : f32 to vector<8x128xf32>
    %99 = arith.mulf %98, %97 : vector<8x128xf32>
    %100 = math.tanh %99 : vector<8x128xf32>
    %cst_50 = arith.constant 5.000000e-01 : f32
    %101 = vector.broadcast %cst_50 : f32 to vector<8x128xf32>
    %102 = arith.mulf %101, %100 : vector<8x128xf32>
    %cst_51 = arith.constant 5.000000e-01 : f32
    %103 = vector.broadcast %cst_51 : f32 to vector<8x128xf32>
    %104 = arith.addf %102, %103 : vector<8x128xf32>
    %105 = vector.extract_strided_slice %88 {offsets = [0, 256], sizes = [8, 128], strides = [1, 1]} : vector<8x512xf32> to vector<8x128xf32>
    %106 = math.tanh %105 : vector<8x128xf32>
    %107 = vector.extract_strided_slice %88 {offsets = [0, 384], sizes = [8, 128], strides = [1, 1]} : vector<8x512xf32> to vector<8x128xf32>
    %cst_52 = arith.constant 5.000000e-01 : f32
    %108 = vector.broadcast %cst_52 : f32 to vector<8x128xf32>
    %109 = arith.mulf %108, %107 : vector<8x128xf32>
    %110 = math.tanh %109 : vector<8x128xf32>
    %cst_53 = arith.constant 5.000000e-01 : f32
    %111 = vector.broadcast %cst_53 : f32 to vector<8x128xf32>
    %112 = arith.mulf %111, %110 : vector<8x128xf32>
    %cst_54 = arith.constant 5.000000e-01 : f32
    %113 = vector.broadcast %cst_54 : f32 to vector<8x128xf32>
    %114 = arith.addf %112, %113 : vector<8x128xf32>
    %115 = arith.mulf %104, %82 : vector<8x128xf32>
    %116 = arith.mulf %96, %106 : vector<8x128xf32>
    %117 = arith.addf %115, %116 : vector<8x128xf32>
    %118 = math.tanh %117 : vector<8x128xf32>
    %119 = arith.mulf %114, %118 : vector<8x128xf32>
    %c16_55 = arith.constant 16 : index
    %c0_56 = arith.constant 0 : index
    %120 = vector.load %arg14[%c16_55, %c0_56] : memref<64x128xf32, #tpu.memory_space<vmem>>, vector<8x128xf32>
    tpu.vector_store %arg14[%c16_55, %c0_56], %119 {strides = array<i32>} : memref<64x128xf32, #tpu.memory_space<vmem>>, vector<8x128xf32>,
    %c24 = arith.constant 24 : index
    %c0_57 = arith.constant 0 : index
    %121 = vector.load %arg15[%c24, %c0_57] : memref<64x512xf32, #tpu.memory_space<vmem>>, vector<8x512xf32>
    %cst_58 = arith.constant dense<0.000000e+00> : vector<8x512xf32>
    %122 = tpu.matmul %119, %11, %cst_58 {dimension_numbers = #tpu.dot_dimension_numbers<[1], [0], [0], [1], [0, 0, 1, 1], [], []>} : vector<8x128xf32>, vector<128x512xf32>, vector<8x512xf32> -> vector<8x512xf32>
    %123 = arith.addf %121, %122 : vector<8x512xf32>
    %124 = vector.extract_strided_slice %123 {offsets = [0, 0], sizes = [8, 128], strides = [1, 1]} : vector<8x512xf32> to vector<8x128xf32>
    %cst_59 = arith.constant 5.000000e-01 : f32
    %125 = vector.broadcast %cst_59 : f32 to vector<8x128xf32>
    %126 = arith.mulf %125, %124 : vector<8x128xf32>
    %127 = math.tanh %126 : vector<8x128xf32>
    %cst_60 = arith.constant 5.000000e-01 : f32
    %128 = vector.broadcast %cst_60 : f32 to vector<8x128xf32>
    %129 = arith.mulf %128, %127 : vector<8x128xf32>
    %cst_61 = arith.constant 5.000000e-01 : f32
    %130 = vector.broadcast %cst_61 : f32 to vector<8x128xf32>
    %131 = arith.addf %129, %130 : vector<8x128xf32>
    %132 = vector.extract_strided_slice %123 {offsets = [0, 128], sizes = [8, 128], strides = [1, 1]} : vector<8x512xf32> to vector<8x128xf32>
    %cst_62 = arith.constant 5.000000e-01 : f32
    %133 = vector.broadcast %cst_62 : f32 to vector<8x128xf32>
    %134 = arith.mulf %133, %132 : vector<8x128xf32>
    %135 = math.tanh %134 : vector<8x128xf32>
    %cst_63 = arith.constant 5.000000e-01 : f32
    %136 = vector.broadcast %cst_63 : f32 to vector<8x128xf32>
    %137 = arith.mulf %136, %135 : vector<8x128xf32>
    %cst_64 = arith.constant 5.000000e-01 : f32
    %138 = vector.broadcast %cst_64 : f32 to vector<8x128xf32>
    %139 = arith.addf %137, %138 : vector<8x128xf32>
    %140 = vector.extract_strided_slice %123 {offsets = [0, 256], sizes = [8, 128], strides = [1, 1]} : vector<8x512xf32> to vector<8x128xf32>
    %141 = math.tanh %140 : vector<8x128xf32>
    %142 = vector.extract_strided_slice %123 {offsets = [0, 384], sizes = [8, 128], strides = [1, 1]} : vector<8x512xf32> to vector<8x128xf32>
    %cst_65 = arith.constant 5.000000e-01 : f32
    %143 = vector.broadcast %cst_65 : f32 to vector<8x128xf32>
    %144 = arith.mulf %143, %142 : vector<8x128xf32>
    %145 = math.tanh %144 : vector<8x128xf32>
    %cst_66 = arith.constant 5.000000e-01 : f32
    %146 = vector.broadcast %cst_66 : f32 to vector<8x128xf32>
    %147 = arith.mulf %146, %145 : vector<8x128xf32>
    %cst_67 = arith.constant 5.000000e-01 : f32
    %148 = vector.broadcast %cst_67 : f32 to vector<8x128xf32>
    %149 = arith.addf %147, %148 : vector<8x128xf32>
    %150 = arith.mulf %139, %117 : vector<8x128xf32>
    %151 = arith.mulf %131, %141 : vector<8x128xf32>
    %152 = arith.addf %150, %151 : vector<8x128xf32>
    %153 = math.tanh %152 : vector<8x128xf32>
    %154 = arith.mulf %149, %153 : vector<8x128xf32>
    %c24_68 = arith.constant 24 : index
    %c0_69 = arith.constant 0 : index
    %155 = vector.load %arg14[%c24_68, %c0_69] : memref<64x128xf32, #tpu.memory_space<vmem>>, vector<8x128xf32>
    tpu.vector_store %arg14[%c24_68, %c0_69], %154 {strides = array<i32>} : memref<64x128xf32, #tpu.memory_space<vmem>>, vector<8x128xf32>,
    %c32 = arith.constant 32 : index
    %c0_70 = arith.constant 0 : index
    %156 = vector.load %arg15[%c32, %c0_70] : memref<64x512xf32, #tpu.memory_space<vmem>>, vector<8x512xf32>
    %cst_71 = arith.constant dense<0.000000e+00> : vector<8x512xf32>
    %157 = tpu.matmul %154, %11, %cst_71 {dimension_numbers = #tpu.dot_dimension_numbers<[1], [0], [0], [1], [0, 0, 1, 1], [], []>} : vector<8x128xf32>, vector<128x512xf32>, vector<8x512xf32> -> vector<8x512xf32>
    %158 = arith.addf %156, %157 : vector<8x512xf32>
    %159 = vector.extract_strided_slice %158 {offsets = [0, 0], sizes = [8, 128], strides = [1, 1]} : vector<8x512xf32> to vector<8x128xf32>
    %cst_72 = arith.constant 5.000000e-01 : f32
    %160 = vector.broadcast %cst_72 : f32 to vector<8x128xf32>
    %161 = arith.mulf %160, %159 : vector<8x128xf32>
    %162 = math.tanh %161 : vector<8x128xf32>
    %cst_73 = arith.constant 5.000000e-01 : f32
    %163 = vector.broadcast %cst_73 : f32 to vector<8x128xf32>
    %164 = arith.mulf %163, %162 : vector<8x128xf32>
    %cst_74 = arith.constant 5.000000e-01 : f32
    %165 = vector.broadcast %cst_74 : f32 to vector<8x128xf32>
    %166 = arith.addf %164, %165 : vector<8x128xf32>
    %167 = vector.extract_strided_slice %158 {offsets = [0, 128], sizes = [8, 128], strides = [1, 1]} : vector<8x512xf32> to vector<8x128xf32>
    %cst_75 = arith.constant 5.000000e-01 : f32
    %168 = vector.broadcast %cst_75 : f32 to vector<8x128xf32>
    %169 = arith.mulf %168, %167 : vector<8x128xf32>
    %170 = math.tanh %169 : vector<8x128xf32>
    %cst_76 = arith.constant 5.000000e-01 : f32
    %171 = vector.broadcast %cst_76 : f32 to vector<8x128xf32>
    %172 = arith.mulf %171, %170 : vector<8x128xf32>
    %cst_77 = arith.constant 5.000000e-01 : f32
    %173 = vector.broadcast %cst_77 : f32 to vector<8x128xf32>
    %174 = arith.addf %172, %173 : vector<8x128xf32>
    %175 = vector.extract_strided_slice %158 {offsets = [0, 256], sizes = [8, 128], strides = [1, 1]} : vector<8x512xf32> to vector<8x128xf32>
    %176 = math.tanh %175 : vector<8x128xf32>
    %177 = vector.extract_strided_slice %158 {offsets = [0, 384], sizes = [8, 128], strides = [1, 1]} : vector<8x512xf32> to vector<8x128xf32>
    %cst_78 = arith.constant 5.000000e-01 : f32
    %178 = vector.broadcast %cst_78 : f32 to vector<8x128xf32>
    %179 = arith.mulf %178, %177 : vector<8x128xf32>
    %180 = math.tanh %179 : vector<8x128xf32>
    %cst_79 = arith.constant 5.000000e-01 : f32
    %181 = vector.broadcast %cst_79 : f32 to vector<8x128xf32>
    %182 = arith.mulf %181, %180 : vector<8x128xf32>
    %cst_80 = arith.constant 5.000000e-01 : f32
    %183 = vector.broadcast %cst_80 : f32 to vector<8x128xf32>
    %184 = arith.addf %182, %183 : vector<8x128xf32>
    %185 = arith.mulf %174, %152 : vector<8x128xf32>
    %186 = arith.mulf %166, %176 : vector<8x128xf32>
    %187 = arith.addf %185, %186 : vector<8x128xf32>
    %188 = math.tanh %187 : vector<8x128xf32>
    %189 = arith.mulf %184, %188 : vector<8x128xf32>
    %c32_81 = arith.constant 32 : index
    %c0_82 = arith.constant 0 : index
    %190 = vector.load %arg14[%c32_81, %c0_82] : memref<64x128xf32, #tpu.memory_space<vmem>>, vector<8x128xf32>
    tpu.vector_store %arg14[%c32_81, %c0_82], %189 {strides = array<i32>} : memref<64x128xf32, #tpu.memory_space<vmem>>, vector<8x128xf32>,
    %c40 = arith.constant 40 : index
    %c0_83 = arith.constant 0 : index
    %191 = vector.load %arg15[%c40, %c0_83] : memref<64x512xf32, #tpu.memory_space<vmem>>, vector<8x512xf32>
    %cst_84 = arith.constant dense<0.000000e+00> : vector<8x512xf32>
    %192 = tpu.matmul %189, %11, %cst_84 {dimension_numbers = #tpu.dot_dimension_numbers<[1], [0], [0], [1], [0, 0, 1, 1], [], []>} : vector<8x128xf32>, vector<128x512xf32>, vector<8x512xf32> -> vector<8x512xf32>
    %193 = arith.addf %191, %192 : vector<8x512xf32>
    %194 = vector.extract_strided_slice %193 {offsets = [0, 0], sizes = [8, 128], strides = [1, 1]} : vector<8x512xf32> to vector<8x128xf32>
    %cst_85 = arith.constant 5.000000e-01 : f32
    %195 = vector.broadcast %cst_85 : f32 to vector<8x128xf32>
    %196 = arith.mulf %195, %194 : vector<8x128xf32>
    %197 = math.tanh %196 : vector<8x128xf32>
    %cst_86 = arith.constant 5.000000e-01 : f32
    %198 = vector.broadcast %cst_86 : f32 to vector<8x128xf32>
    %199 = arith.mulf %198, %197 : vector<8x128xf32>
    %cst_87 = arith.constant 5.000000e-01 : f32
    %200 = vector.broadcast %cst_87 : f32 to vector<8x128xf32>
    %201 = arith.addf %199, %200 : vector<8x128xf32>
    %202 = vector.extract_strided_slice %193 {offsets = [0, 128], sizes = [8, 128], strides = [1, 1]} : vector<8x512xf32> to vector<8x128xf32>
    %cst_88 = arith.constant 5.000000e-01 : f32
    %203 = vector.broadcast %cst_88 : f32 to vector<8x128xf32>
    %204 = arith.mulf %203, %202 : vector<8x128xf32>
    %205 = math.tanh %204 : vector<8x128xf32>
    %cst_89 = arith.constant 5.000000e-01 : f32
    %206 = vector.broadcast %cst_89 : f32 to vector<8x128xf32>
    %207 = arith.mulf %206, %205 : vector<8x128xf32>
    %cst_90 = arith.constant 5.000000e-01 : f32
    %208 = vector.broadcast %cst_90 : f32 to vector<8x128xf32>
    %209 = arith.addf %207, %208 : vector<8x128xf32>
    %210 = vector.extract_strided_slice %193 {offsets = [0, 256], sizes = [8, 128], strides = [1, 1]} : vector<8x512xf32> to vector<8x128xf32>
    %211 = math.tanh %210 : vector<8x128xf32>
    %212 = vector.extract_strided_slice %193 {offsets = [0, 384], sizes = [8, 128], strides = [1, 1]} : vector<8x512xf32> to vector<8x128xf32>
    %cst_91 = arith.constant 5.000000e-01 : f32
    %213 = vector.broadcast %cst_91 : f32 to vector<8x128xf32>
    %214 = arith.mulf %213, %212 : vector<8x128xf32>
    %215 = math.tanh %214 : vector<8x128xf32>
    %cst_92 = arith.constant 5.000000e-01 : f32
    %216 = vector.broadcast %cst_92 : f32 to vector<8x128xf32>
    %217 = arith.mulf %216, %215 : vector<8x128xf32>
    %cst_93 = arith.constant 5.000000e-01 : f32
    %218 = vector.broadcast %cst_93 : f32 to vector<8x128xf32>
    %219 = arith.addf %217, %218 : vector<8x128xf32>
    %220 = arith.mulf %209, %187 : vector<8x128xf32>
    %221 = arith.mulf %201, %211 : vector<8x128xf32>
    %222 = arith.addf %220, %221 : vector<8x128xf32>
    %223 = math.tanh %222 : vector<8x128xf32>
    %224 = arith.mulf %219, %223 : vector<8x128xf32>
    %c40_94 = arith.constant 40 : index
    %c0_95 = arith.constant 0 : index
    %225 = vector.load %arg14[%c40_94, %c0_95] : memref<64x128xf32, #tpu.memory_space<vmem>>, vector<8x128xf32>
    tpu.vector_store %arg14[%c40_94, %c0_95], %224 {strides = array<i32>} : memref<64x128xf32, #tpu.memory_space<vmem>>, vector<8x128xf32>,
    %c48 = arith.constant 48 : index
    %c0_96 = arith.constant 0 : index
    %226 = vector.load %arg15[%c48, %c0_96] : memref<64x512xf32, #tpu.memory_space<vmem>>, vector<8x512xf32>
    %cst_97 = arith.constant dense<0.000000e+00> : vector<8x512xf32>
    %227 = tpu.matmul %224, %11, %cst_97 {dimension_numbers = #tpu.dot_dimension_numbers<[1], [0], [0], [1], [0, 0, 1, 1], [], []>} : vector<8x128xf32>, vector<128x512xf32>, vector<8x512xf32> -> vector<8x512xf32>
    %228 = arith.addf %226, %227 : vector<8x512xf32>
    %229 = vector.extract_strided_slice %228 {offsets = [0, 0], sizes = [8, 128], strides = [1, 1]} : vector<8x512xf32> to vector<8x128xf32>
    %cst_98 = arith.constant 5.000000e-01 : f32
    %230 = vector.broadcast %cst_98 : f32 to vector<8x128xf32>
    %231 = arith.mulf %230, %229 : vector<8x128xf32>
    %232 = math.tanh %231 : vector<8x128xf32>
    %cst_99 = arith.constant 5.000000e-01 : f32
    %233 = vector.broadcast %cst_99 : f32 to vector<8x128xf32>
    %234 = arith.mulf %233, %232 : vector<8x128xf32>
    %cst_100 = arith.constant 5.000000e-01 : f32
    %235 = vector.broadcast %cst_100 : f32 to vector<8x128xf32>
    %236 = arith.addf %234, %235 : vector<8x128xf32>
    %237 = vector.extract_strided_slice %228 {offsets = [0, 128], sizes = [8, 128], strides = [1, 1]} : vector<8x512xf32> to vector<8x128xf32>
    %cst_101 = arith.constant 5.000000e-01 : f32
    %238 = vector.broadcast %cst_101 : f32 to vector<8x128xf32>
    %239 = arith.mulf %238, %237 : vector<8x128xf32>
    %240 = math.tanh %239 : vector<8x128xf32>
    %cst_102 = arith.constant 5.000000e-01 : f32
    %241 = vector.broadcast %cst_102 : f32 to vector<8x128xf32>
    %242 = arith.mulf %241, %240 : vector<8x128xf32>
    %cst_103 = arith.constant 5.000000e-01 : f32
    %243 = vector.broadcast %cst_103 : f32 to vector<8x128xf32>
    %244 = arith.addf %242, %243 : vector<8x128xf32>
    %245 = vector.extract_strided_slice %228 {offsets = [0, 256], sizes = [8, 128], strides = [1, 1]} : vector<8x512xf32> to vector<8x128xf32>
    %246 = math.tanh %245 : vector<8x128xf32>
    %247 = vector.extract_strided_slice %228 {offsets = [0, 384], sizes = [8, 128], strides = [1, 1]} : vector<8x512xf32> to vector<8x128xf32>
    %cst_104 = arith.constant 5.000000e-01 : f32
    %248 = vector.broadcast %cst_104 : f32 to vector<8x128xf32>
    %249 = arith.mulf %248, %247 : vector<8x128xf32>
    %250 = math.tanh %249 : vector<8x128xf32>
    %cst_105 = arith.constant 5.000000e-01 : f32
    %251 = vector.broadcast %cst_105 : f32 to vector<8x128xf32>
    %252 = arith.mulf %251, %250 : vector<8x128xf32>
    %cst_106 = arith.constant 5.000000e-01 : f32
    %253 = vector.broadcast %cst_106 : f32 to vector<8x128xf32>
    %254 = arith.addf %252, %253 : vector<8x128xf32>
    %255 = arith.mulf %244, %222 : vector<8x128xf32>
    %256 = arith.mulf %236, %246 : vector<8x128xf32>
    %257 = arith.addf %255, %256 : vector<8x128xf32>
    %258 = math.tanh %257 : vector<8x128xf32>
    %259 = arith.mulf %254, %258 : vector<8x128xf32>
    %c48_107 = arith.constant 48 : index
    %c0_108 = arith.constant 0 : index
    %260 = vector.load %arg14[%c48_107, %c0_108] : memref<64x128xf32, #tpu.memory_space<vmem>>, vector<8x128xf32>
    tpu.vector_store %arg14[%c48_107, %c0_108], %259 {strides = array<i32>} : memref<64x128xf32, #tpu.memory_space<vmem>>, vector<8x128xf32>,
    %c56 = arith.constant 56 : index
    %c0_109 = arith.constant 0 : index
    %261 = vector.load %arg15[%c56, %c0_109] : memref<64x512xf32, #tpu.memory_space<vmem>>, vector<8x512xf32>
    %cst_110 = arith.constant dense<0.000000e+00> : vector<8x512xf32>
    %262 = tpu.matmul %259, %11, %cst_110 {dimension_numbers = #tpu.dot_dimension_numbers<[1], [0], [0], [1], [0, 0, 1, 1], [], []>} : vector<8x128xf32>, vector<128x512xf32>, vector<8x512xf32> -> vector<8x512xf32>
    %263 = arith.addf %261, %262 : vector<8x512xf32>
    %264 = vector.extract_strided_slice %263 {offsets = [0, 0], sizes = [8, 128], strides = [1, 1]} : vector<8x512xf32> to vector<8x128xf32>
    %cst_111 = arith.constant 5.000000e-01 : f32
    %265 = vector.broadcast %cst_111 : f32 to vector<8x128xf32>
    %266 = arith.mulf %265, %264 : vector<8x128xf32>
    %267 = math.tanh %266 : vector<8x128xf32>
    %cst_112 = arith.constant 5.000000e-01 : f32
    %268 = vector.broadcast %cst_112 : f32 to vector<8x128xf32>
    %269 = arith.mulf %268, %267 : vector<8x128xf32>
    %cst_113 = arith.constant 5.000000e-01 : f32
    %270 = vector.broadcast %cst_113 : f32 to vector<8x128xf32>
    %271 = arith.addf %269, %270 : vector<8x128xf32>
    %272 = vector.extract_strided_slice %263 {offsets = [0, 128], sizes = [8, 128], strides = [1, 1]} : vector<8x512xf32> to vector<8x128xf32>
    %cst_114 = arith.constant 5.000000e-01 : f32
    %273 = vector.broadcast %cst_114 : f32 to vector<8x128xf32>
    %274 = arith.mulf %273, %272 : vector<8x128xf32>
    %275 = math.tanh %274 : vector<8x128xf32>
    %cst_115 = arith.constant 5.000000e-01 : f32
    %276 = vector.broadcast %cst_115 : f32 to vector<8x128xf32>
    %277 = arith.mulf %276, %275 : vector<8x128xf32>
    %cst_116 = arith.constant 5.000000e-01 : f32
    %278 = vector.broadcast %cst_116 : f32 to vector<8x128xf32>
    %279 = arith.addf %277, %278 : vector<8x128xf32>
    %280 = vector.extract_strided_slice %263 {offsets = [0, 256], sizes = [8, 128], strides = [1, 1]} : vector<8x512xf32> to vector<8x128xf32>
    %281 = math.tanh %280 : vector<8x128xf32>
    %282 = vector.extract_strided_slice %263 {offsets = [0, 384], sizes = [8, 128], strides = [1, 1]} : vector<8x512xf32> to vector<8x128xf32>
    %cst_117 = arith.constant 5.000000e-01 : f32
    %283 = vector.broadcast %cst_117 : f32 to vector<8x128xf32>
    %284 = arith.mulf %283, %282 : vector<8x128xf32>
    %285 = math.tanh %284 : vector<8x128xf32>
    %cst_118 = arith.constant 5.000000e-01 : f32
    %286 = vector.broadcast %cst_118 : f32 to vector<8x128xf32>
    %287 = arith.mulf %286, %285 : vector<8x128xf32>
    %cst_119 = arith.constant 5.000000e-01 : f32
    %288 = vector.broadcast %cst_119 : f32 to vector<8x128xf32>
    %289 = arith.addf %287, %288 : vector<8x128xf32>
    %290 = arith.mulf %279, %257 : vector<8x128xf32>
    %291 = arith.mulf %271, %281 : vector<8x128xf32>
    %292 = arith.addf %290, %291 : vector<8x128xf32>
    %293 = math.tanh %292 : vector<8x128xf32>
    %294 = arith.mulf %289, %293 : vector<8x128xf32>
    %c56_120 = arith.constant 56 : index
    %c0_121 = arith.constant 0 : index
    %295 = vector.load %arg14[%c56_120, %c0_121] : memref<64x128xf32, #tpu.memory_space<vmem>>, vector<8x128xf32>
    tpu.vector_store %arg14[%c56_120, %c0_121], %294 {strides = array<i32>} : memref<64x128xf32, #tpu.memory_space<vmem>>, vector<8x128xf32>,
    %c0_122 = arith.constant 0 : index
    %c0_123 = arith.constant 0 : index
    %c0_124 = arith.constant 0 : index
    %296 = vector.load %arg12[%c0_122, %c0_123, %c0_124] : memref<2x8x128xf32, #tpu.memory_space<vmem>>, vector<1x8x128xf32>
    %297 = vector.shape_cast %296 : vector<1x8x128xf32> to vector<8x128xf32>
    %298 = vector.shape_cast %294 : vector<8x128xf32> to vector<1x8x128xf32>
    tpu.vector_store %arg12[%c0_122, %c0_123, %c0_124], %298 {strides = array<i32>} : memref<2x8x128xf32, #tpu.memory_space<vmem>>, vector<1x8x128xf32>,
    %c0_125 = arith.constant 0 : index
    %c0_126 = arith.constant 0 : index
    %c0_127 = arith.constant 0 : index
    %299 = vector.load %arg13[%c0_125, %c0_126, %c0_127] : memref<2x8x128xf32, #tpu.memory_space<vmem>>, vector<1x8x128xf32>
    %300 = vector.shape_cast %299 : vector<1x8x128xf32> to vector<8x128xf32>
    %301 = vector.shape_cast %292 : vector<8x128xf32> to vector<1x8x128xf32>
    tpu.vector_store %arg13[%c0_125, %c0_126, %c0_127], %301 {strides = array<i32>} : memref<2x8x128xf32, #tpu.memory_space<vmem>>, vector<1x8x128xf32>,
    %c0_128 = arith.constant 0 : index
    %c0_129 = arith.constant 0 : index
    %302 = vector.load %arg14[%c0_128, %c0_129] : memref<64x128xf32, #tpu.memory_space<vmem>>, vector<64x128xf32>
    %c0_130 = arith.constant 0 : index
    %c0_131 = arith.constant 0 : index
    %303 = vector.load %arg6[%c0_130, %c0_131] : memref<128x512xf32, #tpu.memory_space<vmem>>, vector<128x512xf32>
    %cst_132 = arith.constant dense<0.000000e+00> : vector<64x512xf32>
    %304 = tpu.matmul %302, %303, %cst_132 {dimension_numbers = #tpu.dot_dimension_numbers<[1], [0], [0], [1], [0, 0, 1, 1], [], []>} : vector<64x128xf32>, vector<128x512xf32>, vector<64x512xf32> -> vector<64x512xf32>
    %c0_133 = arith.constant 0 : index
    %c0_134 = arith.constant 0 : index
    %305 = vector.load %arg8[%c0_133, %c0_134] : memref<1x512xf32, #tpu.memory_space<vmem>>, vector<1x512xf32>
    %306 = vector.broadcast %305 : vector<1x512xf32> to vector<64x512xf32>
    %307 = arith.addf %304, %306 : vector<64x512xf32>
    %c0_135 = arith.constant 0 : index
    %c0_136 = arith.constant 0 : index
    %308 = vector.load %arg15[%c0_135, %c0_136] : memref<64x512xf32, #tpu.memory_space<vmem>>, vector<64x512xf32>
    tpu.vector_store %arg15[%c0_135, %c0_136], %307 {strides = array<i32>} : memref<64x512xf32, #tpu.memory_space<vmem>>, vector<64x512xf32>,
    %c0_137 = arith.constant 0 : index
    %c0_138 = arith.constant 0 : index
    %309 = vector.load %arg7[%c0_137, %c0_138] : memref<128x512xf32, #tpu.memory_space<vmem>>, vector<128x512xf32>
    %c1 = arith.constant 1 : index
    %c0_139 = arith.constant 0 : index
    %c0_140 = arith.constant 0 : index
    %310 = vector.load %arg12[%c1, %c0_139, %c0_140] : memref<2x8x128xf32, #tpu.memory_space<vmem>>, vector<1x8x128xf32>
    %311 = vector.shape_cast %310 : vector<1x8x128xf32> to vector<8x128xf32>
    %c1_141 = arith.constant 1 : index
    %c0_142 = arith.constant 0 : index
    %c0_143 = arith.constant 0 : index
    %312 = vector.load %arg13[%c1_141, %c0_142, %c0_143] : memref<2x8x128xf32, #tpu.memory_space<vmem>>, vector<1x8x128xf32>
    %313 = vector.shape_cast %312 : vector<1x8x128xf32> to vector<8x128xf32>
    %c0_144 = arith.constant 0 : index
    %c0_145 = arith.constant 0 : index
    %314 = vector.load %arg15[%c0_144, %c0_145] : memref<64x512xf32, #tpu.memory_space<vmem>>, vector<8x512xf32>
    %cst_146 = arith.constant dense<0.000000e+00> : vector<8x512xf32>
    %315 = tpu.matmul %311, %309, %cst_146 {dimension_numbers = #tpu.dot_dimension_numbers<[1], [0], [0], [1], [0, 0, 1, 1], [], []>} : vector<8x128xf32>, vector<128x512xf32>, vector<8x512xf32> -> vector<8x512xf32>
    %316 = arith.addf %314, %315 : vector<8x512xf32>
    %317 = vector.extract_strided_slice %316 {offsets = [0, 0], sizes = [8, 128], strides = [1, 1]} : vector<8x512xf32> to vector<8x128xf32>
    %cst_147 = arith.constant 5.000000e-01 : f32
    %318 = vector.broadcast %cst_147 : f32 to vector<8x128xf32>
    %319 = arith.mulf %318, %317 : vector<8x128xf32>
    %320 = math.tanh %319 : vector<8x128xf32>
    %cst_148 = arith.constant 5.000000e-01 : f32
    %321 = vector.broadcast %cst_148 : f32 to vector<8x128xf32>
    %322 = arith.mulf %321, %320 : vector<8x128xf32>
    %cst_149 = arith.constant 5.000000e-01 : f32
    %323 = vector.broadcast %cst_149 : f32 to vector<8x128xf32>
    %324 = arith.addf %322, %323 : vector<8x128xf32>
    %325 = vector.extract_strided_slice %316 {offsets = [0, 128], sizes = [8, 128], strides = [1, 1]} : vector<8x512xf32> to vector<8x128xf32>
    %cst_150 = arith.constant 5.000000e-01 : f32
    %326 = vector.broadcast %cst_150 : f32 to vector<8x128xf32>
    %327 = arith.mulf %326, %325 : vector<8x128xf32>
    %328 = math.tanh %327 : vector<8x128xf32>
    %cst_151 = arith.constant 5.000000e-01 : f32
    %329 = vector.broadcast %cst_151 : f32 to vector<8x128xf32>
    %330 = arith.mulf %329, %328 : vector<8x128xf32>
    %cst_152 = arith.constant 5.000000e-01 : f32
    %331 = vector.broadcast %cst_152 : f32 to vector<8x128xf32>
    %332 = arith.addf %330, %331 : vector<8x128xf32>
    %333 = vector.extract_strided_slice %316 {offsets = [0, 256], sizes = [8, 128], strides = [1, 1]} : vector<8x512xf32> to vector<8x128xf32>
    %334 = math.tanh %333 : vector<8x128xf32>
    %335 = vector.extract_strided_slice %316 {offsets = [0, 384], sizes = [8, 128], strides = [1, 1]} : vector<8x512xf32> to vector<8x128xf32>
    %cst_153 = arith.constant 5.000000e-01 : f32
    %336 = vector.broadcast %cst_153 : f32 to vector<8x128xf32>
    %337 = arith.mulf %336, %335 : vector<8x128xf32>
    %338 = math.tanh %337 : vector<8x128xf32>
    %cst_154 = arith.constant 5.000000e-01 : f32
    %339 = vector.broadcast %cst_154 : f32 to vector<8x128xf32>
    %340 = arith.mulf %339, %338 : vector<8x128xf32>
    %cst_155 = arith.constant 5.000000e-01 : f32
    %341 = vector.broadcast %cst_155 : f32 to vector<8x128xf32>
    %342 = arith.addf %340, %341 : vector<8x128xf32>
    %343 = arith.mulf %332, %313 : vector<8x128xf32>
    %344 = arith.mulf %324, %334 : vector<8x128xf32>
    %345 = arith.addf %343, %344 : vector<8x128xf32>
    %346 = math.tanh %345 : vector<8x128xf32>
    %347 = arith.mulf %342, %346 : vector<8x128xf32>
    %c8_156 = arith.constant 8 : index
    %c0_157 = arith.constant 0 : index
    %348 = vector.load %arg15[%c8_156, %c0_157] : memref<64x512xf32, #tpu.memory_space<vmem>>, vector<8x512xf32>
    %cst_158 = arith.constant dense<0.000000e+00> : vector<8x512xf32>
    %349 = tpu.matmul %347, %309, %cst_158 {dimension_numbers = #tpu.dot_dimension_numbers<[1], [0], [0], [1], [0, 0, 1, 1], [], []>} : vector<8x128xf32>, vector<128x512xf32>, vector<8x512xf32> -> vector<8x512xf32>
    %350 = arith.addf %348, %349 : vector<8x512xf32>
    %351 = vector.extract_strided_slice %350 {offsets = [0, 0], sizes = [8, 128], strides = [1, 1]} : vector<8x512xf32> to vector<8x128xf32>
    %cst_159 = arith.constant 5.000000e-01 : f32
    %352 = vector.broadcast %cst_159 : f32 to vector<8x128xf32>
    %353 = arith.mulf %352, %351 : vector<8x128xf32>
    %354 = math.tanh %353 : vector<8x128xf32>
    %cst_160 = arith.constant 5.000000e-01 : f32
    %355 = vector.broadcast %cst_160 : f32 to vector<8x128xf32>
    %356 = arith.mulf %355, %354 : vector<8x128xf32>
    %cst_161 = arith.constant 5.000000e-01 : f32
    %357 = vector.broadcast %cst_161 : f32 to vector<8x128xf32>
    %358 = arith.addf %356, %357 : vector<8x128xf32>
    %359 = vector.extract_strided_slice %350 {offsets = [0, 128], sizes = [8, 128], strides = [1, 1]} : vector<8x512xf32> to vector<8x128xf32>
    %cst_162 = arith.constant 5.000000e-01 : f32
    %360 = vector.broadcast %cst_162 : f32 to vector<8x128xf32>
    %361 = arith.mulf %360, %359 : vector<8x128xf32>
    %362 = math.tanh %361 : vector<8x128xf32>
    %cst_163 = arith.constant 5.000000e-01 : f32
    %363 = vector.broadcast %cst_163 : f32 to vector<8x128xf32>
    %364 = arith.mulf %363, %362 : vector<8x128xf32>
    %cst_164 = arith.constant 5.000000e-01 : f32
    %365 = vector.broadcast %cst_164 : f32 to vector<8x128xf32>
    %366 = arith.addf %364, %365 : vector<8x128xf32>
    %367 = vector.extract_strided_slice %350 {offsets = [0, 256], sizes = [8, 128], strides = [1, 1]} : vector<8x512xf32> to vector<8x128xf32>
    %368 = math.tanh %367 : vector<8x128xf32>
    %369 = vector.extract_strided_slice %350 {offsets = [0, 384], sizes = [8, 128], strides = [1, 1]} : vector<8x512xf32> to vector<8x128xf32>
    %cst_165 = arith.constant 5.000000e-01 : f32
    %370 = vector.broadcast %cst_165 : f32 to vector<8x128xf32>
    %371 = arith.mulf %370, %369 : vector<8x128xf32>
    %372 = math.tanh %371 : vector<8x128xf32>
    %cst_166 = arith.constant 5.000000e-01 : f32
    %373 = vector.broadcast %cst_166 : f32 to vector<8x128xf32>
    %374 = arith.mulf %373, %372 : vector<8x128xf32>
    %cst_167 = arith.constant 5.000000e-01 : f32
    %375 = vector.broadcast %cst_167 : f32 to vector<8x128xf32>
    %376 = arith.addf %374, %375 : vector<8x128xf32>
    %377 = arith.mulf %366, %345 : vector<8x128xf32>
    %378 = arith.mulf %358, %368 : vector<8x128xf32>
    %379 = arith.addf %377, %378 : vector<8x128xf32>
    %380 = math.tanh %379 : vector<8x128xf32>
    %381 = arith.mulf %376, %380 : vector<8x128xf32>
    %c16_168 = arith.constant 16 : index
    %c0_169 = arith.constant 0 : index
    %382 = vector.load %arg15[%c16_168, %c0_169] : memref<64x512xf32, #tpu.memory_space<vmem>>, vector<8x512xf32>
    %cst_170 = arith.constant dense<0.000000e+00> : vector<8x512xf32>
    %383 = tpu.matmul %381, %309, %cst_170 {dimension_numbers = #tpu.dot_dimension_numbers<[1], [0], [0], [1], [0, 0, 1, 1], [], []>} : vector<8x128xf32>, vector<128x512xf32>, vector<8x512xf32> -> vector<8x512xf32>
    %384 = arith.addf %382, %383 : vector<8x512xf32>
    %385 = vector.extract_strided_slice %384 {offsets = [0, 0], sizes = [8, 128], strides = [1, 1]} : vector<8x512xf32> to vector<8x128xf32>
    %cst_171 = arith.constant 5.000000e-01 : f32
    %386 = vector.broadcast %cst_171 : f32 to vector<8x128xf32>
    %387 = arith.mulf %386, %385 : vector<8x128xf32>
    %388 = math.tanh %387 : vector<8x128xf32>
    %cst_172 = arith.constant 5.000000e-01 : f32
    %389 = vector.broadcast %cst_172 : f32 to vector<8x128xf32>
    %390 = arith.mulf %389, %388 : vector<8x128xf32>
    %cst_173 = arith.constant 5.000000e-01 : f32
    %391 = vector.broadcast %cst_173 : f32 to vector<8x128xf32>
    %392 = arith.addf %390, %391 : vector<8x128xf32>
    %393 = vector.extract_strided_slice %384 {offsets = [0, 128], sizes = [8, 128], strides = [1, 1]} : vector<8x512xf32> to vector<8x128xf32>
    %cst_174 = arith.constant 5.000000e-01 : f32
    %394 = vector.broadcast %cst_174 : f32 to vector<8x128xf32>
    %395 = arith.mulf %394, %393 : vector<8x128xf32>
    %396 = math.tanh %395 : vector<8x128xf32>
    %cst_175 = arith.constant 5.000000e-01 : f32
    %397 = vector.broadcast %cst_175 : f32 to vector<8x128xf32>
    %398 = arith.mulf %397, %396 : vector<8x128xf32>
    %cst_176 = arith.constant 5.000000e-01 : f32
    %399 = vector.broadcast %cst_176 : f32 to vector<8x128xf32>
    %400 = arith.addf %398, %399 : vector<8x128xf32>
    %401 = vector.extract_strided_slice %384 {offsets = [0, 256], sizes = [8, 128], strides = [1, 1]} : vector<8x512xf32> to vector<8x128xf32>
    %402 = math.tanh %401 : vector<8x128xf32>
    %403 = vector.extract_strided_slice %384 {offsets = [0, 384], sizes = [8, 128], strides = [1, 1]} : vector<8x512xf32> to vector<8x128xf32>
    %cst_177 = arith.constant 5.000000e-01 : f32
    %404 = vector.broadcast %cst_177 : f32 to vector<8x128xf32>
    %405 = arith.mulf %404, %403 : vector<8x128xf32>
    %406 = math.tanh %405 : vector<8x128xf32>
    %cst_178 = arith.constant 5.000000e-01 : f32
    %407 = vector.broadcast %cst_178 : f32 to vector<8x128xf32>
    %408 = arith.mulf %407, %406 : vector<8x128xf32>
    %cst_179 = arith.constant 5.000000e-01 : f32
    %409 = vector.broadcast %cst_179 : f32 to vector<8x128xf32>
    %410 = arith.addf %408, %409 : vector<8x128xf32>
    %411 = arith.mulf %400, %379 : vector<8x128xf32>
    %412 = arith.mulf %392, %402 : vector<8x128xf32>
    %413 = arith.addf %411, %412 : vector<8x128xf32>
    %414 = math.tanh %413 : vector<8x128xf32>
    %415 = arith.mulf %410, %414 : vector<8x128xf32>
    %c24_180 = arith.constant 24 : index
    %c0_181 = arith.constant 0 : index
    %416 = vector.load %arg15[%c24_180, %c0_181] : memref<64x512xf32, #tpu.memory_space<vmem>>, vector<8x512xf32>
    %cst_182 = arith.constant dense<0.000000e+00> : vector<8x512xf32>
    %417 = tpu.matmul %415, %309, %cst_182 {dimension_numbers = #tpu.dot_dimension_numbers<[1], [0], [0], [1], [0, 0, 1, 1], [], []>} : vector<8x128xf32>, vector<128x512xf32>, vector<8x512xf32> -> vector<8x512xf32>
    %418 = arith.addf %416, %417 : vector<8x512xf32>
    %419 = vector.extract_strided_slice %418 {offsets = [0, 0], sizes = [8, 128], strides = [1, 1]} : vector<8x512xf32> to vector<8x128xf32>
    %cst_183 = arith.constant 5.000000e-01 : f32
    %420 = vector.broadcast %cst_183 : f32 to vector<8x128xf32>
    %421 = arith.mulf %420, %419 : vector<8x128xf32>
    %422 = math.tanh %421 : vector<8x128xf32>
    %cst_184 = arith.constant 5.000000e-01 : f32
    %423 = vector.broadcast %cst_184 : f32 to vector<8x128xf32>
    %424 = arith.mulf %423, %422 : vector<8x128xf32>
    %cst_185 = arith.constant 5.000000e-01 : f32
    %425 = vector.broadcast %cst_185 : f32 to vector<8x128xf32>
    %426 = arith.addf %424, %425 : vector<8x128xf32>
    %427 = vector.extract_strided_slice %418 {offsets = [0, 128], sizes = [8, 128], strides = [1, 1]} : vector<8x512xf32> to vector<8x128xf32>
    %cst_186 = arith.constant 5.000000e-01 : f32
    %428 = vector.broadcast %cst_186 : f32 to vector<8x128xf32>
    %429 = arith.mulf %428, %427 : vector<8x128xf32>
    %430 = math.tanh %429 : vector<8x128xf32>
    %cst_187 = arith.constant 5.000000e-01 : f32
    %431 = vector.broadcast %cst_187 : f32 to vector<8x128xf32>
    %432 = arith.mulf %431, %430 : vector<8x128xf32>
    %cst_188 = arith.constant 5.000000e-01 : f32
    %433 = vector.broadcast %cst_188 : f32 to vector<8x128xf32>
    %434 = arith.addf %432, %433 : vector<8x128xf32>
    %435 = vector.extract_strided_slice %418 {offsets = [0, 256], sizes = [8, 128], strides = [1, 1]} : vector<8x512xf32> to vector<8x128xf32>
    %436 = math.tanh %435 : vector<8x128xf32>
    %437 = vector.extract_strided_slice %418 {offsets = [0, 384], sizes = [8, 128], strides = [1, 1]} : vector<8x512xf32> to vector<8x128xf32>
    %cst_189 = arith.constant 5.000000e-01 : f32
    %438 = vector.broadcast %cst_189 : f32 to vector<8x128xf32>
    %439 = arith.mulf %438, %437 : vector<8x128xf32>
    %440 = math.tanh %439 : vector<8x128xf32>
    %cst_190 = arith.constant 5.000000e-01 : f32
    %441 = vector.broadcast %cst_190 : f32 to vector<8x128xf32>
    %442 = arith.mulf %441, %440 : vector<8x128xf32>
    %cst_191 = arith.constant 5.000000e-01 : f32
    %443 = vector.broadcast %cst_191 : f32 to vector<8x128xf32>
    %444 = arith.addf %442, %443 : vector<8x128xf32>
    %445 = arith.mulf %434, %413 : vector<8x128xf32>
    %446 = arith.mulf %426, %436 : vector<8x128xf32>
    %447 = arith.addf %445, %446 : vector<8x128xf32>
    %448 = math.tanh %447 : vector<8x128xf32>
    %449 = arith.mulf %444, %448 : vector<8x128xf32>
    %c32_192 = arith.constant 32 : index
    %c0_193 = arith.constant 0 : index
    %450 = vector.load %arg15[%c32_192, %c0_193] : memref<64x512xf32, #tpu.memory_space<vmem>>, vector<8x512xf32>
    %cst_194 = arith.constant dense<0.000000e+00> : vector<8x512xf32>
    %451 = tpu.matmul %449, %309, %cst_194 {dimension_numbers = #tpu.dot_dimension_numbers<[1], [0], [0], [1], [0, 0, 1, 1], [], []>} : vector<8x128xf32>, vector<128x512xf32>, vector<8x512xf32> -> vector<8x512xf32>
    %452 = arith.addf %450, %451 : vector<8x512xf32>
    %453 = vector.extract_strided_slice %452 {offsets = [0, 0], sizes = [8, 128], strides = [1, 1]} : vector<8x512xf32> to vector<8x128xf32>
    %cst_195 = arith.constant 5.000000e-01 : f32
    %454 = vector.broadcast %cst_195 : f32 to vector<8x128xf32>
    %455 = arith.mulf %454, %453 : vector<8x128xf32>
    %456 = math.tanh %455 : vector<8x128xf32>
    %cst_196 = arith.constant 5.000000e-01 : f32
    %457 = vector.broadcast %cst_196 : f32 to vector<8x128xf32>
    %458 = arith.mulf %457, %456 : vector<8x128xf32>
    %cst_197 = arith.constant 5.000000e-01 : f32
    %459 = vector.broadcast %cst_197 : f32 to vector<8x128xf32>
    %460 = arith.addf %458, %459 : vector<8x128xf32>
    %461 = vector.extract_strided_slice %452 {offsets = [0, 128], sizes = [8, 128], strides = [1, 1]} : vector<8x512xf32> to vector<8x128xf32>
    %cst_198 = arith.constant 5.000000e-01 : f32
    %462 = vector.broadcast %cst_198 : f32 to vector<8x128xf32>
    %463 = arith.mulf %462, %461 : vector<8x128xf32>
    %464 = math.tanh %463 : vector<8x128xf32>
    %cst_199 = arith.constant 5.000000e-01 : f32
    %465 = vector.broadcast %cst_199 : f32 to vector<8x128xf32>
    %466 = arith.mulf %465, %464 : vector<8x128xf32>
    %cst_200 = arith.constant 5.000000e-01 : f32
    %467 = vector.broadcast %cst_200 : f32 to vector<8x128xf32>
    %468 = arith.addf %466, %467 : vector<8x128xf32>
    %469 = vector.extract_strided_slice %452 {offsets = [0, 256], sizes = [8, 128], strides = [1, 1]} : vector<8x512xf32> to vector<8x128xf32>
    %470 = math.tanh %469 : vector<8x128xf32>
    %471 = vector.extract_strided_slice %452 {offsets = [0, 384], sizes = [8, 128], strides = [1, 1]} : vector<8x512xf32> to vector<8x128xf32>
    %cst_201 = arith.constant 5.000000e-01 : f32
    %472 = vector.broadcast %cst_201 : f32 to vector<8x128xf32>
    %473 = arith.mulf %472, %471 : vector<8x128xf32>
    %474 = math.tanh %473 : vector<8x128xf32>
    %cst_202 = arith.constant 5.000000e-01 : f32
    %475 = vector.broadcast %cst_202 : f32 to vector<8x128xf32>
    %476 = arith.mulf %475, %474 : vector<8x128xf32>
    %cst_203 = arith.constant 5.000000e-01 : f32
    %477 = vector.broadcast %cst_203 : f32 to vector<8x128xf32>
    %478 = arith.addf %476, %477 : vector<8x128xf32>
    %479 = arith.mulf %468, %447 : vector<8x128xf32>
    %480 = arith.mulf %460, %470 : vector<8x128xf32>
    %481 = arith.addf %479, %480 : vector<8x128xf32>
    %482 = math.tanh %481 : vector<8x128xf32>
    %483 = arith.mulf %478, %482 : vector<8x128xf32>
    %c40_204 = arith.constant 40 : index
    %c0_205 = arith.constant 0 : index
    %484 = vector.load %arg15[%c40_204, %c0_205] : memref<64x512xf32, #tpu.memory_space<vmem>>, vector<8x512xf32>
    %cst_206 = arith.constant dense<0.000000e+00> : vector<8x512xf32>
    %485 = tpu.matmul %483, %309, %cst_206 {dimension_numbers = #tpu.dot_dimension_numbers<[1], [0], [0], [1], [0, 0, 1, 1], [], []>} : vector<8x128xf32>, vector<128x512xf32>, vector<8x512xf32> -> vector<8x512xf32>
    %486 = arith.addf %484, %485 : vector<8x512xf32>
    %487 = vector.extract_strided_slice %486 {offsets = [0, 0], sizes = [8, 128], strides = [1, 1]} : vector<8x512xf32> to vector<8x128xf32>
    %cst_207 = arith.constant 5.000000e-01 : f32
    %488 = vector.broadcast %cst_207 : f32 to vector<8x128xf32>
    %489 = arith.mulf %488, %487 : vector<8x128xf32>
    %490 = math.tanh %489 : vector<8x128xf32>
    %cst_208 = arith.constant 5.000000e-01 : f32
    %491 = vector.broadcast %cst_208 : f32 to vector<8x128xf32>
    %492 = arith.mulf %491, %490 : vector<8x128xf32>
    %cst_209 = arith.constant 5.000000e-01 : f32
    %493 = vector.broadcast %cst_209 : f32 to vector<8x128xf32>
    %494 = arith.addf %492, %493 : vector<8x128xf32>
    %495 = vector.extract_strided_slice %486 {offsets = [0, 128], sizes = [8, 128], strides = [1, 1]} : vector<8x512xf32> to vector<8x128xf32>
    %cst_210 = arith.constant 5.000000e-01 : f32
    %496 = vector.broadcast %cst_210 : f32 to vector<8x128xf32>
    %497 = arith.mulf %496, %495 : vector<8x128xf32>
    %498 = math.tanh %497 : vector<8x128xf32>
    %cst_211 = arith.constant 5.000000e-01 : f32
    %499 = vector.broadcast %cst_211 : f32 to vector<8x128xf32>
    %500 = arith.mulf %499, %498 : vector<8x128xf32>
    %cst_212 = arith.constant 5.000000e-01 : f32
    %501 = vector.broadcast %cst_212 : f32 to vector<8x128xf32>
    %502 = arith.addf %500, %501 : vector<8x128xf32>
    %503 = vector.extract_strided_slice %486 {offsets = [0, 256], sizes = [8, 128], strides = [1, 1]} : vector<8x512xf32> to vector<8x128xf32>
    %504 = math.tanh %503 : vector<8x128xf32>
    %505 = vector.extract_strided_slice %486 {offsets = [0, 384], sizes = [8, 128], strides = [1, 1]} : vector<8x512xf32> to vector<8x128xf32>
    %cst_213 = arith.constant 5.000000e-01 : f32
    %506 = vector.broadcast %cst_213 : f32 to vector<8x128xf32>
    %507 = arith.mulf %506, %505 : vector<8x128xf32>
    %508 = math.tanh %507 : vector<8x128xf32>
    %cst_214 = arith.constant 5.000000e-01 : f32
    %509 = vector.broadcast %cst_214 : f32 to vector<8x128xf32>
    %510 = arith.mulf %509, %508 : vector<8x128xf32>
    %cst_215 = arith.constant 5.000000e-01 : f32
    %511 = vector.broadcast %cst_215 : f32 to vector<8x128xf32>
    %512 = arith.addf %510, %511 : vector<8x128xf32>
    %513 = arith.mulf %502, %481 : vector<8x128xf32>
    %514 = arith.mulf %494, %504 : vector<8x128xf32>
    %515 = arith.addf %513, %514 : vector<8x128xf32>
    %516 = math.tanh %515 : vector<8x128xf32>
    %517 = arith.mulf %512, %516 : vector<8x128xf32>
    %c48_216 = arith.constant 48 : index
    %c0_217 = arith.constant 0 : index
    %518 = vector.load %arg15[%c48_216, %c0_217] : memref<64x512xf32, #tpu.memory_space<vmem>>, vector<8x512xf32>
    %cst_218 = arith.constant dense<0.000000e+00> : vector<8x512xf32>
    %519 = tpu.matmul %517, %309, %cst_218 {dimension_numbers = #tpu.dot_dimension_numbers<[1], [0], [0], [1], [0, 0, 1, 1], [], []>} : vector<8x128xf32>, vector<128x512xf32>, vector<8x512xf32> -> vector<8x512xf32>
    %520 = arith.addf %518, %519 : vector<8x512xf32>
    %521 = vector.extract_strided_slice %520 {offsets = [0, 0], sizes = [8, 128], strides = [1, 1]} : vector<8x512xf32> to vector<8x128xf32>
    %cst_219 = arith.constant 5.000000e-01 : f32
    %522 = vector.broadcast %cst_219 : f32 to vector<8x128xf32>
    %523 = arith.mulf %522, %521 : vector<8x128xf32>
    %524 = math.tanh %523 : vector<8x128xf32>
    %cst_220 = arith.constant 5.000000e-01 : f32
    %525 = vector.broadcast %cst_220 : f32 to vector<8x128xf32>
    %526 = arith.mulf %525, %524 : vector<8x128xf32>
    %cst_221 = arith.constant 5.000000e-01 : f32
    %527 = vector.broadcast %cst_221 : f32 to vector<8x128xf32>
    %528 = arith.addf %526, %527 : vector<8x128xf32>
    %529 = vector.extract_strided_slice %520 {offsets = [0, 128], sizes = [8, 128], strides = [1, 1]} : vector<8x512xf32> to vector<8x128xf32>
    %cst_222 = arith.constant 5.000000e-01 : f32
    %530 = vector.broadcast %cst_222 : f32 to vector<8x128xf32>
    %531 = arith.mulf %530, %529 : vector<8x128xf32>
    %532 = math.tanh %531 : vector<8x128xf32>
    %cst_223 = arith.constant 5.000000e-01 : f32
    %533 = vector.broadcast %cst_223 : f32 to vector<8x128xf32>
    %534 = arith.mulf %533, %532 : vector<8x128xf32>
    %cst_224 = arith.constant 5.000000e-01 : f32
    %535 = vector.broadcast %cst_224 : f32 to vector<8x128xf32>
    %536 = arith.addf %534, %535 : vector<8x128xf32>
    %537 = vector.extract_strided_slice %520 {offsets = [0, 256], sizes = [8, 128], strides = [1, 1]} : vector<8x512xf32> to vector<8x128xf32>
    %538 = math.tanh %537 : vector<8x128xf32>
    %539 = vector.extract_strided_slice %520 {offsets = [0, 384], sizes = [8, 128], strides = [1, 1]} : vector<8x512xf32> to vector<8x128xf32>
    %cst_225 = arith.constant 5.000000e-01 : f32
    %540 = vector.broadcast %cst_225 : f32 to vector<8x128xf32>
    %541 = arith.mulf %540, %539 : vector<8x128xf32>
    %542 = math.tanh %541 : vector<8x128xf32>
    %cst_226 = arith.constant 5.000000e-01 : f32
    %543 = vector.broadcast %cst_226 : f32 to vector<8x128xf32>
    %544 = arith.mulf %543, %542 : vector<8x128xf32>
    %cst_227 = arith.constant 5.000000e-01 : f32
    %545 = vector.broadcast %cst_227 : f32 to vector<8x128xf32>
    %546 = arith.addf %544, %545 : vector<8x128xf32>
    %547 = arith.mulf %536, %515 : vector<8x128xf32>
    %548 = arith.mulf %528, %538 : vector<8x128xf32>
    %549 = arith.addf %547, %548 : vector<8x128xf32>
    %550 = math.tanh %549 : vector<8x128xf32>
    %551 = arith.mulf %546, %550 : vector<8x128xf32>
    %c56_228 = arith.constant 56 : index
    %c0_229 = arith.constant 0 : index
    %552 = vector.load %arg15[%c56_228, %c0_229] : memref<64x512xf32, #tpu.memory_space<vmem>>, vector<8x512xf32>
    %cst_230 = arith.constant dense<0.000000e+00> : vector<8x512xf32>
    %553 = tpu.matmul %551, %309, %cst_230 {dimension_numbers = #tpu.dot_dimension_numbers<[1], [0], [0], [1], [0, 0, 1, 1], [], []>} : vector<8x128xf32>, vector<128x512xf32>, vector<8x512xf32> -> vector<8x512xf32>
    %554 = arith.addf %552, %553 : vector<8x512xf32>
    %555 = vector.extract_strided_slice %554 {offsets = [0, 0], sizes = [8, 128], strides = [1, 1]} : vector<8x512xf32> to vector<8x128xf32>
    %cst_231 = arith.constant 5.000000e-01 : f32
    %556 = vector.broadcast %cst_231 : f32 to vector<8x128xf32>
    %557 = arith.mulf %556, %555 : vector<8x128xf32>
    %558 = math.tanh %557 : vector<8x128xf32>
    %cst_232 = arith.constant 5.000000e-01 : f32
    %559 = vector.broadcast %cst_232 : f32 to vector<8x128xf32>
    %560 = arith.mulf %559, %558 : vector<8x128xf32>
    %cst_233 = arith.constant 5.000000e-01 : f32
    %561 = vector.broadcast %cst_233 : f32 to vector<8x128xf32>
    %562 = arith.addf %560, %561 : vector<8x128xf32>
    %563 = vector.extract_strided_slice %554 {offsets = [0, 128], sizes = [8, 128], strides = [1, 1]} : vector<8x512xf32> to vector<8x128xf32>
    %cst_234 = arith.constant 5.000000e-01 : f32
    %564 = vector.broadcast %cst_234 : f32 to vector<8x128xf32>
    %565 = arith.mulf %564, %563 : vector<8x128xf32>
    %566 = math.tanh %565 : vector<8x128xf32>
    %cst_235 = arith.constant 5.000000e-01 : f32
    %567 = vector.broadcast %cst_235 : f32 to vector<8x128xf32>
    %568 = arith.mulf %567, %566 : vector<8x128xf32>
    %cst_236 = arith.constant 5.000000e-01 : f32
    %569 = vector.broadcast %cst_236 : f32 to vector<8x128xf32>
    %570 = arith.addf %568, %569 : vector<8x128xf32>
    %571 = vector.extract_strided_slice %554 {offsets = [0, 256], sizes = [8, 128], strides = [1, 1]} : vector<8x512xf32> to vector<8x128xf32>
    %572 = math.tanh %571 : vector<8x128xf32>
    %573 = vector.extract_strided_slice %554 {offsets = [0, 384], sizes = [8, 128], strides = [1, 1]} : vector<8x512xf32> to vector<8x128xf32>
    %cst_237 = arith.constant 5.000000e-01 : f32
    %574 = vector.broadcast %cst_237 : f32 to vector<8x128xf32>
    %575 = arith.mulf %574, %573 : vector<8x128xf32>
    %576 = math.tanh %575 : vector<8x128xf32>
    %cst_238 = arith.constant 5.000000e-01 : f32
    %577 = vector.broadcast %cst_238 : f32 to vector<8x128xf32>
    %578 = arith.mulf %577, %576 : vector<8x128xf32>
    %cst_239 = arith.constant 5.000000e-01 : f32
    %579 = vector.broadcast %cst_239 : f32 to vector<8x128xf32>
    %580 = arith.addf %578, %579 : vector<8x128xf32>
    %581 = arith.mulf %570, %549 : vector<8x128xf32>
    %582 = arith.mulf %562, %572 : vector<8x128xf32>
    %583 = arith.addf %581, %582 : vector<8x128xf32>
    %584 = math.tanh %583 : vector<8x128xf32>
    %585 = arith.mulf %580, %584 : vector<8x128xf32>
    %c1_240 = arith.constant 1 : index
    %c0_241 = arith.constant 0 : index
    %c0_242 = arith.constant 0 : index
    %586 = vector.load %arg12[%c1_240, %c0_241, %c0_242] : memref<2x8x128xf32, #tpu.memory_space<vmem>>, vector<1x8x128xf32>
    %587 = vector.shape_cast %586 : vector<1x8x128xf32> to vector<8x128xf32>
    %588 = vector.shape_cast %585 : vector<8x128xf32> to vector<1x8x128xf32>
    tpu.vector_store %arg12[%c1_240, %c0_241, %c0_242], %588 {strides = array<i32>} : memref<2x8x128xf32, #tpu.memory_space<vmem>>, vector<1x8x128xf32>,
    %c1_243 = arith.constant 1 : index
    %c0_244 = arith.constant 0 : index
    %c0_245 = arith.constant 0 : index
    %589 = vector.load %arg13[%c1_243, %c0_244, %c0_245] : memref<2x8x128xf32, #tpu.memory_space<vmem>>, vector<1x8x128xf32>
    %590 = vector.shape_cast %589 : vector<1x8x128xf32> to vector<8x128xf32>
    %591 = vector.shape_cast %583 : vector<8x128xf32> to vector<1x8x128xf32>
    tpu.vector_store %arg13[%c1_243, %c0_244, %c0_245], %591 {strides = array<i32>} : memref<2x8x128xf32, #tpu.memory_space<vmem>>, vector<1x8x128xf32>,
    %c0_i32_246 = arith.constant 0 : i32
    %592 = arith.cmpi eq, %arg1, %c0_i32_246 : i32
    %593 = arith.extui %592 : i1 to i32
    %c0_i32_247 = arith.constant 0 : i32
    %594 = arith.cmpi ne, %593, %c0_i32_247 : i32
    scf.if %594 {
      %c1_248 = arith.constant 1 : index
      %c0_249 = arith.constant 0 : index
      %c0_250 = arith.constant 0 : index
      %595 = vector.load %arg12[%c1_248, %c0_249, %c0_250] : memref<2x8x128xf32, #tpu.memory_space<vmem>>, vector<1x8x128xf32>
      %596 = vector.shape_cast %595 : vector<1x8x128xf32> to vector<8x128xf32>
      %c0_251 = arith.constant 0 : index
      %c0_252 = arith.constant 0 : index
      %597 = vector.load %arg9[%c0_251, %c0_252] : memref<128x128xf32, #tpu.memory_space<vmem>>, vector<128x128xf32>
      %cst_253 = arith.constant dense<0.000000e+00> : vector<8x128xf32>
      %598 = tpu.matmul %596, %597, %cst_253 {dimension_numbers = #tpu.dot_dimension_numbers<[1], [0], [0], [1], [0, 0, 1, 1], [], []>} : vector<8x128xf32>, vector<128x128xf32>, vector<8x128xf32> -> vector<8x128xf32>
      %c0_254 = arith.constant 0 : index
      %c0_255 = arith.constant 0 : index
      %599 = vector.load %arg10[%c0_254, %c0_255] : memref<1x128xf32, #tpu.memory_space<vmem>>, vector<1x128xf32>
      %600 = vector.broadcast %599 : vector<1x128xf32> to vector<8x128xf32>
      %601 = arith.addf %598, %600 : vector<8x128xf32>
      %c0_256 = arith.constant 0 : index
      %c0_257 = arith.constant 0 : index
      %602 = vector.load %arg11[%c0_256, %c0_257] : memref<8x128xf32, #tpu.memory_space<vmem>>, vector<8x128xf32>
      tpu.vector_store %arg11[%c0_256, %c0_257], %601 {strides = array<i32>} : memref<8x128xf32, #tpu.memory_space<vmem>>, vector<8x128xf32>,
    } else {
    }
    return
  }
  func.func @transform_0(%arg0: i32, %arg1: i32) -> (i32, i32, i32) {
    %c0_i32 = arith.constant 0 : i32
    %c0_i32_0 = arith.constant 0 : i32
    return %arg1, %arg0, %c0_i32 : i32, i32, i32
  }
  func.func @transform_1(%arg0: i32, %arg1: i32) -> (i32, i32) {
    %c0_i32 = arith.constant 0 : i32
    %c0_i32_0 = arith.constant 0 : i32
    %c0_i32_1 = arith.constant 0 : i32
    return %c0_i32, %c0_i32_0 : i32, i32
  }
  func.func @transform_2(%arg0: i32, %arg1: i32) -> (i32, i32) {
    %c0_i32 = arith.constant 0 : i32
    %c0_i32_0 = arith.constant 0 : i32
    %c0_i32_1 = arith.constant 0 : i32
    return %c0_i32, %c0_i32_0 : i32, i32
  }
  func.func @transform_3(%arg0: i32, %arg1: i32) -> (i32, i32) {
    %c0_i32 = arith.constant 0 : i32
    %c0_i32_0 = arith.constant 0 : i32
    %c0_i32_1 = arith.constant 0 : i32
    return %c0_i32, %c0_i32_0 : i32, i32
  }
  func.func @transform_4(%arg0: i32, %arg1: i32) -> (i32, i32) {
    %c0_i32 = arith.constant 0 : i32
    %c0_i32_0 = arith.constant 0 : i32
    %c0_i32_1 = arith.constant 0 : i32
    return %c0_i32, %c0_i32_0 : i32, i32
  }
  func.func @transform_5(%arg0: i32, %arg1: i32) -> (i32, i32) {
    %c0_i32 = arith.constant 0 : i32
    %c0_i32_0 = arith.constant 0 : i32
    %c0_i32_1 = arith.constant 0 : i32
    return %c0_i32, %c0_i32_0 : i32, i32
  }
  func.func @transform_6(%arg0: i32, %arg1: i32) -> (i32, i32) {
    %c0_i32 = arith.constant 0 : i32
    %c0_i32_0 = arith.constant 0 : i32
    %c0_i32_1 = arith.constant 0 : i32
    return %c0_i32, %c0_i32_0 : i32, i32
  }
  func.func @transform_7(%arg0: i32, %arg1: i32) -> (i32, i32) {
    %c0_i32 = arith.constant 0 : i32
    %c0_i32_0 = arith.constant 0 : i32
    %c0_i32_1 = arith.constant 0 : i32
    return %c0_i32, %c0_i32_0 : i32, i32
  }
  func.func @transform_8(%arg0: i32, %arg1: i32) -> (i32, i32) {
    %c0_i32 = arith.constant 0 : i32
    %c0_i32_0 = arith.constant 0 : i32
    %c0_i32_1 = arith.constant 0 : i32
    return %c0_i32, %c0_i32_0 : i32, i32
  }
  func.func @transform_9(%arg0: i32, %arg1: i32) -> (i32, i32) {
    %c0_i32 = arith.constant 0 : i32
    %c0_i32_0 = arith.constant 0 : i32
    return %arg0, %c0_i32 : i32, i32
  }
}

</mosaic_0001>

<llo_original>
// kernel: trans_lstm_forward.1
$region0: #{trans_lstm_forward.1}
  #allocation0 [shape = 'u32[]', space=smem, size = 0x4, offset = 0x4, fixed_abs, tag = 'smem constant byte address 0x4 - core index']
  #allocation1 [shape = 'u32[144,128]{1,0:T(1,128)}', space=vmem, size = 0x12000, scoped, tag = 'internal scratch']
  #allocation2 [shape = 'f32[2,8,128]{2,1,0:T(8,128)}', space=vmem, size = 0x2000, scoped, tag = 'scratch operand']
  #allocation3 [shape = 'f32[2,8,128]{2,1,0:T(8,128)}', space=vmem, size = 0x2000, scoped, tag = 'scratch operand']
  #allocation4 [shape = 'f32[64,128]{1,0:T(8,128)}', space=vmem, size = 0x8000, scoped, tag = 'scratch operand']
  #allocation5 [shape = 'f32[64,512]{1,0:T(8,128)}', space=vmem, size = 0x20000, scoped, tag = 'scratch operand']
  %s0 = inlined_call_operand.vmem [shape: f32[8,8,128], index: 0, kind: input, shape index: {}]
  %s1 = inlined_call_operand.hbm [shape: f32[128,512], index: 1, kind: input, shape index: {}]
  %s2 = inlined_call_operand.hbm [shape: f32[128,512], index: 2, kind: input, shape index: {}]
  %s3 = inlined_call_operand.hbm [shape: f32[1,512], index: 3, kind: input, shape index: {}]
  %s4 = inlined_call_operand.hbm [shape: f32[128,512], index: 4, kind: input, shape index: {}]
  %s5 = inlined_call_operand.hbm [shape: f32[128,512], index: 5, kind: input, shape index: {}]
  %s6 = inlined_call_operand.hbm [shape: f32[1,512], index: 6, kind: input, shape index: {}]
  %s7 = inlined_call_operand.vmem [shape: f32[128,128], index: 7, kind: input, shape index: {}]
  %s8 = inlined_call_operand.vmem [shape: f32[1,128], index: 8, kind: input, shape index: {}]
  %s9 = inlined_call_operand.vmem [shape: f32[8,128], index: 9, kind: output, shape index: {}]
  %s10 = sld [smem:[#allocation0]]
  $region78: #{trans_lstm_forward.1} parent=0
    _
  %s12 = ssub.s32 1, %s10
  %s13 = scalar_select 0, %s12, %s10
  $region1: #{trans_lstm_forward.1} parent=0
    #allocation6 [shape = 'u8[262144]{0}', space=vmem, size = 0x40000, scoped, tag = 'input window, operand 1, single buffered']
    #allocation7 [shape = 's32[1]{0}', space=sflag, size = 0x4, scoped, tag = 'scoped memory for trans_lstm_forward.1']
    #allocation8 [shape = 'u8[262144]{0}', space=vmem, size = 0x40000, scoped, tag = 'input window, operand 2, single buffered']
    #allocation9 [shape = 's32[1]{0}', space=sflag, size = 0x4, scoped, tag = 'scoped memory for trans_lstm_forward.1']
    #allocation10 [shape = 'u8[2048]{0}', space=vmem, size = 0x800, scoped, tag = 'input window, operand 3, single buffered']
    #allocation11 [shape = 'u8[262144]{0}', space=vmem, size = 0x40000, scoped, tag = 'input window, operand 4, single buffered']
    #allocation12 [shape = 's32[1]{0}', space=sflag, size = 0x4, scoped, tag = 'scoped memory for trans_lstm_forward.1']
    #allocation13 [shape = 'u8[262144]{0}', space=vmem, size = 0x40000, scoped, tag = 'input window, operand 5, single buffered']
    #allocation14 [shape = 'u8[2048]{0}', space=vmem, size = 0x800, scoped, tag = 'input window, operand 6, single buffered']
    #allocation15 [shape = 's32[1]{0}', space=sflag, size = 0x4, scoped, tag = 'scoped memory for trans_lstm_forward.1']
    %14 = vsyncpa [#allocation7], 0
    %15 = vsyncpa [#allocation9], 0
    %16 = vsyncpa [#allocation12], 0
    %17 = vsyncpa [#allocation15], 0
    // Predicated region
    $region2: #{trans_lstm_forward.1} parent=1 // pred_check
      _
    $region3: #{trans_lstm_forward.1} parent=1 // pred_check_branch
      %19 = sbr.rel (0) target = $region5
    $region4: #{trans_lstm_forward.1} parent=1 // pred_region
      _
    $region5: #{trans_lstm_forward.1} parent=1 // pred_fallthru
      _
    // Predicated region
    $region6: #{trans_lstm_forward.1} parent=1 // pred_check
      _
    $region7: #{trans_lstm_forward.1} parent=1 // pred_check_branch
      %21 = sbr.rel (0) target = $region9
    $region8: #{trans_lstm_forward.1} parent=1 // pred_region
      %s23 = ssub.s32 8192, 8192
      %24 = vsyncadd [#allocation7], %s23
      %s25 = sshll.u32 [#allocation6], 4
      %s26 = int_to_ptr.vmem [resolvable:$true] %s25
      %31 = dma.hbm_to_vmem [thread:$0]  %s1, 8192, %s26, [#allocation7], 512, 512, 32
    $region9: #{trans_lstm_forward.1} parent=1 // pred_fallthru
      _
    // Predicated region
    $region10: #{trans_lstm_forward.1} parent=1 // pred_check
      _
    $region11: #{trans_lstm_forward.1} parent=1 // pred_check_branch
      %33 = sbr.rel (0) target = $region13
    $region12: #{trans_lstm_forward.1} parent=1 // pred_region
      %s35 = ssub.s32 8192, 8192
      %36 = vsyncadd [#allocation9], %s35
      %s37 = sshll.u32 [#allocation8], 4
      %s38 = int_to_ptr.vmem [resolvable:$true] %s37
      %43 = dma.hbm_to_vmem [thread:$0]  %s2, 8192, %s38, [#allocation9], 512, 512, 32
    $region13: #{trans_lstm_forward.1} parent=1 // pred_fallthru
      _
    // Predicated region
    $region14: #{trans_lstm_forward.1} parent=1 // pred_check
      _
    $region15: #{trans_lstm_forward.1} parent=1 // pred_check_branch
      %45 = sbr.rel (0) target = $region17
    $region16: #{trans_lstm_forward.1} parent=1 // pred_region
      %s47 = ssub.s32 64, 64
      %48 = vsyncadd [#allocation9], %s47
      %s50 = sshll.u32 [#allocation10], 4
      %s51 = int_to_ptr.vmem [resolvable:$true] %s50
      %53 = dma.hbm_to_vmem [thread:$0]  %s3, 64, %s51, [#allocation9]
    $region17: #{trans_lstm_forward.1} parent=1 // pred_fallthru
      _
    // Predicated region
    $region18: #{trans_lstm_forward.1} parent=1 // pred_check
      _
    $region19: #{trans_lstm_forward.1} parent=1 // pred_check_branch
      %55 = sbr.rel (0) target = $region21
    $region20: #{trans_lstm_forward.1} parent=1 // pred_region
      %s57 = ssub.s32 8192, 8192
      %58 = vsyncadd [#allocation12], %s57
      %s59 = sshll.u32 [#allocation11], 4
      %s60 = int_to_ptr.vmem [resolvable:$true] %s59
      %65 = dma.hbm_to_vmem [thread:$0]  %s4, 8192, %s60, [#allocation12], 512, 512, 32
    $region21: #{trans_lstm_forward.1} parent=1 // pred_fallthru
      _
    // Predicated region
    $region22: #{trans_lstm_forward.1} parent=1 // pred_check
      _
    $region23: #{trans_lstm_forward.1} parent=1 // pred_check_branch
      %67 = sbr.rel (0) target = $region25
    $region24: #{trans_lstm_forward.1} parent=1 // pred_region
      %s69 = ssub.s32 8192, 8192
      %70 = vsyncadd [#allocation12], %s69
      %s71 = sshll.u32 [#allocation13], 4
      %s72 = int_to_ptr.vmem [resolvable:$true] %s71
      %77 = dma.hbm_to_vmem [thread:$0]  %s5, 8192, %s72, [#allocation12], 512, 512, 32
    $region25: #{trans_lstm_forward.1} parent=1 // pred_fallthru
      _
    // Predicated region
    $region26: #{trans_lstm_forward.1} parent=1 // pred_check
      _
    $region27: #{trans_lstm_forward.1} parent=1 // pred_check_branch
      %79 = sbr.rel (0) target = $region29
    $region28: #{trans_lstm_forward.1} parent=1 // pred_region
      %s81 = ssub.s32 64, 64
      %82 = vsyncadd [#allocation15], %s81
      %s84 = sshll.u32 [#allocation14], 4
      %s85 = int_to_ptr.vmem [resolvable:$true] %s84
      %87 = dma.hbm_to_vmem [thread:$0]  %s6, 64, %s85, [#allocation15]
    $region29: #{trans_lstm_forward.1} parent=1 // pred_fallthru
      _
    // Predicated region
    $region30: #{trans_lstm_forward.1} parent=1 // pred_check
      _
    $region31: #{trans_lstm_forward.1} parent=1 // pred_check_branch
      %89 = sbr.rel (0) target = $region33
    $region32: #{trans_lstm_forward.1} parent=1 // pred_region
      _
    $region33: #{trans_lstm_forward.1} parent=1 // pred_fallthru
      _
    // Predicated region
    $region34: #{trans_lstm_forward.1} parent=1 // pred_check
      _
    $region35: #{trans_lstm_forward.1} parent=1 // pred_check_branch
      %91 = sbr.rel (0) target = $region37
    $region36: #{trans_lstm_forward.1} parent=1 // pred_region
      _
    $region37: #{trans_lstm_forward.1} parent=1 // pred_fallthru
      _
    // Predicated region
    $region38: #{trans_lstm_forward.1} parent=1 // pred_check
      _
    $region39: #{trans_lstm_forward.1} parent=1 // pred_check_branch
      %93 = sbr.rel (0) target = $region41
    $region40: #{trans_lstm_forward.1} parent=1 // pred_region
      %94 = dma.done [#allocation7], 8192
    $region41: #{trans_lstm_forward.1} parent=1 // pred_fallthru
      _
    // Predicated region
    $region42: #{trans_lstm_forward.1} parent=1 // pred_check
      _
    $region43: #{trans_lstm_forward.1} parent=1 // pred_check_branch
      %96 = sbr.rel (0) target = $region45
    $region44: #{trans_lstm_forward.1} parent=1 // pred_region
      %97 = dma.done [#allocation9], 8192
    $region45: #{trans_lstm_forward.1} parent=1 // pred_fallthru
      _
    // Predicated region
    $region46: #{trans_lstm_forward.1} parent=1 // pred_check
      _
    $region47: #{trans_lstm_forward.1} parent=1 // pred_check_branch
      %99 = sbr.rel (0) target = $region49
    $region48: #{trans_lstm_forward.1} parent=1 // pred_region
      %100 = dma.done [#allocation9], 64
    $region49: #{trans_lstm_forward.1} parent=1 // pred_fallthru
      _
    // Predicated region
    $region50: #{trans_lstm_forward.1} parent=1 // pred_check
      _
    $region51: #{trans_lstm_forward.1} parent=1 // pred_check_branch
      %102 = sbr.rel (0) target = $region53
    $region52: #{trans_lstm_forward.1} parent=1 // pred_region
      %103 = dma.done [#allocation12], 8192
    $region53: #{trans_lstm_forward.1} parent=1 // pred_fallthru
      _
    // Predicated region
    $region54: #{trans_lstm_forward.1} parent=1 // pred_check
      _
    $region55: #{trans_lstm_forward.1} parent=1 // pred_check_branch
      %105 = sbr.rel (0) target = $region57
    $region56: #{trans_lstm_forward.1} parent=1 // pred_region
      %106 = dma.done [#allocation12], 8192
    $region57: #{trans_lstm_forward.1} parent=1 // pred_fallthru
      _
    // Predicated region
    $region58: #{trans_lstm_forward.1} parent=1 // pred_check
      _
    $region59: #{trans_lstm_forward.1} parent=1 // pred_check_branch
      %108 = sbr.rel (0) target = $region61
    $region60: #{trans_lstm_forward.1} parent=1 // pred_region
      %109 = dma.done [#allocation15], 64
    $region61: #{trans_lstm_forward.1} parent=1 // pred_fallthru
      _
    %p110 = scmp.eq.s32.totalorder 0, 0
    // Predicated region
    $region62: #{trans_lstm_forward.1} parent=1 // pred_check
      %p111 = pneg %p110
    $region63: #{trans_lstm_forward.1} parent=1 // pred_check_branch
      %113 = sbr.rel (%p111) target = $region65
    $region64: #{trans_lstm_forward.1} parent=1 // pred_region
      %114 = vst [vmem:[#allocation2] sm:$0xff] 0.0
      %115 = vst [vmem:[#allocation2 + $0x8] sm:$0xff] 0.0
      %116 = vst [vmem:[#allocation3] sm:$0xff] 0.0
      %117 = vst [vmem:[#allocation3 + $0x8] sm:$0xff] 0.0
    $region65: #{trans_lstm_forward.1} parent=1 // pred_fallthru
      _
    %v118 = vld [vmem:[%s0] sm:$0xff]
    %v119 = vld [vmem:[%s0 + $0x8] sm:$0xff]
    %v120 = vld [vmem:[%s0 + $0x10] sm:$0xff]
    %v121 = vld [vmem:[%s0 + $0x18] sm:$0xff]
    %v122 = vld [vmem:[%s0 + $0x20] sm:$0xff]
    %v123 = vld [vmem:[%s0 + $0x28] sm:$0xff]
    %v124 = vld [vmem:[%s0 + $0x30] sm:$0xff]
    %v125 = vld [vmem:[%s0 + $0x38] sm:$0xff]
    %v126 = vld [vmem:[#allocation6] sm:$0xff]
    %v127 = vld [vmem:[#allocation6 + $0x8] sm:$0xff]
    %v128 = vld [vmem:[#allocation6 + $0x10] sm:$0xff]
    %v129 = vld [vmem:[#allocation6 + $0x18] sm:$0xff]
    %v130 = vld [vmem:[#allocation6 + $0x20] sm:$0xff]
    %v131 = vld [vmem:[#allocation6 + $0x28] sm:$0xff]
    %v132 = vld [vmem:[#allocation6 + $0x30] sm:$0xff]
    %v133 = vld [vmem:[#allocation6 + $0x38] sm:$0xff]
    %v134 = vld [vmem:[#allocation6 + $0x40] sm:$0xff]
    %v135 = vld [vmem:[#allocation6 + $0x48] sm:$0xff]
    %v136 = vld [vmem:[#allocation6 + $0x50] sm:$0xff]
    %v137 = vld [vmem:[#allocation6 + $0x58] sm:$0xff]
    %v138 = vld [vmem:[#allocation6 + $0x60] sm:$0xff]
    %v139 = vld [vmem:[#allocation6 + $0x68] sm:$0xff]
    %v140 = vld [vmem:[#allocation6 + $0x70] sm:$0xff]
    %v141 = vld [vmem:[#allocation6 + $0x78] sm:$0xff]
    %v142 = vld [vmem:[#allocation6 + $0x80] sm:$0xff]
    %v143 = vld [vmem:[#allocation6 + $0x88] sm:$0xff]
    %v144 = vld [vmem:[#allocation6 + $0x90] sm:$0xff]
    %v145 = vld [vmem:[#allocation6 + $0x98] sm:$0xff]
    %v146 = vld [vmem:[#allocation6 + $0xa0] sm:$0xff]
    %v147 = vld [vmem:[#allocation6 + $0xa8] sm:$0xff]
    %v148 = vld [vmem:[#allocation6 + $0xb0] sm:$0xff]
    %v149 = vld [vmem:[#allocation6 + $0xb8] sm:$0xff]
    %v150 = vld [vmem:[#allocation6 + $0xc0] sm:$0xff]
    %v151 = vld [vmem:[#allocation6 + $0xc8] sm:$0xff]
    %v152 = vld [vmem:[#allocation6 + $0xd0] sm:$0xff]
    %v153 = vld [vmem:[#allocation6 + $0xd8] sm:$0xff]
    %v154 = vld [vmem:[#allocation6 + $0xe0] sm:$0xff]
    %v155 = vld [vmem:[#allocation6 + $0xe8] sm:$0xff]
    %v156 = vld [vmem:[#allocation6 + $0xf0] sm:$0xff]
    %v157 = vld [vmem:[#allocation6 + $0xf8] sm:$0xff]
    %v158 = vld [vmem:[#allocation6 + $0x100] sm:$0xff]
    %v159 = vld [vmem:[#allocation6 + $0x108] sm:$0xff]
    %v160 = vld [vmem:[#allocation6 + $0x110] sm:$0xff]
    %v161 = vld [vmem:[#allocation6 + $0x118] sm:$0xff]
    %v162 = vld [vmem:[#allocation6 + $0x120] sm:$0xff]
    %v163 = vld [vmem:[#allocation6 + $0x128] sm:$0xff]
    %v164 = vld [vmem:[#allocation6 + $0x130] sm:$0xff]
    %v165 = vld [vmem:[#allocation6 + $0x138] sm:$0xff]
    %v166 = vld [vmem:[#allocation6 + $0x140] sm:$0xff]
    %v167 = vld [vmem:[#allocation6 + $0x148] sm:$0xff]
    %v168 = vld [vmem:[#allocation6 + $0x150] sm:$0xff]
    %v169 = vld [vmem:[#allocation6 + $0x158] sm:$0xff]
    %v170 = vld [vmem:[#allocation6 + $0x160] sm:$0xff]
    %v171 = vld [vmem:[#allocation6 + $0x168] sm:$0xff]
    %v172 = vld [vmem:[#allocation6 + $0x170] sm:$0xff]
    %v173 = vld [vmem:[#allocation6 + $0x178] sm:$0xff]
    %v174 = vld [vmem:[#allocation6 + $0x180] sm:$0xff]
    %v175 = vld [vmem:[#allocation6 + $0x188] sm:$0xff]
    %v176 = vld [vmem:[#allocation6 + $0x190] sm:$0xff]
    %v177 = vld [vmem:[#allocation6 + $0x198] sm:$0xff]
    %v178 = vld [vmem:[#allocation6 + $0x1a0] sm:$0xff]
    %v179 = vld [vmem:[#allocation6 + $0x1a8] sm:$0xff]
    %v180 = vld [vmem:[#allocation6 + $0x1b0] sm:$0xff]
    %v181 = vld [vmem:[#allocation6 + $0x1b8] sm:$0xff]
    %v182 = vld [vmem:[#allocation6 + $0x1c0] sm:$0xff]
    %v183 = vld [vmem:[#allocation6 + $0x1c8] sm:$0xff]
    %v184 = vld [vmem:[#allocation6 + $0x1d0] sm:$0xff]
    %v185 = vld [vmem:[#allocation6 + $0x1d8] sm:$0xff]
    %v186 = vld [vmem:[#allocation6 + $0x1e0] sm:$0xff]
    %v187 = vld [vmem:[#allocation6 + $0x1e8] sm:$0xff]
    %v188 = vld [vmem:[#allocation6 + $0x1f0] sm:$0xff]
    %v189 = vld [vmem:[#allocation6 + $0x1f8] sm:$0xff]
    %v190 = vld [vmem:[#allocation10] sm:$0xf]
    %v192 = vlaneseq
    %v193 = vshrl.u32 %v192, 7
    %v194 = vsub.s32 0, %v193
    %v195 = vrot.slane %v190, %v194
    %v196 = vlaneseq
    %v197 = vshrl.u32 %v196, 7
    %v198 = vsub.s32 1, %v197
    %v199 = vrot.slane %v190, %v198
    %v200 = vlaneseq
    %v201 = vshrl.u32 %v200, 7
    %v202 = vsub.s32 2, %v201
    %v203 = vrot.slane %v190, %v202
    %v204 = vlaneseq
    %v205 = vshrl.u32 %v204, 7
    %v206 = vsub.s32 3, %v205
    %v207 = vrot.slane %v190, %v206
    %212 = vmatprep.subr.mxu0 %v127
    %213 = vmatpush1.msra.mxu0 %v126
    %214 = vmatprep.subr.mxu0 %v131
    %215 = vmatpush1.msra.mxu0 %v130
    %216 = vmatprep.subr.mxu0 %v135
    %217 = vmatpush1.msra.mxu0 %v134
    %218 = vmatprep.subr.mxu0 %v139
    %219 = vmatpush1.msra.mxu0 %v138
    %220 = vmatprep.subr.mxu0 %v143
    %221 = vmatpush1.msra.mxu0 %v142
    %222 = vmatprep.subr.mxu0 %v147
    %223 = vmatpush1.msra.mxu0 %v146
    %224 = vmatprep.subr.mxu0 %v151
    %225 = vmatpush1.msra.mxu0 %v150
    %226 = vmatprep.subr.mxu0 %v155
    %227 = vmatpush1.msra.mxu0 %v154
    %228 = vmatprep.subr.mxu0 %v159
    %229 = vmatpush1.msra.mxu0 %v158
    %230 = vmatprep.subr.mxu0 %v163
    %231 = vmatpush1.msra.mxu0 %v162
    %232 = vmatprep.subr.mxu0 %v167
    %233 = vmatpush1.msra.mxu0 %v166
    %234 = vmatprep.subr.mxu0 %v171
    %235 = vmatpush1.msra.mxu0 %v170
    %236 = vmatprep.subr.mxu0 %v175
    %237 = vmatpush1.msra.mxu0 %v174
    %238 = vmatprep.subr.mxu0 %v179
    %239 = vmatpush1.msra.mxu0 %v178
    %240 = vmatprep.subr.mxu0 %v183
    %241 = vmatpush1.msra.mxu0 %v182
    %242 = vmatprep.subr.mxu0 %v187
    %243 = vmatpush1.msra.mxu0 %v186
    %244 = vmatprep.subr.mxu0 0.0
    %245 = vmatpush1.msra.mxu0 0.0
    %246 = vmatprep.subr.mxu0 0.0
    %247 = vmatpush1.msra.mxu0 0.0
    %248 = vmatprep.subr.mxu0 0.0
    %249 = vmatpush1.msra.mxu0 0.0
    %250 = vmatprep.subr.mxu0 0.0
    %251 = vmatpush1.msra.mxu0 0.0
    %252 = vmatprep.subr.mxu0 0.0
    %253 = vmatpush1.msra.mxu0 0.0
    %254 = vmatprep.subr.mxu0 0.0
    %255 = vmatpush1.msra.mxu0 0.0
    %256 = vmatprep.subr.mxu0 0.0
    %257 = vmatpush1.msra.mxu0 0.0
    %258 = vmatprep.subr.mxu0 0.0
    %259 = vmatpush1.msra.mxu0 0.0
    %260 = vmatprep.subr.mxu0 0.0
    %261 = vmatpush1.msra.mxu0 0.0
    %262 = vmatprep.subr.mxu0 0.0
    %263 = vmatpush1.msra.mxu0 0.0
    %264 = vmatprep.subr.mxu0 0.0
    %265 = vmatpush1.msra.mxu0 0.0
    %266 = vmatprep.subr.mxu0 0.0
    %267 = vmatpush1.msra.mxu0 0.0
    %268 = vmatprep.subr.mxu0 0.0
    %269 = vmatpush1.msra.mxu0 0.0
    %270 = vmatprep.subr.mxu0 0.0
    %271 = vmatpush1.msra.mxu0 0.0
    %272 = vmatprep.subr.mxu0 0.0
    %273 = vmatpush1.msra.mxu0 0.0
    %274 = vmatprep.subr.mxu0 0.0
    %275 = vmatpush1.msra.mxu0 0.0
    %276 = vmatprep.mubr.f32.mxu0 0.0
    %277 = vmatmul.mubr.f32.gmra.mrb[0].mxu0 %v118
    %v278 = vpop.f32.mrb[0].mxu0
    %v279 = vadd.f32 %v195, %v278
    %v280 = vpop.f32.mrb[0].mxu0
    %v281 = vadd.f32 %v199, %v280
    %282 = vmatprep.mubr.f32.mxu0 0.0
    %283 = vmatmul.mubr.f32.gmra.mrb[0].mxu0 %v119
    %v284 = vpop.f32.mrb[0].mxu0
    %v285 = vadd.f32 %v195, %v284
    %v286 = vpop.f32.mrb[0].mxu0
    %v287 = vadd.f32 %v199, %v286
    %288 = vmatprep.mubr.f32.mxu0 0.0
    %289 = vmatmul.mubr.f32.gmra.mrb[0].mxu0 %v120
    %v290 = vpop.f32.mrb[0].mxu0
    %v291 = vadd.f32 %v195, %v290
    %v292 = vpop.f32.mrb[0].mxu0
    %v293 = vadd.f32 %v199, %v292
    %294 = vmatprep.mubr.f32.mxu0 0.0
    %295 = vmatmul.mubr.f32.gmra.mrb[0].mxu0 %v121
    %v296 = vpop.f32.mrb[0].mxu0
    %v297 = vadd.f32 %v195, %v296
    %v298 = vpop.f32.mrb[0].mxu0
    %v299 = vadd.f32 %v199, %v298
    %300 = vmatprep.mubr.f32.mxu0 0.0
    %301 = vmatmul.mubr.f32.gmra.mrb[0].mxu0 %v122
    %v302 = vpop.f32.mrb[0].mxu0
    %v303 = vadd.f32 %v195, %v302
    %v304 = vpop.f32.mrb[0].mxu0
    %v305 = vadd.f32 %v199, %v304
    %306 = vmatprep.mubr.f32.mxu0 0.0
    %307 = vmatmul.mubr.f32.gmra.mrb[0].mxu0 %v123
    %v308 = vpop.f32.mrb[0].mxu0
    %v309 = vadd.f32 %v195, %v308
    %v310 = vpop.f32.mrb[0].mxu0
    %v311 = vadd.f32 %v199, %v310
    %312 = vmatprep.mubr.f32.mxu0 0.0
    %313 = vmatmul.mubr.f32.gmra.mrb[0].mxu0 %v124
    %v314 = vpop.f32.mrb[0].mxu0
    %v315 = vadd.f32 %v195, %v314
    %v316 = vpop.f32.mrb[0].mxu0
    %v317 = vadd.f32 %v199, %v316
    %318 = vmatprep.mubr.f32.mxu0 0.0
    %319 = vmatmul.mubr.f32.gmra.mrb[0].mxu0 %v125
    %v320 = vpop.f32.mrb[0].mxu0
    %v321 = vadd.f32 %v195, %v320
    %v322 = vpop.f32.mrb[0].mxu0
    %v323 = vadd.f32 %v199, %v322
    %324 = vdwg.mxu0
    %325 = vmatprep.subr.mxu0 %v129
    %326 = vmatpush1.msra.mxu0 %v128
    %327 = vmatprep.subr.mxu0 %v133
    %328 = vmatpush1.msra.mxu0 %v132
    %329 = vmatprep.subr.mxu0 %v137
    %330 = vmatpush1.msra.mxu0 %v136
    %331 = vmatprep.subr.mxu0 %v141
    %332 = vmatpush1.msra.mxu0 %v140
    %333 = vmatprep.subr.mxu0 %v145
    %334 = vmatpush1.msra.mxu0 %v144
    %335 = vmatprep.subr.mxu0 %v149
    %336 = vmatpush1.msra.mxu0 %v148
    %337 = vmatprep.subr.mxu0 %v153
    %338 = vmatpush1.msra.mxu0 %v152
    %339 = vmatprep.subr.mxu0 %v157
    %340 = vmatpush1.msra.mxu0 %v156
    %341 = vmatprep.subr.mxu0 %v161
    %342 = vmatpush1.msra.mxu0 %v160
    %343 = vmatprep.subr.mxu0 %v165
    %344 = vmatpush1.msra.mxu0 %v164
    %345 = vmatprep.subr.mxu0 %v169
    %346 = vmatpush1.msra.mxu0 %v168
    %347 = vmatprep.subr.mxu0 %v173
    %348 = vmatpush1.msra.mxu0 %v172
    %349 = vmatprep.subr.mxu0 %v177
    %350 = vmatpush1.msra.mxu0 %v176
    %351 = vmatprep.subr.mxu0 %v181
    %352 = vmatpush1.msra.mxu0 %v180
    %353 = vmatprep.subr.mxu0 %v185
    %354 = vmatpush1.msra.mxu0 %v184
    %355 = vmatprep.subr.mxu0 %v189
    %356 = vmatpush1.msra.mxu0 %v188
    %357 = vmatprep.subr.mxu0 0.0
    %358 = vmatpush1.msra.mxu0 0.0
    %359 = vmatprep.subr.mxu0 0.0
    %360 = vmatpush1.msra.mxu0 0.0
    %361 = vmatprep.subr.mxu0 0.0
    %362 = vmatpush1.msra.mxu0 0.0
    %363 = vmatprep.subr.mxu0 0.0
    %364 = vmatpush1.msra.mxu0 0.0
    %365 = vmatprep.subr.mxu0 0.0
    %366 = vmatpush1.msra.mxu0 0.0
    %367 = vmatprep.subr.mxu0 0.0
    %368 = vmatpush1.msra.mxu0 0.0
    %369 = vmatprep.subr.mxu0 0.0
    %370 = vmatpush1.msra.mxu0 0.0
    %371 = vmatprep.subr.mxu0 0.0
    %372 = vmatpush1.msra.mxu0 0.0
    %373 = vmatprep.subr.mxu0 0.0
    %374 = vmatpush1.msra.mxu0 0.0
    %375 = vmatprep.subr.mxu0 0.0
    %376 = vmatpush1.msra.mxu0 0.0
    %377 = vmatprep.subr.mxu0 0.0
    %378 = vmatpush1.msra.mxu0 0.0
    %379 = vmatprep.subr.mxu0 0.0
    %380 = vmatpush1.msra.mxu0 0.0
    %381 = vmatprep.subr.mxu0 0.0
    %382 = vmatpush1.msra.mxu0 0.0
    %383 = vmatprep.subr.mxu0 0.0
    %384 = vmatpush1.msra.mxu0 0.0
    %385 = vmatprep.subr.mxu0 0.0
    %386 = vmatpush1.msra.mxu0 0.0
    %387 = vmatprep.subr.mxu0 0.0
    %388 = vmatpush1.msra.mxu0 0.0
    %389 = vmatprep.mubr.f32.mxu0 0.0
    %390 = vmatmul.mubr.f32.gmra.mrb[0].mxu0 %v118
    %v391 = vpop.f32.mrb[0].mxu0
    %v392 = vadd.f32 %v203, %v391
    %v393 = vpop.f32.mrb[0].mxu0
    %v394 = vadd.f32 %v207, %v393
    %395 = vmatprep.mubr.f32.mxu0 0.0
    %396 = vmatmul.mubr.f32.gmra.mrb[0].mxu0 %v119
    %v397 = vpop.f32.mrb[0].mxu0
    %v398 = vadd.f32 %v203, %v397
    %v399 = vpop.f32.mrb[0].mxu0
    %v400 = vadd.f32 %v207, %v399
    %401 = vmatprep.mubr.f32.mxu0 0.0
    %402 = vmatmul.mubr.f32.gmra.mrb[0].mxu0 %v120
    %v403 = vpop.f32.mrb[0].mxu0
    %v404 = vadd.f32 %v203, %v403
    %v405 = vpop.f32.mrb[0].mxu0
    %v406 = vadd.f32 %v207, %v405
    %407 = vmatprep.mubr.f32.mxu0 0.0
    %408 = vmatmul.mubr.f32.gmra.mrb[0].mxu0 %v121
    %v409 = vpop.f32.mrb[0].mxu0
    %v410 = vadd.f32 %v203, %v409
    %v411 = vpop.f32.mrb[0].mxu0
    %v412 = vadd.f32 %v207, %v411
    %413 = vmatprep.mubr.f32.mxu0 0.0
    %414 = vmatmul.mubr.f32.gmra.mrb[0].mxu0 %v122
    %v415 = vpop.f32.mrb[0].mxu0
    %v416 = vadd.f32 %v203, %v415
    %v417 = vpop.f32.mrb[0].mxu0
    %v418 = vadd.f32 %v207, %v417
    %419 = vmatprep.mubr.f32.mxu0 0.0
    %420 = vmatmul.mubr.f32.gmra.mrb[0].mxu0 %v123
    %v421 = vpop.f32.mrb[0].mxu0
    %v422 = vadd.f32 %v203, %v421
    %v423 = vpop.f32.mrb[0].mxu0
    %v424 = vadd.f32 %v207, %v423
    %425 = vmatprep.mubr.f32.mxu0 0.0
    %426 = vmatmul.mubr.f32.gmra.mrb[0].mxu0 %v124
    %v427 = vpop.f32.mrb[0].mxu0
    %v428 = vadd.f32 %v203, %v427
    %v429 = vpop.f32.mrb[0].mxu0
    %v430 = vadd.f32 %v207, %v429
    %431 = vmatprep.mubr.f32.mxu0 0.0
    %432 = vmatmul.mubr.f32.gmra.mrb[0].mxu0 %v125
    %v433 = vpop.f32.mrb[0].mxu0
    %v434 = vadd.f32 %v203, %v433
    %v435 = vpop.f32.mrb[0].mxu0
    %v436 = vadd.f32 %v207, %v435
    %437 = vdwg.mxu0
    %438 = vst [vmem:[#allocation5] sm:$0xff] %v279
    %439 = vst [vmem:[#allocation5 + $0x8] sm:$0xff] %v281
    %440 = vst [vmem:[#allocation5 + $0x10] sm:$0xff] %v392
    %441 = vst [vmem:[#allocation5 + $0x18] sm:$0xff] %v394
    %442 = vst [vmem:[#allocation5 + $0x20] sm:$0xff] %v285
    %443 = vst [vmem:[#allocation5 + $0x28] sm:$0xff] %v287
    %444 = vst [vmem:[#allocation5 + $0x30] sm:$0xff] %v398
    %445 = vst [vmem:[#allocation5 + $0x38] sm:$0xff] %v400
    %446 = vst [vmem:[#allocation5 + $0x40] sm:$0xff] %v291
    %447 = vst [vmem:[#allocation5 + $0x48] sm:$0xff] %v293
    %448 = vst [vmem:[#allocation5 + $0x50] sm:$0xff] %v404
    %449 = vst [vmem:[#allocation5 + $0x58] sm:$0xff] %v406
    %450 = vst [vmem:[#allocation5 + $0x60] sm:$0xff] %v297
    %451 = vst [vmem:[#allocation5 + $0x68] sm:$0xff] %v299
    %452 = vst [vmem:[#allocation5 + $0x70] sm:$0xff] %v410
    %453 = vst [vmem:[#allocation5 + $0x78] sm:$0xff] %v412
    %454 = vst [vmem:[#allocation5 + $0x80] sm:$0xff] %v303
    %455 = vst [vmem:[#allocation5 + $0x88] sm:$0xff] %v305
    %456 = vst [vmem:[#allocation5 + $0x90] sm:$0xff] %v416
    %457 = vst [vmem:[#allocation5 + $0x98] sm:$0xff] %v418
    %458 = vst [vmem:[#allocation5 + $0xa0] sm:$0xff] %v309
    %459 = vst [vmem:[#allocation5 + $0xa8] sm:$0xff] %v311
    %460 = vst [vmem:[#allocation5 + $0xb0] sm:$0xff] %v422
    %461 = vst [vmem:[#allocation5 + $0xb8] sm:$0xff] %v424
    %462 = vst [vmem:[#allocation5 + $0xc0] sm:$0xff] %v315
    %463 = vst [vmem:[#allocation5 + $0xc8] sm:$0xff] %v317
    %464 = vst [vmem:[#allocation5 + $0xd0] sm:$0xff] %v428
    %465 = vst [vmem:[#allocation5 + $0xd8] sm:$0xff] %v430
    %466 = vst [vmem:[#allocation5 + $0xe0] sm:$0xff] %v321
    %467 = vst [vmem:[#allocation5 + $0xe8] sm:$0xff] %v323
    %468 = vst [vmem:[#allocation5 + $0xf0] sm:$0xff] %v434
    %469 = vst [vmem:[#allocation5 + $0xf8] sm:$0xff] %v436
    %v470 = vld [vmem:[#allocation8] sm:$0xff]
    %v471 = vld [vmem:[#allocation8 + $0x8] sm:$0xff]
    %v472 = vld [vmem:[#allocation8 + $0x10] sm:$0xff]
    %v473 = vld [vmem:[#allocation8 + $0x18] sm:$0xff]
    %v474 = vld [vmem:[#allocation8 + $0x20] sm:$0xff]
    %v475 = vld [vmem:[#allocation8 + $0x28] sm:$0xff]
    %v476 = vld [vmem:[#allocation8 + $0x30] sm:$0xff]
    %v477 = vld [vmem:[#allocation8 + $0x38] sm:$0xff]
    %v478 = vld [vmem:[#allocation8 + $0x40] sm:$0xff]
    %v479 = vld [vmem:[#allocation8 + $0x48] sm:$0xff]
    %v480 = vld [vmem:[#allocation8 + $0x50] sm:$0xff]
    %v481 = vld [vmem:[#allocation8 + $0x58] sm:$0xff]
    %v482 = vld [vmem:[#allocation8 + $0x60] sm:$0xff]
    %v483 = vld [vmem:[#allocation8 + $0x68] sm:$0xff]
    %v484 = vld [vmem:[#allocation8 + $0x70] sm:$0xff]
    %v485 = vld [vmem:[#allocation8 + $0x78] sm:$0xff]
    %v486 = vld [vmem:[#allocation8 + $0x80] sm:$0xff]
    %v487 = vld [vmem:[#allocation8 + $0x88] sm:$0xff]
    %v488 = vld [vmem:[#allocation8 + $0x90] sm:$0xff]
    %v489 = vld [vmem:[#allocation8 + $0x98] sm:$0xff]
    %v490 = vld [vmem:[#allocation8 + $0xa0] sm:$0xff]
    %v491 = vld [vmem:[#allocation8 + $0xa8] sm:$0xff]
    %v492 = vld [vmem:[#allocation8 + $0xb0] sm:$0xff]
    %v493 = vld [vmem:[#allocation8 + $0xb8] sm:$0xff]
    %v494 = vld [vmem:[#allocation8 + $0xc0] sm:$0xff]
    %v495 = vld [vmem:[#allocation8 + $0xc8] sm:$0xff]
    %v496 = vld [vmem:[#allocation8 + $0xd0] sm:$0xff]
    %v497 = vld [vmem:[#allocation8 + $0xd8] sm:$0xff]
    %v498 = vld [vmem:[#allocation8 + $0xe0] sm:$0xff]
    %v499 = vld [vmem:[#allocation8 + $0xe8] sm:$0xff]
    %v500 = vld [vmem:[#allocation8 + $0xf0] sm:$0xff]
    %v501 = vld [vmem:[#allocation8 + $0xf8] sm:$0xff]
    %v502 = vld [vmem:[#allocation8 + $0x100] sm:$0xff]
    %v503 = vld [vmem:[#allocation8 + $0x108] sm:$0xff]
    %v504 = vld [vmem:[#allocation8 + $0x110] sm:$0xff]
    %v505 = vld [vmem:[#allocation8 + $0x118] sm:$0xff]
    %v506 = vld [vmem:[#allocation8 + $0x120] sm:$0xff]
    %v507 = vld [vmem:[#allocation8 + $0x128] sm:$0xff]
    %v508 = vld [vmem:[#allocation8 + $0x130] sm:$0xff]
    %v509 = vld [vmem:[#allocation8 + $0x138] sm:$0xff]
    %v510 = vld [vmem:[#allocation8 + $0x140] sm:$0xff]
    %v511 = vld [vmem:[#allocation8 + $0x148] sm:$0xff]
    %v512 = vld [vmem:[#allocation8 + $0x150] sm:$0xff]
    %v513 = vld [vmem:[#allocation8 + $0x158] sm:$0xff]
    %v514 = vld [vmem:[#allocation8 + $0x160] sm:$0xff]
    %v515 = vld [vmem:[#allocation8 + $0x168] sm:$0xff]
    %v516 = vld [vmem:[#allocation8 + $0x170] sm:$0xff]
    %v517 = vld [vmem:[#allocation8 + $0x178] sm:$0xff]
    %v518 = vld [vmem:[#allocation8 + $0x180] sm:$0xff]
    %v519 = vld [vmem:[#allocation8 + $0x188] sm:$0xff]
    %v520 = vld [vmem:[#allocation8 + $0x190] sm:$0xff]
    %v521 = vld [vmem:[#allocation8 + $0x198] sm:$0xff]
    %v522 = vld [vmem:[#allocation8 + $0x1a0] sm:$0xff]
    %v523 = vld [vmem:[#allocation8 + $0x1a8] sm:$0xff]
    %v524 = vld [vmem:[#allocation8 + $0x1b0] sm:$0xff]
    %v525 = vld [vmem:[#allocation8 + $0x1b8] sm:$0xff]
    %v526 = vld [vmem:[#allocation8 + $0x1c0] sm:$0xff]
    %v527 = vld [vmem:[#allocation8 + $0x1c8] sm:$0xff]
    %v528 = vld [vmem:[#allocation8 + $0x1d0] sm:$0xff]
    %v529 = vld [vmem:[#allocation8 + $0x1d8] sm:$0xff]
    %v530 = vld [vmem:[#allocation8 + $0x1e0] sm:$0xff]
    %v531 = vld [vmem:[#allocation8 + $0x1e8] sm:$0xff]
    %v532 = vld [vmem:[#allocation8 + $0x1f0] sm:$0xff]
    %v533 = vld [vmem:[#allocation8 + $0x1f8] sm:$0xff]
    %v534 = vld [vmem:[#allocation2] sm:$0xff]
    %v535 = vld [vmem:[#allocation3] sm:$0xff]
    %v536 = vld [vmem:[#allocation5] sm:$0xff]
    %v537 = vld [vmem:[#allocation5 + $0x8] sm:$0xff]
    %v538 = vld [vmem:[#allocation5 + $0x10] sm:$0xff]
    %v539 = vld [vmem:[#allocation5 + $0x18] sm:$0xff]
    %540 = vmatprep.subr.mxu0 %v471
    %541 = vmatpush1.msra.mxu0 %v470
    %542 = vmatprep.subr.mxu0 %v475
    %543 = vmatpush1.msra.mxu0 %v474
    %544 = vmatprep.subr.mxu0 %v479
    %545 = vmatpush1.msra.mxu0 %v478
    %546 = vmatprep.subr.mxu0 %v483
    %547 = vmatpush1.msra.mxu0 %v482
    %548 = vmatprep.subr.mxu0 %v487
    %549 = vmatpush1.msra.mxu0 %v486
    %550 = vmatprep.subr.mxu0 %v491
    %551 = vmatpush1.msra.mxu0 %v490
    %552 = vmatprep.subr.mxu0 %v495
    %553 = vmatpush1.msra.mxu0 %v494
    %554 = vmatprep.subr.mxu0 %v499
    %555 = vmatpush1.msra.mxu0 %v498
    %556 = vmatprep.subr.mxu0 %v503
    %557 = vmatpush1.msra.mxu0 %v502
    %558 = vmatprep.subr.mxu0 %v507
    %559 = vmatpush1.msra.mxu0 %v506
    %560 = vmatprep.subr.mxu0 %v511
    %561 = vmatpush1.msra.mxu0 %v510
    %562 = vmatprep.subr.mxu0 %v515
    %563 = vmatpush1.msra.mxu0 %v514
    %564 = vmatprep.subr.mxu0 %v519
    %565 = vmatpush1.msra.mxu0 %v518
    %566 = vmatprep.subr.mxu0 %v523
    %567 = vmatpush1.msra.mxu0 %v522
    %568 = vmatprep.subr.mxu0 %v527
    %569 = vmatpush1.msra.mxu0 %v526
    %570 = vmatprep.subr.mxu0 %v531
    %571 = vmatpush1.msra.mxu0 %v530
    %572 = vmatprep.subr.mxu0 0.0
    %573 = vmatpush1.msra.mxu0 0.0
    %574 = vmatprep.subr.mxu0 0.0
    %575 = vmatpush1.msra.mxu0 0.0
    %576 = vmatprep.subr.mxu0 0.0
    %577 = vmatpush1.msra.mxu0 0.0
    %578 = vmatprep.subr.mxu0 0.0
    %579 = vmatpush1.msra.mxu0 0.0
    %580 = vmatprep.subr.mxu0 0.0
    %581 = vmatpush1.msra.mxu0 0.0
    %582 = vmatprep.subr.mxu0 0.0
    %583 = vmatpush1.msra.mxu0 0.0
    %584 = vmatprep.subr.mxu0 0.0
    %585 = vmatpush1.msra.mxu0 0.0
    %586 = vmatprep.subr.mxu0 0.0
    %587 = vmatpush1.msra.mxu0 0.0
    %588 = vmatprep.subr.mxu0 0.0
    %589 = vmatpush1.msra.mxu0 0.0
    %590 = vmatprep.subr.mxu0 0.0
    %591 = vmatpush1.msra.mxu0 0.0
    %592 = vmatprep.subr.mxu0 0.0
    %593 = vmatpush1.msra.mxu0 0.0
    %594 = vmatprep.subr.mxu0 0.0
    %595 = vmatpush1.msra.mxu0 0.0
    %596 = vmatprep.subr.mxu0 0.0
    %597 = vmatpush1.msra.mxu0 0.0
    %598 = vmatprep.subr.mxu0 0.0
    %599 = vmatpush1.msra.mxu0 0.0
    %600 = vmatprep.subr.mxu0 0.0
    %601 = vmatpush1.msra.mxu0 0.0
    %602 = vmatprep.subr.mxu0 0.0
    %603 = vmatpush1.msra.mxu0 0.0
    %604 = vmatprep.mubr.f32.mxu0 0.0
    %605 = vmatmul.mubr.f32.gmra.mrb[0].mxu0 %v534
    %v606 = vpop.f32.mrb[0].mxu0
    %v607 = vadd.f32 0.0, %v606
    %v608 = vpop.f32.mrb[0].mxu0
    %v609 = vadd.f32 0.0, %v608
    %610 = vdwg.mxu0
    %611 = vmatprep.subr.mxu0 %v473
    %612 = vmatpush1.msra.mxu0 %v472
    %613 = vmatprep.subr.mxu0 %v477
    %614 = vmatpush1.msra.mxu0 %v476
    %615 = vmatprep.subr.mxu0 %v481
    %616 = vmatpush1.msra.mxu0 %v480
    %617 = vmatprep.subr.mxu0 %v485
    %618 = vmatpush1.msra.mxu0 %v484
    %619 = vmatprep.subr.mxu0 %v489
    %620 = vmatpush1.msra.mxu0 %v488
    %621 = vmatprep.subr.mxu0 %v493
    %622 = vmatpush1.msra.mxu0 %v492
    %623 = vmatprep.subr.mxu0 %v497
    %624 = vmatpush1.msra.mxu0 %v496
    %625 = vmatprep.subr.mxu0 %v501
    %626 = vmatpush1.msra.mxu0 %v500
    %627 = vmatprep.subr.mxu0 %v505
    %628 = vmatpush1.msra.mxu0 %v504
    %629 = vmatprep.subr.mxu0 %v509
    %630 = vmatpush1.msra.mxu0 %v508
    %631 = vmatprep.subr.mxu0 %v513
    %632 = vmatpush1.msra.mxu0 %v512
    %633 = vmatprep.subr.mxu0 %v517
    %634 = vmatpush1.msra.mxu0 %v516
    %635 = vmatprep.subr.mxu0 %v521
    %636 = vmatpush1.msra.mxu0 %v520
    %637 = vmatprep.subr.mxu0 %v525
    %638 = vmatpush1.msra.mxu0 %v524
    %639 = vmatprep.subr.mxu0 %v529
    %640 = vmatpush1.msra.mxu0 %v528
    %641 = vmatprep.subr.mxu0 %v533
    %642 = vmatpush1.msra.mxu0 %v532
    %643 = vmatprep.subr.mxu0 0.0
    %644 = vmatpush1.msra.mxu0 0.0
    %645 = vmatprep.subr.mxu0 0.0
    %646 = vmatpush1.msra.mxu0 0.0
    %647 = vmatprep.subr.mxu0 0.0
    %648 = vmatpush1.msra.mxu0 0.0
    %649 = vmatprep.subr.mxu0 0.0
    %650 = vmatpush1.msra.mxu0 0.0
    %651 = vmatprep.subr.mxu0 0.0
    %652 = vmatpush1.msra.mxu0 0.0
    %653 = vmatprep.subr.mxu0 0.0
    %654 = vmatpush1.msra.mxu0 0.0
    %655 = vmatprep.subr.mxu0 0.0
    %656 = vmatpush1.msra.mxu0 0.0
    %657 = vmatprep.subr.mxu0 0.0
    %658 = vmatpush1.msra.mxu0 0.0
    %659 = vmatprep.subr.mxu0 0.0
    %660 = vmatpush1.msra.mxu0 0.0
    %661 = vmatprep.subr.mxu0 0.0
    %662 = vmatpush1.msra.mxu0 0.0
    %663 = vmatprep.subr.mxu0 0.0
    %664 = vmatpush1.msra.mxu0 0.0
    %665 = vmatprep.subr.mxu0 0.0
    %666 = vmatpush1.msra.mxu0 0.0
    %667 = vmatprep.subr.mxu0 0.0
    %668 = vmatpush1.msra.mxu0 0.0
    %669 = vmatprep.subr.mxu0 0.0
    %670 = vmatpush1.msra.mxu0 0.0
    %671 = vmatprep.subr.mxu0 0.0
    %672 = vmatpush1.msra.mxu0 0.0
    %673 = vmatprep.subr.mxu0 0.0
    %674 = vmatpush1.msra.mxu0 0.0
    %675 = vmatprep.mubr.f32.mxu0 0.0
    %676 = vmatmul.mubr.f32.gmra.mrb[0].mxu0 %v534
    %v677 = vpop.f32.mrb[0].mxu0
    %v678 = vadd.f32 0.0, %v677
    %v679 = vpop.f32.mrb[0].mxu0
    %v680 = vadd.f32 0.0, %v679
    %681 = vdwg.mxu0
    %v682 = vadd.f32 %v536, %v607
    %v683 = vadd.f32 %v537, %v609
    %v684 = vadd.f32 %v538, %v678
    %v685 = vadd.f32 %v539, %v680
    %v686 = vmul.f32 %v682, 0.5
    %v687 = vtanh.pop %v686
    %v688 = vmul.f32 %v687, 0.5
    %v689 = vadd.f32 %v688, 0.5
    %v690 = vmul.f32 %v683, 0.5
    %v691 = vtanh.pop %v690
    %v692 = vmul.f32 %v691, 0.5
    %v693 = vadd.f32 %v692, 0.5
    %v694 = vtanh.pop %v684
    %v695 = vmul.f32 %v685, 0.5
    %v696 = vtanh.pop %v695
    %v697 = vmul.f32 %v696, 0.5
    %v698 = vadd.f32 %v697, 0.5
    %v699 = vmul.f32 %v693, %v535
    %v700 = vmul.f32 %v689, %v694
    %v701 = vadd.f32 %v699, %v700
    %v702 = vtanh.pop %v701
    %v703 = vmul.f32 %v698, %v702
    %704 = vst [vmem:[#allocation4] sm:$0xff] %v703
    %v705 = vld [vmem:[#allocation5 + $0x20] sm:$0xff]
    %v706 = vld [vmem:[#allocation5 + $0x28] sm:$0xff]
    %v707 = vld [vmem:[#allocation5 + $0x30] sm:$0xff]
    %v708 = vld [vmem:[#allocation5 + $0x38] sm:$0xff]
    %709 = vmatprep.subr.mxu0 %v471
    %710 = vmatpush1.msra.mxu0 %v470
    %711 = vmatprep.subr.mxu0 %v475
    %712 = vmatpush1.msra.mxu0 %v474
    %713 = vmatprep.subr.mxu0 %v479
    %714 = vmatpush1.msra.mxu0 %v478
    %715 = vmatprep.subr.mxu0 %v483
    %716 = vmatpush1.msra.mxu0 %v482
    %717 = vmatprep.subr.mxu0 %v487
    %718 = vmatpush1.msra.mxu0 %v486
    %719 = vmatprep.subr.mxu0 %v491
    %720 = vmatpush1.msra.mxu0 %v490
    %721 = vmatprep.subr.mxu0 %v495
    %722 = vmatpush1.msra.mxu0 %v494
    %723 = vmatprep.subr.mxu0 %v499
    %724 = vmatpush1.msra.mxu0 %v498
    %725 = vmatprep.subr.mxu0 %v503
    %726 = vmatpush1.msra.mxu0 %v502
    %727 = vmatprep.subr.mxu0 %v507
    %728 = vmatpush1.msra.mxu0 %v506
    %729 = vmatprep.subr.mxu0 %v511
    %730 = vmatpush1.msra.mxu0 %v510
    %731 = vmatprep.subr.mxu0 %v515
    %732 = vmatpush1.msra.mxu0 %v514
    %733 = vmatprep.subr.mxu0 %v519
    %734 = vmatpush1.msra.mxu0 %v518
    %735 = vmatprep.subr.mxu0 %v523
    %736 = vmatpush1.msra.mxu0 %v522
    %737 = vmatprep.subr.mxu0 %v527
    %738 = vmatpush1.msra.mxu0 %v526
    %739 = vmatprep.subr.mxu0 %v531
    %740 = vmatpush1.msra.mxu0 %v530
    %741 = vmatprep.subr.mxu0 0.0
    %742 = vmatpush1.msra.mxu0 0.0
    %743 = vmatprep.subr.mxu0 0.0
    %744 = vmatpush1.msra.mxu0 0.0
    %745 = vmatprep.subr.mxu0 0.0
    %746 = vmatpush1.msra.mxu0 0.0
    %747 = vmatprep.subr.mxu0 0.0
    %748 = vmatpush1.msra.mxu0 0.0
    %749 = vmatprep.subr.mxu0 0.0
    %750 = vmatpush1.msra.mxu0 0.0
    %751 = vmatprep.subr.mxu0 0.0
    %752 = vmatpush1.msra.mxu0 0.0
    %753 = vmatprep.subr.mxu0 0.0
    %754 = vmatpush1.msra.mxu0 0.0
    %755 = vmatprep.subr.mxu0 0.0
    %756 = vmatpush1.msra.mxu0 0.0
    %757 = vmatprep.subr.mxu0 0.0
    %758 = vmatpush1.msra.mxu0 0.0
    %759 = vmatprep.subr.mxu0 0.0
    %760 = vmatpush1.msra.mxu0 0.0
    %761 = vmatprep.subr.mxu0 0.0
    %762 = vmatpush1.msra.mxu0 0.0
    %763 = vmatprep.subr.mxu0 0.0
    %764 = vmatpush1.msra.mxu0 0.0
    %765 = vmatprep.subr.mxu0 0.0
    %766 = vmatpush1.msra.mxu0 0.0
    %767 = vmatprep.subr.mxu0 0.0
    %768 = vmatpush1.msra.mxu0 0.0
    %769 = vmatprep.subr.mxu0 0.0
    %770 = vmatpush1.msra.mxu0 0.0
    %771 = vmatprep.subr.mxu0 0.0
    %772 = vmatpush1.msra.mxu0 0.0
    %773 = vmatprep.mubr.f32.mxu0 0.0
    %774 = vmatmul.mubr.f32.gmra.mrb[0].mxu0 %v703
    %v775 = vpop.f32.mrb[0].mxu0
    %v776 = vadd.f32 0.0, %v775
    %v777 = vpop.f32.mrb[0].mxu0
    %v778 = vadd.f32 0.0, %v777
    %779 = vdwg.mxu0
    %780 = vmatprep.subr.mxu0 %v473
    %781 = vmatpush1.msra.mxu0 %v472
    %782 = vmatprep.subr.mxu0 %v477
    %783 = vmatpush1.msra.mxu0 %v476
    %784 = vmatprep.subr.mxu0 %v481
    %785 = vmatpush1.msra.mxu0 %v480
    %786 = vmatprep.subr.mxu0 %v485
    %787 = vmatpush1.msra.mxu0 %v484
    %788 = vmatprep.subr.mxu0 %v489
    %789 = vmatpush1.msra.mxu0 %v488
    %790 = vmatprep.subr.mxu0 %v493
    %791 = vmatpush1.msra.mxu0 %v492
    %792 = vmatprep.subr.mxu0 %v497
    %793 = vmatpush1.msra.mxu0 %v496
    %794 = vmatprep.subr.mxu0 %v501
    %795 = vmatpush1.msra.mxu0 %v500
    %796 = vmatprep.subr.mxu0 %v505
    %797 = vmatpush1.msra.mxu0 %v504
    %798 = vmatprep.subr.mxu0 %v509
    %799 = vmatpush1.msra.mxu0 %v508
    %800 = vmatprep.subr.mxu0 %v513
    %801 = vmatpush1.msra.mxu0 %v512
    %802 = vmatprep.subr.mxu0 %v517
    %803 = vmatpush1.msra.mxu0 %v516
    %804 = vmatprep.subr.mxu0 %v521
    %805 = vmatpush1.msra.mxu0 %v520
    %806 = vmatprep.subr.mxu0 %v525
    %807 = vmatpush1.msra.mxu0 %v524
    %808 = vmatprep.subr.mxu0 %v529
    %809 = vmatpush1.msra.mxu0 %v528
    %810 = vmatprep.subr.mxu0 %v533
    %811 = vmatpush1.msra.mxu0 %v532
    %812 = vmatprep.subr.mxu0 0.0
    %813 = vmatpush1.msra.mxu0 0.0
    %814 = vmatprep.subr.mxu0 0.0
    %815 = vmatpush1.msra.mxu0 0.0
    %816 = vmatprep.subr.mxu0 0.0
    %817 = vmatpush1.msra.mxu0 0.0
    %818 = vmatprep.subr.mxu0 0.0
    %819 = vmatpush1.msra.mxu0 0.0
    %820 = vmatprep.subr.mxu0 0.0
    %821 = vmatpush1.msra.mxu0 0.0
    %822 = vmatprep.subr.mxu0 0.0
    %823 = vmatpush1.msra.mxu0 0.0
    %824 = vmatprep.subr.mxu0 0.0
    %825 = vmatpush1.msra.mxu0 0.0
    %826 = vmatprep.subr.mxu0 0.0
    %827 = vmatpush1.msra.mxu0 0.0
    %828 = vmatprep.subr.mxu0 0.0
    %829 = vmatpush1.msra.mxu0 0.0
    %830 = vmatprep.subr.mxu0 0.0
    %831 = vmatpush1.msra.mxu0 0.0
    %832 = vmatprep.subr.mxu0 0.0
    %833 = vmatpush1.msra.mxu0 0.0
    %834 = vmatprep.subr.mxu0 0.0
    %835 = vmatpush1.msra.mxu0 0.0
    %836 = vmatprep.subr.mxu0 0.0
    %837 = vmatpush1.msra.mxu0 0.0
    %838 = vmatprep.subr.mxu0 0.0
    %839 = vmatpush1.msra.mxu0 0.0
    %840 = vmatprep.subr.mxu0 0.0
    %841 = vmatpush1.msra.mxu0 0.0
    %842 = vmatprep.subr.mxu0 0.0
    %843 = vmatpush1.msra.mxu0 0.0
    %844 = vmatprep.mubr.f32.mxu0 0.0
    %845 = vmatmul.mubr.f32.gmra.mrb[0].mxu0 %v703
    %v846 = vpop.f32.mrb[0].mxu0
    %v847 = vadd.f32 0.0, %v846
    %v848 = vpop.f32.mrb[0].mxu0
    %v849 = vadd.f32 0.0, %v848
    %850 = vdwg.mxu0
    %v851 = vadd.f32 %v705, %v776
    %v852 = vadd.f32 %v706, %v778
    %v853 = vadd.f32 %v707, %v847
    %v854 = vadd.f32 %v708, %v849
    %v855 = vmul.f32 %v851, 0.5
    %v856 = vtanh.pop %v855
    %v857 = vmul.f32 %v856, 0.5
    %v858 = vadd.f32 %v857, 0.5
    %v859 = vmul.f32 %v852, 0.5
    %v860 = vtanh.pop %v859
    %v861 = vmul.f32 %v860, 0.5
    %v862 = vadd.f32 %v861, 0.5
    %v863 = vtanh.pop %v853
    %v864 = vmul.f32 %v854, 0.5
    %v865 = vtanh.pop %v864
    %v866 = vmul.f32 %v865, 0.5
    %v867 = vadd.f32 %v866, 0.5
    %v868 = vmul.f32 %v862, %v701
    %v869 = vmul.f32 %v858, %v863
    %v870 = vadd.f32 %v868, %v869
    %v871 = vtanh.pop %v870
    %v872 = vmul.f32 %v867, %v871
    %873 = vst [vmem:[#allocation4 + $0x8] sm:$0xff] %v872
    %v874 = vld [vmem:[#allocation5 + $0x40] sm:$0xff]
    %v875 = vld [vmem:[#allocation5 + $0x48] sm:$0xff]
    %v876 = vld [vmem:[#allocation5 + $0x50] sm:$0xff]
    %v877 = vld [vmem:[#allocation5 + $0x58] sm:$0xff]
    %878 = vmatprep.subr.mxu0 %v471
    %879 = vmatpush1.msra.mxu0 %v470
    %880 = vmatprep.subr.mxu0 %v475
    %881 = vmatpush1.msra.mxu0 %v474
    %882 = vmatprep.subr.mxu0 %v479
    %883 = vmatpush1.msra.mxu0 %v478
    %884 = vmatprep.subr.mxu0 %v483
    %885 = vmatpush1.msra.mxu0 %v482
    %886 = vmatprep.subr.mxu0 %v487
    %887 = vmatpush1.msra.mxu0 %v486
    %888 = vmatprep.subr.mxu0 %v491
    %889 = vmatpush1.msra.mxu0 %v490
    %890 = vmatprep.subr.mxu0 %v495
    %891 = vmatpush1.msra.mxu0 %v494
    %892 = vmatprep.subr.mxu0 %v499
    %893 = vmatpush1.msra.mxu0 %v498
    %894 = vmatprep.subr.mxu0 %v503
    %895 = vmatpush1.msra.mxu0 %v502
    %896 = vmatprep.subr.mxu0 %v507
    %897 = vmatpush1.msra.mxu0 %v506
    %898 = vmatprep.subr.mxu0 %v511
    %899 = vmatpush1.msra.mxu0 %v510
    %900 = vmatprep.subr.mxu0 %v515
    %901 = vmatpush1.msra.mxu0 %v514
    %902 = vmatprep.subr.mxu0 %v519
    %903 = vmatpush1.msra.mxu0 %v518
    %904 = vmatprep.subr.mxu0 %v523
    %905 = vmatpush1.msra.mxu0 %v522
    %906 = vmatprep.subr.mxu0 %v527
    %907 = vmatpush1.msra.mxu0 %v526
    %908 = vmatprep.subr.mxu0 %v531
    %909 = vmatpush1.msra.mxu0 %v530
    %910 = vmatprep.subr.mxu0 0.0
    %911 = vmatpush1.msra.mxu0 0.0
    %912 = vmatprep.subr.mxu0 0.0
    %913 = vmatpush1.msra.mxu0 0.0
    %914 = vmatprep.subr.mxu0 0.0
    %915 = vmatpush1.msra.mxu0 0.0
    %916 = vmatprep.subr.mxu0 0.0
    %917 = vmatpush1.msra.mxu0 0.0
    %918 = vmatprep.subr.mxu0 0.0
    %919 = vmatpush1.msra.mxu0 0.0
    %920 = vmatprep.subr.mxu0 0.0
    %921 = vmatpush1.msra.mxu0 0.0
    %922 = vmatprep.subr.mxu0 0.0
    %923 = vmatpush1.msra.mxu0 0.0
    %924 = vmatprep.subr.mxu0 0.0
    %925 = vmatpush1.msra.mxu0 0.0
    %926 = vmatprep.subr.mxu0 0.0
    %927 = vmatpush1.msra.mxu0 0.0
    %928 = vmatprep.subr.mxu0 0.0
    %929 = vmatpush1.msra.mxu0 0.0
    %930 = vmatprep.subr.mxu0 0.0
    %931 = vmatpush1.msra.mxu0 0.0
    %932 = vmatprep.subr.mxu0 0.0
    %933 = vmatpush1.msra.mxu0 0.0
    %934 = vmatprep.subr.mxu0 0.0
    %935 = vmatpush1.msra.mxu0 0.0
    %936 = vmatprep.subr.mxu0 0.0
    %937 = vmatpush1.msra.mxu0 0.0
    %938 = vmatprep.subr.mxu0 0.0
    %939 = vmatpush1.msra.mxu0 0.0
    %940 = vmatprep.subr.mxu0 0.0
    %941 = vmatpush1.msra.mxu0 0.0
    %942 = vmatprep.mubr.f32.mxu0 0.0
    %943 = vmatmul.mubr.f32.gmra.mrb[0].mxu0 %v872
    %v944 = vpop.f32.mrb[0].mxu0
    %v945 = vadd.f32 0.0, %v944
    %v946 = vpop.f32.mrb[0].mxu0
    %v947 = vadd.f32 0.0, %v946
    %948 = vdwg.mxu0
    %949 = vmatprep.subr.mxu0 %v473
    %950 = vmatpush1.msra.mxu0 %v472
    %951 = vmatprep.subr.mxu0 %v477
    %952 = vmatpush1.msra.mxu0 %v476
    %953 = vmatprep.subr.mxu0 %v481
    %954 = vmatpush1.msra.mxu0 %v480
    %955 = vmatprep.subr.mxu0 %v485
    %956 = vmatpush1.msra.mxu0 %v484
    %957 = vmatprep.subr.mxu0 %v489
    %958 = vmatpush1.msra.mxu0 %v488
    %959 = vmatprep.subr.mxu0 %v493
    %960 = vmatpush1.msra.mxu0 %v492
    %961 = vmatprep.subr.mxu0 %v497
    %962 = vmatpush1.msra.mxu0 %v496
    %963 = vmatprep.subr.mxu0 %v501
    %964 = vmatpush1.msra.mxu0 %v500
    %965 = vmatprep.subr.mxu0 %v505
    %966 = vmatpush1.msra.mxu0 %v504
    %967 = vmatprep.subr.mxu0 %v509
    %968 = vmatpush1.msra.mxu0 %v508
    %969 = vmatprep.subr.mxu0 %v513
    %970 = vmatpush1.msra.mxu0 %v512
    %971 = vmatprep.subr.mxu0 %v517
    %972 = vmatpush1.msra.mxu0 %v516
    %973 = vmatprep.subr.mxu0 %v521
    %974 = vmatpush1.msra.mxu0 %v520
    %975 = vmatprep.subr.mxu0 %v525
    %976 = vmatpush1.msra.mxu0 %v524
    %977 = vmatprep.subr.mxu0 %v529
    %978 = vmatpush1.msra.mxu0 %v528
    %979 = vmatprep.subr.mxu0 %v533
    %980 = vmatpush1.msra.mxu0 %v532
    %981 = vmatprep.subr.mxu0 0.0
    %982 = vmatpush1.msra.mxu0 0.0
    %983 = vmatprep.subr.mxu0 0.0
    %984 = vmatpush1.msra.mxu0 0.0
    %985 = vmatprep.subr.mxu0 0.0
    %986 = vmatpush1.msra.mxu0 0.0
    %987 = vmatprep.subr.mxu0 0.0
    %988 = vmatpush1.msra.mxu0 0.0
    %989 = vmatprep.subr.mxu0 0.0
    %990 = vmatpush1.msra.mxu0 0.0
    %991 = vmatprep.subr.mxu0 0.0
    %992 = vmatpush1.msra.mxu0 0.0
    %993 = vmatprep.subr.mxu0 0.0
    %994 = vmatpush1.msra.mxu0 0.0
    %995 = vmatprep.subr.mxu0 0.0
    %996 = vmatpush1.msra.mxu0 0.0
    %997 = vmatprep.subr.mxu0 0.0
    %998 = vmatpush1.msra.mxu0 0.0
    %999 = vmatprep.subr.mxu0 0.0
    %1000 = vmatpush1.msra.mxu0 0.0
    %1001 = vmatprep.subr.mxu0 0.0
    %1002 = vmatpush1.msra.mxu0 0.0
    %1003 = vmatprep.subr.mxu0 0.0
    %1004 = vmatpush1.msra.mxu0 0.0
    %1005 = vmatprep.subr.mxu0 0.0
    %1006 = vmatpush1.msra.mxu0 0.0
    %1007 = vmatprep.subr.mxu0 0.0
    %1008 = vmatpush1.msra.mxu0 0.0
    %1009 = vmatprep.subr.mxu0 0.0
    %1010 = vmatpush1.msra.mxu0 0.0
    %1011 = vmatprep.subr.mxu0 0.0
    %1012 = vmatpush1.msra.mxu0 0.0
    %1013 = vmatprep.mubr.f32.mxu0 0.0
    %1014 = vmatmul.mubr.f32.gmra.mrb[0].mxu0 %v872
    %v1015 = vpop.f32.mrb[0].mxu0
    %v1016 = vadd.f32 0.0, %v1015
    %v1017 = vpop.f32.mrb[0].mxu0
    %v1018 = vadd.f32 0.0, %v1017
    %1019 = vdwg.mxu0
    %v1020 = vadd.f32 %v874, %v945
    %v1021 = vadd.f32 %v875, %v947
    %v1022 = vadd.f32 %v876, %v1016
    %v1023 = vadd.f32 %v877, %v1018
    %v1024 = vmul.f32 %v1020, 0.5
    %v1025 = vtanh.pop %v1024
    %v1026 = vmul.f32 %v1025, 0.5
    %v1027 = vadd.f32 %v1026, 0.5
    %v1028 = vmul.f32 %v1021, 0.5
    %v1029 = vtanh.pop %v1028
    %v1030 = vmul.f32 %v1029, 0.5
    %v1031 = vadd.f32 %v1030, 0.5
    %v1032 = vtanh.pop %v1022
    %v1033 = vmul.f32 %v1023, 0.5
    %v1034 = vtanh.pop %v1033
    %v1035 = vmul.f32 %v1034, 0.5
    %v1036 = vadd.f32 %v1035, 0.5
    %v1037 = vmul.f32 %v1031, %v870
    %v1038 = vmul.f32 %v1027, %v1032
    %v1039 = vadd.f32 %v1037, %v1038
    %v1040 = vtanh.pop %v1039
    %v1041 = vmul.f32 %v1036, %v1040
    %1042 = vst [vmem:[#allocation4 + $0x10] sm:$0xff] %v1041
    %v1043 = vld [vmem:[#allocation5 + $0x60] sm:$0xff]
    %v1044 = vld [vmem:[#allocation5 + $0x68] sm:$0xff]
    %v1045 = vld [vmem:[#allocation5 + $0x70] sm:$0xff]
    %v1046 = vld [vmem:[#allocation5 + $0x78] sm:$0xff]
    %1047 = vmatprep.subr.mxu0 %v471
    %1048 = vmatpush1.msra.mxu0 %v470
    %1049 = vmatprep.subr.mxu0 %v475
    %1050 = vmatpush1.msra.mxu0 %v474
    %1051 = vmatprep.subr.mxu0 %v479
    %1052 = vmatpush1.msra.mxu0 %v478
    %1053 = vmatprep.subr.mxu0 %v483
    %1054 = vmatpush1.msra.mxu0 %v482
    %1055 = vmatprep.subr.mxu0 %v487
    %1056 = vmatpush1.msra.mxu0 %v486
    %1057 = vmatprep.subr.mxu0 %v491
    %1058 = vmatpush1.msra.mxu0 %v490
    %1059 = vmatprep.subr.mxu0 %v495
    %1060 = vmatpush1.msra.mxu0 %v494
    %1061 = vmatprep.subr.mxu0 %v499
    %1062 = vmatpush1.msra.mxu0 %v498
    %1063 = vmatprep.subr.mxu0 %v503
    %1064 = vmatpush1.msra.mxu0 %v502
    %1065 = vmatprep.subr.mxu0 %v507
    %1066 = vmatpush1.msra.mxu0 %v506
    %1067 = vmatprep.subr.mxu0 %v511
    %1068 = vmatpush1.msra.mxu0 %v510
    %1069 = vmatprep.subr.mxu0 %v515
    %1070 = vmatpush1.msra.mxu0 %v514
    %1071 = vmatprep.subr.mxu0 %v519
    %1072 = vmatpush1.msra.mxu0 %v518
    %1073 = vmatprep.subr.mxu0 %v523
    %1074 = vmatpush1.msra.mxu0 %v522
    %1075 = vmatprep.subr.mxu0 %v527
    %1076 = vmatpush1.msra.mxu0 %v526
    %1077 = vmatprep.subr.mxu0 %v531
    %1078 = vmatpush1.msra.mxu0 %v530
    %1079 = vmatprep.subr.mxu0 0.0
    %1080 = vmatpush1.msra.mxu0 0.0
    %1081 = vmatprep.subr.mxu0 0.0
    %1082 = vmatpush1.msra.mxu0 0.0
    %1083 = vmatprep.subr.mxu0 0.0
    %1084 = vmatpush1.msra.mxu0 0.0
    %1085 = vmatprep.subr.mxu0 0.0
    %1086 = vmatpush1.msra.mxu0 0.0
    %1087 = vmatprep.subr.mxu0 0.0
    %1088 = vmatpush1.msra.mxu0 0.0
    %1089 = vmatprep.subr.mxu0 0.0
    %1090 = vmatpush1.msra.mxu0 0.0
    %1091 = vmatprep.subr.mxu0 0.0
    %1092 = vmatpush1.msra.mxu0 0.0
    %1093 = vmatprep.subr.mxu0 0.0
    %1094 = vmatpush1.msra.mxu0 0.0
    %1095 = vmatprep.subr.mxu0 0.0
    %1096 = vmatpush1.msra.mxu0 0.0
    %1097 = vmatprep.subr.mxu0 0.0
    %1098 = vmatpush1.msra.mxu0 0.0
    %1099 = vmatprep.subr.mxu0 0.0
    %1100 = vmatpush1.msra.mxu0 0.0
    %1101 = vmatprep.subr.mxu0 0.0
    %1102 = vmatpush1.msra.mxu0 0.0
    %1103 = vmatprep.subr.mxu0 0.0
    %1104 = vmatpush1.msra.mxu0 0.0
    %1105 = vmatprep.subr.mxu0 0.0
    %1106 = vmatpush1.msra.mxu0 0.0
    %1107 = vmatprep.subr.mxu0 0.0
    %1108 = vmatpush1.msra.mxu0 0.0
    %1109 = vmatprep.subr.mxu0 0.0
    %1110 = vmatpush1.msra.mxu0 0.0
    %1111 = vmatprep.mubr.f32.mxu0 0.0
    %1112 = vmatmul.mubr.f32.gmra.mrb[0].mxu0 %v1041
    %v1113 = vpop.f32.mrb[0].mxu0
    %v1114 = vadd.f32 0.0, %v1113
    %v1115 = vpop.f32.mrb[0].mxu0
    %v1116 = vadd.f32 0.0, %v1115
    %1117 = vdwg.mxu0
    %1118 = vmatprep.subr.mxu0 %v473
    %1119 = vmatpush1.msra.mxu0 %v472
    %1120 = vmatprep.subr.mxu0 %v477
    %1121 = vmatpush1.msra.mxu0 %v476
    %1122 = vmatprep.subr.mxu0 %v481
    %1123 = vmatpush1.msra.mxu0 %v480
    %1124 = vmatprep.subr.mxu0 %v485
    %1125 = vmatpush1.msra.mxu0 %v484
    %1126 = vmatprep.subr.mxu0 %v489
    %1127 = vmatpush1.msra.mxu0 %v488
    %1128 = vmatprep.subr.mxu0 %v493
    %1129 = vmatpush1.msra.mxu0 %v492
    %1130 = vmatprep.subr.mxu0 %v497
    %1131 = vmatpush1.msra.mxu0 %v496
    %1132 = vmatprep.subr.mxu0 %v501
    %1133 = vmatpush1.msra.mxu0 %v500
    %1134 = vmatprep.subr.mxu0 %v505
    %1135 = vmatpush1.msra.mxu0 %v504
    %1136 = vmatprep.subr.mxu0 %v509
    %1137 = vmatpush1.msra.mxu0 %v508
    %1138 = vmatprep.subr.mxu0 %v513
    %1139 = vmatpush1.msra.mxu0 %v512
    %1140 = vmatprep.subr.mxu0 %v517
    %1141 = vmatpush1.msra.mxu0 %v516
    %1142 = vmatprep.subr.mxu0 %v521
    %1143 = vmatpush1.msra.mxu0 %v520
    %1144 = vmatprep.subr.mxu0 %v525
    %1145 = vmatpush1.msra.mxu0 %v524
    %1146 = vmatprep.subr.mxu0 %v529
    %1147 = vmatpush1.msra.mxu0 %v528
    %1148 = vmatprep.subr.mxu0 %v533
    %1149 = vmatpush1.msra.mxu0 %v532
    %1150 = vmatprep.subr.mxu0 0.0
    %1151 = vmatpush1.msra.mxu0 0.0
    %1152 = vmatprep.subr.mxu0 0.0
    %1153 = vmatpush1.msra.mxu0 0.0
    %1154 = vmatprep.subr.mxu0 0.0
    %1155 = vmatpush1.msra.mxu0 0.0
    %1156 = vmatprep.subr.mxu0 0.0
    %1157 = vmatpush1.msra.mxu0 0.0
    %1158 = vmatprep.subr.mxu0 0.0
    %1159 = vmatpush1.msra.mxu0 0.0
    %1160 = vmatprep.subr.mxu0 0.0
    %1161 = vmatpush1.msra.mxu0 0.0
    %1162 = vmatprep.subr.mxu0 0.0
    %1163 = vmatpush1.msra.mxu0 0.0
    %1164 = vmatprep.subr.mxu0 0.0
    %1165 = vmatpush1.msra.mxu0 0.0
    %1166 = vmatprep.subr.mxu0 0.0
    %1167 = vmatpush1.msra.mxu0 0.0
    %1168 = vmatprep.subr.mxu0 0.0
    %1169 = vmatpush1.msra.mxu0 0.0
    %1170 = vmatprep.subr.mxu0 0.0
    %1171 = vmatpush1.msra.mxu0 0.0
    %1172 = vmatprep.subr.mxu0 0.0
    %1173 = vmatpush1.msra.mxu0 0.0
    %1174 = vmatprep.subr.mxu0 0.0
    %1175 = vmatpush1.msra.mxu0 0.0
    %1176 = vmatprep.subr.mxu0 0.0
    %1177 = vmatpush1.msra.mxu0 0.0
    %1178 = vmatprep.subr.mxu0 0.0
    %1179 = vmatpush1.msra.mxu0 0.0
    %1180 = vmatprep.subr.mxu0 0.0
    %1181 = vmatpush1.msra.mxu0 0.0
    %1182 = vmatprep.mubr.f32.mxu0 0.0
    %1183 = vmatmul.mubr.f32.gmra.mrb[0].mxu0 %v1041
    %v1184 = vpop.f32.mrb[0].mxu0
    %v1185 = vadd.f32 0.0, %v1184
    %v1186 = vpop.f32.mrb[0].mxu0
    %v1187 = vadd.f32 0.0, %v1186
    %1188 = vdwg.mxu0
    %v1189 = vadd.f32 %v1043, %v1114
    %v1190 = vadd.f32 %v1044, %v1116
    %v1191 = vadd.f32 %v1045, %v1185
    %v1192 = vadd.f32 %v1046, %v1187
    %v1193 = vmul.f32 %v1189, 0.5
    %v1194 = vtanh.pop %v1193
    %v1195 = vmul.f32 %v1194, 0.5
    %v1196 = vadd.f32 %v1195, 0.5
    %v1197 = vmul.f32 %v1190, 0.5
    %v1198 = vtanh.pop %v1197
    %v1199 = vmul.f32 %v1198, 0.5
    %v1200 = vadd.f32 %v1199, 0.5
    %v1201 = vtanh.pop %v1191
    %v1202 = vmul.f32 %v1192, 0.5
    %v1203 = vtanh.pop %v1202
    %v1204 = vmul.f32 %v1203, 0.5
    %v1205 = vadd.f32 %v1204, 0.5
    %v1206 = vmul.f32 %v1200, %v1039
    %v1207 = vmul.f32 %v1196, %v1201
    %v1208 = vadd.f32 %v1206, %v1207
    %v1209 = vtanh.pop %v1208
    %v1210 = vmul.f32 %v1205, %v1209
    %1211 = vst [vmem:[#allocation4 + $0x18] sm:$0xff] %v1210
    %v1212 = vld [vmem:[#allocation5 + $0x80] sm:$0xff]
    %v1213 = vld [vmem:[#allocation5 + $0x88] sm:$0xff]
    %v1214 = vld [vmem:[#allocation5 + $0x90] sm:$0xff]
    %v1215 = vld [vmem:[#allocation5 + $0x98] sm:$0xff]
    %1216 = vmatprep.subr.mxu0 %v471
    %1217 = vmatpush1.msra.mxu0 %v470
    %1218 = vmatprep.subr.mxu0 %v475
    %1219 = vmatpush1.msra.mxu0 %v474
    %1220 = vmatprep.subr.mxu0 %v479
    %1221 = vmatpush1.msra.mxu0 %v478
    %1222 = vmatprep.subr.mxu0 %v483
    %1223 = vmatpush1.msra.mxu0 %v482
    %1224 = vmatprep.subr.mxu0 %v487
    %1225 = vmatpush1.msra.mxu0 %v486
    %1226 = vmatprep.subr.mxu0 %v491
    %1227 = vmatpush1.msra.mxu0 %v490
    %1228 = vmatprep.subr.mxu0 %v495
    %1229 = vmatpush1.msra.mxu0 %v494
    %1230 = vmatprep.subr.mxu0 %v499
    %1231 = vmatpush1.msra.mxu0 %v498
    %1232 = vmatprep.subr.mxu0 %v503
    %1233 = vmatpush1.msra.mxu0 %v502
    %1234 = vmatprep.subr.mxu0 %v507
    %1235 = vmatpush1.msra.mxu0 %v506
    %1236 = vmatprep.subr.mxu0 %v511
    %1237 = vmatpush1.msra.mxu0 %v510
    %1238 = vmatprep.subr.mxu0 %v515
    %1239 = vmatpush1.msra.mxu0 %v514
    %1240 = vmatprep.subr.mxu0 %v519
    %1241 = vmatpush1.msra.mxu0 %v518
    %1242 = vmatprep.subr.mxu0 %v523
    %1243 = vmatpush1.msra.mxu0 %v522
    %1244 = vmatprep.subr.mxu0 %v527
    %1245 = vmatpush1.msra.mxu0 %v526
    %1246 = vmatprep.subr.mxu0 %v531
    %1247 = vmatpush1.msra.mxu0 %v530
    %1248 = vmatprep.subr.mxu0 0.0
    %1249 = vmatpush1.msra.mxu0 0.0
    %1250 = vmatprep.subr.mxu0 0.0
    %1251 = vmatpush1.msra.mxu0 0.0
    %1252 = vmatprep.subr.mxu0 0.0
    %1253 = vmatpush1.msra.mxu0 0.0
    %1254 = vmatprep.subr.mxu0 0.0
    %1255 = vmatpush1.msra.mxu0 0.0
    %1256 = vmatprep.subr.mxu0 0.0
    %1257 = vmatpush1.msra.mxu0 0.0
    %1258 = vmatprep.subr.mxu0 0.0
    %1259 = vmatpush1.msra.mxu0 0.0
    %1260 = vmatprep.subr.mxu0 0.0
    %1261 = vmatpush1.msra.mxu0 0.0
    %1262 = vmatprep.subr.mxu0 0.0
    %1263 = vmatpush1.msra.mxu0 0.0
    %1264 = vmatprep.subr.mxu0 0.0
    %1265 = vmatpush1.msra.mxu0 0.0
    %1266 = vmatprep.subr.mxu0 0.0
    %1267 = vmatpush1.msra.mxu0 0.0
    %1268 = vmatprep.subr.mxu0 0.0
    %1269 = vmatpush1.msra.mxu0 0.0
    %1270 = vmatprep.subr.mxu0 0.0
    %1271 = vmatpush1.msra.mxu0 0.0
    %1272 = vmatprep.subr.mxu0 0.0
    %1273 = vmatpush1.msra.mxu0 0.0
    %1274 = vmatprep.subr.mxu0 0.0
    %1275 = vmatpush1.msra.mxu0 0.0
    %1276 = vmatprep.subr.mxu0 0.0
    %1277 = vmatpush1.msra.mxu0 0.0
    %1278 = vmatprep.subr.mxu0 0.0
    %1279 = vmatpush1.msra.mxu0 0.0
    %1280 = vmatprep.mubr.f32.mxu0 0.0
    %1281 = vmatmul.mubr.f32.gmra.mrb[0].mxu0 %v1210
    %v1282 = vpop.f32.mrb[0].mxu0
    %v1283 = vadd.f32 0.0, %v1282
    %v1284 = vpop.f32.mrb[0].mxu0
    %v1285 = vadd.f32 0.0, %v1284
    %1286 = vdwg.mxu0
    %1287 = vmatprep.subr.mxu0 %v473
    %1288 = vmatpush1.msra.mxu0 %v472
    %1289 = vmatprep.subr.mxu0 %v477
    %1290 = vmatpush1.msra.mxu0 %v476
    %1291 = vmatprep.subr.mxu0 %v481
    %1292 = vmatpush1.msra.mxu0 %v480
    %1293 = vmatprep.subr.mxu0 %v485
    %1294 = vmatpush1.msra.mxu0 %v484
    %1295 = vmatprep.subr.mxu0 %v489
    %1296 = vmatpush1.msra.mxu0 %v488
    %1297 = vmatprep.subr.mxu0 %v493
    %1298 = vmatpush1.msra.mxu0 %v492
    %1299 = vmatprep.subr.mxu0 %v497
    %1300 = vmatpush1.msra.mxu0 %v496
    %1301 = vmatprep.subr.mxu0 %v501
    %1302 = vmatpush1.msra.mxu0 %v500
    %1303 = vmatprep.subr.mxu0 %v505
    %1304 = vmatpush1.msra.mxu0 %v504
    %1305 = vmatprep.subr.mxu0 %v509
    %1306 = vmatpush1.msra.mxu0 %v508
    %1307 = vmatprep.subr.mxu0 %v513
    %1308 = vmatpush1.msra.mxu0 %v512
    %1309 = vmatprep.subr.mxu0 %v517
    %1310 = vmatpush1.msra.mxu0 %v516
    %1311 = vmatprep.subr.mxu0 %v521
    %1312 = vmatpush1.msra.mxu0 %v520
    %1313 = vmatprep.subr.mxu0 %v525
    %1314 = vmatpush1.msra.mxu0 %v524
    %1315 = vmatprep.subr.mxu0 %v529
    %1316 = vmatpush1.msra.mxu0 %v528
    %1317 = vmatprep.subr.mxu0 %v533
    %1318 = vmatpush1.msra.mxu0 %v532
    %1319 = vmatprep.subr.mxu0 0.0
    %1320 = vmatpush1.msra.mxu0 0.0
    %1321 = vmatprep.subr.mxu0 0.0
    %1322 = vmatpush1.msra.mxu0 0.0
    %1323 = vmatprep.subr.mxu0 0.0
    %1324 = vmatpush1.msra.mxu0 0.0
    %1325 = vmatprep.subr.mxu0 0.0
    %1326 = vmatpush1.msra.mxu0 0.0
    %1327 = vmatprep.subr.mxu0 0.0
    %1328 = vmatpush1.msra.mxu0 0.0
    %1329 = vmatprep.subr.mxu0 0.0
    %1330 = vmatpush1.msra.mxu0 0.0
    %1331 = vmatprep.subr.mxu0 0.0
    %1332 = vmatpush1.msra.mxu0 0.0
    %1333 = vmatprep.subr.mxu0 0.0
    %1334 = vmatpush1.msra.mxu0 0.0
    %1335 = vmatprep.subr.mxu0 0.0
    %1336 = vmatpush1.msra.mxu0 0.0
    %1337 = vmatprep.subr.mxu0 0.0
    %1338 = vmatpush1.msra.mxu0 0.0
    %1339 = vmatprep.subr.mxu0 0.0
    %1340 = vmatpush1.msra.mxu0 0.0
    %1341 = vmatprep.subr.mxu0 0.0
    %1342 = vmatpush1.msra.mxu0 0.0
    %1343 = vmatprep.subr.mxu0 0.0
    %1344 = vmatpush1.msra.mxu0 0.0
    %1345 = vmatprep.subr.mxu0 0.0
    %1346 = vmatpush1.msra.mxu0 0.0
    %1347 = vmatprep.subr.mxu0 0.0
    %1348 = vmatpush1.msra.mxu0 0.0
    %1349 = vmatprep.subr.mxu0 0.0
    %1350 = vmatpush1.msra.mxu0 0.0
    %1351 = vmatprep.mubr.f32.mxu0 0.0
    %1352 = vmatmul.mubr.f32.gmra.mrb[0].mxu0 %v1210
    %v1353 = vpop.f32.mrb[0].mxu0
    %v1354 = vadd.f32 0.0, %v1353
    %v1355 = vpop.f32.mrb[0].mxu0
    %v1356 = vadd.f32 0.0, %v1355
    %1357 = vdwg.mxu0
    %v1358 = vadd.f32 %v1212, %v1283
    %v1359 = vadd.f32 %v1213, %v1285
    %v1360 = vadd.f32 %v1214, %v1354
    %v1361 = vadd.f32 %v1215, %v1356
    %v1362 = vmul.f32 %v1358, 0.5
    %v1363 = vtanh.pop %v1362
    %v1364 = vmul.f32 %v1363, 0.5
    %v1365 = vadd.f32 %v1364, 0.5
    %v1366 = vmul.f32 %v1359, 0.5
    %v1367 = vtanh.pop %v1366
    %v1368 = vmul.f32 %v1367, 0.5
    %v1369 = vadd.f32 %v1368, 0.5
    %v1370 = vtanh.pop %v1360
    %v1371 = vmul.f32 %v1361, 0.5
    %v1372 = vtanh.pop %v1371
    %v1373 = vmul.f32 %v1372, 0.5
    %v1374 = vadd.f32 %v1373, 0.5
    %v1375 = vmul.f32 %v1369, %v1208
    %v1376 = vmul.f32 %v1365, %v1370
    %v1377 = vadd.f32 %v1375, %v1376
    %v1378 = vtanh.pop %v1377
    %v1379 = vmul.f32 %v1374, %v1378
    %1380 = vst [vmem:[#allocation4 + $0x20] sm:$0xff] %v1379
    %v1381 = vld [vmem:[#allocation5 + $0xa0] sm:$0xff]
    %v1382 = vld [vmem:[#allocation5 + $0xa8] sm:$0xff]
    %v1383 = vld [vmem:[#allocation5 + $0xb0] sm:$0xff]
    %v1384 = vld [vmem:[#allocation5 + $0xb8] sm:$0xff]
    %1385 = vmatprep.subr.mxu0 %v471
    %1386 = vmatpush1.msra.mxu0 %v470
    %1387 = vmatprep.subr.mxu0 %v475
    %1388 = vmatpush1.msra.mxu0 %v474
    %1389 = vmatprep.subr.mxu0 %v479
    %1390 = vmatpush1.msra.mxu0 %v478
    %1391 = vmatprep.subr.mxu0 %v483
    %1392 = vmatpush1.msra.mxu0 %v482
    %1393 = vmatprep.subr.mxu0 %v487
    %1394 = vmatpush1.msra.mxu0 %v486
    %1395 = vmatprep.subr.mxu0 %v491
    %1396 = vmatpush1.msra.mxu0 %v490
    %1397 = vmatprep.subr.mxu0 %v495
    %1398 = vmatpush1.msra.mxu0 %v494
    %1399 = vmatprep.subr.mxu0 %v499
    %1400 = vmatpush1.msra.mxu0 %v498
    %1401 = vmatprep.subr.mxu0 %v503
    %1402 = vmatpush1.msra.mxu0 %v502
    %1403 = vmatprep.subr.mxu0 %v507
    %1404 = vmatpush1.msra.mxu0 %v506
    %1405 = vmatprep.subr.mxu0 %v511
    %1406 = vmatpush1.msra.mxu0 %v510
    %1407 = vmatprep.subr.mxu0 %v515
    %1408 = vmatpush1.msra.mxu0 %v514
    %1409 = vmatprep.subr.mxu0 %v519
    %1410 = vmatpush1.msra.mxu0 %v518
    %1411 = vmatprep.subr.mxu0 %v523
    %1412 = vmatpush1.msra.mxu0 %v522
    %1413 = vmatprep.subr.mxu0 %v527
    %1414 = vmatpush1.msra.mxu0 %v526
    %1415 = vmatprep.subr.mxu0 %v531
    %1416 = vmatpush1.msra.mxu0 %v530
    %1417 = vmatprep.subr.mxu0 0.0
    %1418 = vmatpush1.msra.mxu0 0.0
    %1419 = vmatprep.subr.mxu0 0.0
    %1420 = vmatpush1.msra.mxu0 0.0
    %1421 = vmatprep.subr.mxu0 0.0
    %1422 = vmatpush1.msra.mxu0 0.0
    %1423 = vmatprep.subr.mxu0 0.0
    %1424 = vmatpush1.msra.mxu0 0.0
    %1425 = vmatprep.subr.mxu0 0.0
    %1426 = vmatpush1.msra.mxu0 0.0
    %1427 = vmatprep.subr.mxu0 0.0
    %1428 = vmatpush1.msra.mxu0 0.0
    %1429 = vmatprep.subr.mxu0 0.0
    %1430 = vmatpush1.msra.mxu0 0.0
    %1431 = vmatprep.subr.mxu0 0.0
    %1432 = vmatpush1.msra.mxu0 0.0
    %1433 = vmatprep.subr.mxu0 0.0
    %1434 = vmatpush1.msra.mxu0 0.0
    %1435 = vmatprep.subr.mxu0 0.0
    %1436 = vmatpush1.msra.mxu0 0.0
    %1437 = vmatprep.subr.mxu0 0.0
    %1438 = vmatpush1.msra.mxu0 0.0
    %1439 = vmatprep.subr.mxu0 0.0
    %1440 = vmatpush1.msra.mxu0 0.0
    %1441 = vmatprep.subr.mxu0 0.0
    %1442 = vmatpush1.msra.mxu0 0.0
    %1443 = vmatprep.subr.mxu0 0.0
    %1444 = vmatpush1.msra.mxu0 0.0
    %1445 = vmatprep.subr.mxu0 0.0
    %1446 = vmatpush1.msra.mxu0 0.0
    %1447 = vmatprep.subr.mxu0 0.0
    %1448 = vmatpush1.msra.mxu0 0.0
    %1449 = vmatprep.mubr.f32.mxu0 0.0
    %1450 = vmatmul.mubr.f32.gmra.mrb[0].mxu0 %v1379
    %v1451 = vpop.f32.mrb[0].mxu0
    %v1452 = vadd.f32 0.0, %v1451
    %v1453 = vpop.f32.mrb[0].mxu0
    %v1454 = vadd.f32 0.0, %v1453
    %1455 = vdwg.mxu0
    %1456 = vmatprep.subr.mxu0 %v473
    %1457 = vmatpush1.msra.mxu0 %v472
    %1458 = vmatprep.subr.mxu0 %v477
    %1459 = vmatpush1.msra.mxu0 %v476
    %1460 = vmatprep.subr.mxu0 %v481
    %1461 = vmatpush1.msra.mxu0 %v480
    %1462 = vmatprep.subr.mxu0 %v485
    %1463 = vmatpush1.msra.mxu0 %v484
    %1464 = vmatprep.subr.mxu0 %v489
    %1465 = vmatpush1.msra.mxu0 %v488
    %1466 = vmatprep.subr.mxu0 %v493
    %1467 = vmatpush1.msra.mxu0 %v492
    %1468 = vmatprep.subr.mxu0 %v497
    %1469 = vmatpush1.msra.mxu0 %v496
    %1470 = vmatprep.subr.mxu0 %v501
    %1471 = vmatpush1.msra.mxu0 %v500
    %1472 = vmatprep.subr.mxu0 %v505
    %1473 = vmatpush1.msra.mxu0 %v504
    %1474 = vmatprep.subr.mxu0 %v509
    %1475 = vmatpush1.msra.mxu0 %v508
    %1476 = vmatprep.subr.mxu0 %v513
    %1477 = vmatpush1.msra.mxu0 %v512
    %1478 = vmatprep.subr.mxu0 %v517
    %1479 = vmatpush1.msra.mxu0 %v516
    %1480 = vmatprep.subr.mxu0 %v521
    %1481 = vmatpush1.msra.mxu0 %v520
    %1482 = vmatprep.subr.mxu0 %v525
    %1483 = vmatpush1.msra.mxu0 %v524
    %1484 = vmatprep.subr.mxu0 %v529
    %1485 = vmatpush1.msra.mxu0 %v528
    %1486 = vmatprep.subr.mxu0 %v533
    %1487 = vmatpush1.msra.mxu0 %v532
    %1488 = vmatprep.subr.mxu0 0.0
    %1489 = vmatpush1.msra.mxu0 0.0
    %1490 = vmatprep.subr.mxu0 0.0
    %1491 = vmatpush1.msra.mxu0 0.0
    %1492 = vmatprep.subr.mxu0 0.0
    %1493 = vmatpush1.msra.mxu0 0.0
    %1494 = vmatprep.subr.mxu0 0.0
    %1495 = vmatpush1.msra.mxu0 0.0
    %1496 = vmatprep.subr.mxu0 0.0
    %1497 = vmatpush1.msra.mxu0 0.0
    %1498 = vmatprep.subr.mxu0 0.0
    %1499 = vmatpush1.msra.mxu0 0.0
    %1500 = vmatprep.subr.mxu0 0.0
    %1501 = vmatpush1.msra.mxu0 0.0
    %1502 = vmatprep.subr.mxu0 0.0
    %1503 = vmatpush1.msra.mxu0 0.0
    %1504 = vmatprep.subr.mxu0 0.0
    %1505 = vmatpush1.msra.mxu0 0.0
    %1506 = vmatprep.subr.mxu0 0.0
    %1507 = vmatpush1.msra.mxu0 0.0
    %1508 = vmatprep.subr.mxu0 0.0
    %1509 = vmatpush1.msra.mxu0 0.0
    %1510 = vmatprep.subr.mxu0 0.0
    %1511 = vmatpush1.msra.mxu0 0.0
    %1512 = vmatprep.subr.mxu0 0.0
    %1513 = vmatpush1.msra.mxu0 0.0
    %1514 = vmatprep.subr.mxu0 0.0
    %1515 = vmatpush1.msra.mxu0 0.0
    %1516 = vmatprep.subr.mxu0 0.0
    %1517 = vmatpush1.msra.mxu0 0.0
    %1518 = vmatprep.subr.mxu0 0.0
    %1519 = vmatpush1.msra.mxu0 0.0
    %1520 = vmatprep.mubr.f32.mxu0 0.0
    %1521 = vmatmul.mubr.f32.gmra.mrb[0].mxu0 %v1379
    %v1522 = vpop.f32.mrb[0].mxu0
    %v1523 = vadd.f32 0.0, %v1522
    %v1524 = vpop.f32.mrb[0].mxu0
    %v1525 = vadd.f32 0.0, %v1524
    %1526 = vdwg.mxu0
    %v1527 = vadd.f32 %v1381, %v1452
    %v1528 = vadd.f32 %v1382, %v1454
    %v1529 = vadd.f32 %v1383, %v1523
    %v1530 = vadd.f32 %v1384, %v1525
    %v1531 = vmul.f32 %v1527, 0.5
    %v1532 = vtanh.pop %v1531
    %v1533 = vmul.f32 %v1532, 0.5
    %v1534 = vadd.f32 %v1533, 0.5
    %v1535 = vmul.f32 %v1528, 0.5
    %v1536 = vtanh.pop %v1535
    %v1537 = vmul.f32 %v1536, 0.5
    %v1538 = vadd.f32 %v1537, 0.5
    %v1539 = vtanh.pop %v1529
    %v1540 = vmul.f32 %v1530, 0.5
    %v1541 = vtanh.pop %v1540
    %v1542 = vmul.f32 %v1541, 0.5
    %v1543 = vadd.f32 %v1542, 0.5
    %v1544 = vmul.f32 %v1538, %v1377
    %v1545 = vmul.f32 %v1534, %v1539
    %v1546 = vadd.f32 %v1544, %v1545
    %v1547 = vtanh.pop %v1546
    %v1548 = vmul.f32 %v1543, %v1547
    %1549 = vst [vmem:[#allocation4 + $0x28] sm:$0xff] %v1548
    %v1550 = vld [vmem:[#allocation5 + $0xc0] sm:$0xff]
    %v1551 = vld [vmem:[#allocation5 + $0xc8] sm:$0xff]
    %v1552 = vld [vmem:[#allocation5 + $0xd0] sm:$0xff]
    %v1553 = vld [vmem:[#allocation5 + $0xd8] sm:$0xff]
    %1554 = vmatprep.subr.mxu0 %v471
    %1555 = vmatpush1.msra.mxu0 %v470
    %1556 = vmatprep.subr.mxu0 %v475
    %1557 = vmatpush1.msra.mxu0 %v474
    %1558 = vmatprep.subr.mxu0 %v479
    %1559 = vmatpush1.msra.mxu0 %v478
    %1560 = vmatprep.subr.mxu0 %v483
    %1561 = vmatpush1.msra.mxu0 %v482
    %1562 = vmatprep.subr.mxu0 %v487
    %1563 = vmatpush1.msra.mxu0 %v486
    %1564 = vmatprep.subr.mxu0 %v491
    %1565 = vmatpush1.msra.mxu0 %v490
    %1566 = vmatprep.subr.mxu0 %v495
    %1567 = vmatpush1.msra.mxu0 %v494
    %1568 = vmatprep.subr.mxu0 %v499
    %1569 = vmatpush1.msra.mxu0 %v498
    %1570 = vmatprep.subr.mxu0 %v503
    %1571 = vmatpush1.msra.mxu0 %v502
    %1572 = vmatprep.subr.mxu0 %v507
    %1573 = vmatpush1.msra.mxu0 %v506
    %1574 = vmatprep.subr.mxu0 %v511
    %1575 = vmatpush1.msra.mxu0 %v510
    %1576 = vmatprep.subr.mxu0 %v515
    %1577 = vmatpush1.msra.mxu0 %v514
    %1578 = vmatprep.subr.mxu0 %v519
    %1579 = vmatpush1.msra.mxu0 %v518
    %1580 = vmatprep.subr.mxu0 %v523
    %1581 = vmatpush1.msra.mxu0 %v522
    %1582 = vmatprep.subr.mxu0 %v527
    %1583 = vmatpush1.msra.mxu0 %v526
    %1584 = vmatprep.subr.mxu0 %v531
    %1585 = vmatpush1.msra.mxu0 %v530
    %1586 = vmatprep.subr.mxu0 0.0
    %1587 = vmatpush1.msra.mxu0 0.0
    %1588 = vmatprep.subr.mxu0 0.0
    %1589 = vmatpush1.msra.mxu0 0.0
    %1590 = vmatprep.subr.mxu0 0.0
    %1591 = vmatpush1.msra.mxu0 0.0
    %1592 = vmatprep.subr.mxu0 0.0
    %1593 = vmatpush1.msra.mxu0 0.0
    %1594 = vmatprep.subr.mxu0 0.0
    %1595 = vmatpush1.msra.mxu0 0.0
    %1596 = vmatprep.subr.mxu0 0.0
    %1597 = vmatpush1.msra.mxu0 0.0
    %1598 = vmatprep.subr.mxu0 0.0
    %1599 = vmatpush1.msra.mxu0 0.0
    %1600 = vmatprep.subr.mxu0 0.0
    %1601 = vmatpush1.msra.mxu0 0.0
    %1602 = vmatprep.subr.mxu0 0.0
    %1603 = vmatpush1.msra.mxu0 0.0
    %1604 = vmatprep.subr.mxu0 0.0
    %1605 = vmatpush1.msra.mxu0 0.0
    %1606 = vmatprep.subr.mxu0 0.0
    %1607 = vmatpush1.msra.mxu0 0.0
    %1608 = vmatprep.subr.mxu0 0.0
    %1609 = vmatpush1.msra.mxu0 0.0
    %1610 = vmatprep.subr.mxu0 0.0
    %1611 = vmatpush1.msra.mxu0 0.0
    %1612 = vmatprep.subr.mxu0 0.0
    %1613 = vmatpush1.msra.mxu0 0.0
    %1614 = vmatprep.subr.mxu0 0.0
    %1615 = vmatpush1.msra.mxu0 0.0
    %1616 = vmatprep.subr.mxu0 0.0
    %1617 = vmatpush1.msra.mxu0 0.0
    %1618 = vmatprep.mubr.f32.mxu0 0.0
    %1619 = vmatmul.mubr.f32.gmra.mrb[0].mxu0 %v1548
    %v1620 = vpop.f32.mrb[0].mxu0
    %v1621 = vadd.f32 0.0, %v1620
    %v1622 = vpop.f32.mrb[0].mxu0
    %v1623 = vadd.f32 0.0, %v1622
    %1624 = vdwg.mxu0
    %1625 = vmatprep.subr.mxu0 %v473
    %1626 = vmatpush1.msra.mxu0 %v472
    %1627 = vmatprep.subr.mxu0 %v477
    %1628 = vmatpush1.msra.mxu0 %v476
    %1629 = vmatprep.subr.mxu0 %v481
    %1630 = vmatpush1.msra.mxu0 %v480
    %1631 = vmatprep.subr.mxu0 %v485
    %1632 = vmatpush1.msra.mxu0 %v484
    %1633 = vmatprep.subr.mxu0 %v489
    %1634 = vmatpush1.msra.mxu0 %v488
    %1635 = vmatprep.subr.mxu0 %v493
    %1636 = vmatpush1.msra.mxu0 %v492
    %1637 = vmatprep.subr.mxu0 %v497
    %1638 = vmatpush1.msra.mxu0 %v496
    %1639 = vmatprep.subr.mxu0 %v501
    %1640 = vmatpush1.msra.mxu0 %v500
    %1641 = vmatprep.subr.mxu0 %v505
    %1642 = vmatpush1.msra.mxu0 %v504
    %1643 = vmatprep.subr.mxu0 %v509
    %1644 = vmatpush1.msra.mxu0 %v508
    %1645 = vmatprep.subr.mxu0 %v513
    %1646 = vmatpush1.msra.mxu0 %v512
    %1647 = vmatprep.subr.mxu0 %v517
    %1648 = vmatpush1.msra.mxu0 %v516
    %1649 = vmatprep.subr.mxu0 %v521
    %1650 = vmatpush1.msra.mxu0 %v520
    %1651 = vmatprep.subr.mxu0 %v525
    %1652 = vmatpush1.msra.mxu0 %v524
    %1653 = vmatprep.subr.mxu0 %v529
    %1654 = vmatpush1.msra.mxu0 %v528
    %1655 = vmatprep.subr.mxu0 %v533
    %1656 = vmatpush1.msra.mxu0 %v532
    %1657 = vmatprep.subr.mxu0 0.0
    %1658 = vmatpush1.msra.mxu0 0.0
    %1659 = vmatprep.subr.mxu0 0.0
    %1660 = vmatpush1.msra.mxu0 0.0
    %1661 = vmatprep.subr.mxu0 0.0
    %1662 = vmatpush1.msra.mxu0 0.0
    %1663 = vmatprep.subr.mxu0 0.0
    %1664 = vmatpush1.msra.mxu0 0.0
    %1665 = vmatprep.subr.mxu0 0.0
    %1666 = vmatpush1.msra.mxu0 0.0
    %1667 = vmatprep.subr.mxu0 0.0
    %1668 = vmatpush1.msra.mxu0 0.0
    %1669 = vmatprep.subr.mxu0 0.0
    %1670 = vmatpush1.msra.mxu0 0.0
    %1671 = vmatprep.subr.mxu0 0.0
    %1672 = vmatpush1.msra.mxu0 0.0
    %1673 = vmatprep.subr.mxu0 0.0
    %1674 = vmatpush1.msra.mxu0 0.0
    %1675 = vmatprep.subr.mxu0 0.0
    %1676 = vmatpush1.msra.mxu0 0.0
    %1677 = vmatprep.subr.mxu0 0.0
    %1678 = vmatpush1.msra.mxu0 0.0
    %1679 = vmatprep.subr.mxu0 0.0
    %1680 = vmatpush1.msra.mxu0 0.0
    %1681 = vmatprep.subr.mxu0 0.0
    %1682 = vmatpush1.msra.mxu0 0.0
    %1683 = vmatprep.subr.mxu0 0.0
    %1684 = vmatpush1.msra.mxu0 0.0
    %1685 = vmatprep.subr.mxu0 0.0
    %1686 = vmatpush1.msra.mxu0 0.0
    %1687 = vmatprep.subr.mxu0 0.0
    %1688 = vmatpush1.msra.mxu0 0.0
    %1689 = vmatprep.mubr.f32.mxu0 0.0
    %1690 = vmatmul.mubr.f32.gmra.mrb[0].mxu0 %v1548
    %v1691 = vpop.f32.mrb[0].mxu0
    %v1692 = vadd.f32 0.0, %v1691
    %v1693 = vpop.f32.mrb[0].mxu0
    %v1694 = vadd.f32 0.0, %v1693
    %1695 = vdwg.mxu0
    %v1696 = vadd.f32 %v1550, %v1621
    %v1697 = vadd.f32 %v1551, %v1623
    %v1698 = vadd.f32 %v1552, %v1692
    %v1699 = vadd.f32 %v1553, %v1694
    %v1700 = vmul.f32 %v1696, 0.5
    %v1701 = vtanh.pop %v1700
    %v1702 = vmul.f32 %v1701, 0.5
    %v1703 = vadd.f32 %v1702, 0.5
    %v1704 = vmul.f32 %v1697, 0.5
    %v1705 = vtanh.pop %v1704
    %v1706 = vmul.f32 %v1705, 0.5
    %v1707 = vadd.f32 %v1706, 0.5
    %v1708 = vtanh.pop %v1698
    %v1709 = vmul.f32 %v1699, 0.5
    %v1710 = vtanh.pop %v1709
    %v1711 = vmul.f32 %v1710, 0.5
    %v1712 = vadd.f32 %v1711, 0.5
    %v1713 = vmul.f32 %v1707, %v1546
    %v1714 = vmul.f32 %v1703, %v1708
    %v1715 = vadd.f32 %v1713, %v1714
    %v1716 = vtanh.pop %v1715
    %v1717 = vmul.f32 %v1712, %v1716
    %1718 = vst [vmem:[#allocation4 + $0x30] sm:$0xff] %v1717
    %v1719 = vld [vmem:[#allocation5 + $0xe0] sm:$0xff]
    %v1720 = vld [vmem:[#allocation5 + $0xe8] sm:$0xff]
    %v1721 = vld [vmem:[#allocation5 + $0xf0] sm:$0xff]
    %v1722 = vld [vmem:[#allocation5 + $0xf8] sm:$0xff]
    %1723 = vmatprep.subr.mxu0 %v471
    %1724 = vmatpush1.msra.mxu0 %v470
    %1725 = vmatprep.subr.mxu0 %v475
    %1726 = vmatpush1.msra.mxu0 %v474
    %1727 = vmatprep.subr.mxu0 %v479
    %1728 = vmatpush1.msra.mxu0 %v478
    %1729 = vmatprep.subr.mxu0 %v483
    %1730 = vmatpush1.msra.mxu0 %v482
    %1731 = vmatprep.subr.mxu0 %v487
    %1732 = vmatpush1.msra.mxu0 %v486
    %1733 = vmatprep.subr.mxu0 %v491
    %1734 = vmatpush1.msra.mxu0 %v490
    %1735 = vmatprep.subr.mxu0 %v495
    %1736 = vmatpush1.msra.mxu0 %v494
    %1737 = vmatprep.subr.mxu0 %v499
    %1738 = vmatpush1.msra.mxu0 %v498
    %1739 = vmatprep.subr.mxu0 %v503
    %1740 = vmatpush1.msra.mxu0 %v502
    %1741 = vmatprep.subr.mxu0 %v507
    %1742 = vmatpush1.msra.mxu0 %v506
    %1743 = vmatprep.subr.mxu0 %v511
    %1744 = vmatpush1.msra.mxu0 %v510
    %1745 = vmatprep.subr.mxu0 %v515
    %1746 = vmatpush1.msra.mxu0 %v514
    %1747 = vmatprep.subr.mxu0 %v519
    %1748 = vmatpush1.msra.mxu0 %v518
    %1749 = vmatprep.subr.mxu0 %v523
    %1750 = vmatpush1.msra.mxu0 %v522
    %1751 = vmatprep.subr.mxu0 %v527
    %1752 = vmatpush1.msra.mxu0 %v526
    %1753 = vmatprep.subr.mxu0 %v531
    %1754 = vmatpush1.msra.mxu0 %v530
    %1755 = vmatprep.subr.mxu0 0.0
    %1756 = vmatpush1.msra.mxu0 0.0
    %1757 = vmatprep.subr.mxu0 0.0
    %1758 = vmatpush1.msra.mxu0 0.0
    %1759 = vmatprep.subr.mxu0 0.0
    %1760 = vmatpush1.msra.mxu0 0.0
    %1761 = vmatprep.subr.mxu0 0.0
    %1762 = vmatpush1.msra.mxu0 0.0
    %1763 = vmatprep.subr.mxu0 0.0
    %1764 = vmatpush1.msra.mxu0 0.0
    %1765 = vmatprep.subr.mxu0 0.0
    %1766 = vmatpush1.msra.mxu0 0.0
    %1767 = vmatprep.subr.mxu0 0.0
    %1768 = vmatpush1.msra.mxu0 0.0
    %1769 = vmatprep.subr.mxu0 0.0
    %1770 = vmatpush1.msra.mxu0 0.0
    %1771 = vmatprep.subr.mxu0 0.0
    %1772 = vmatpush1.msra.mxu0 0.0
    %1773 = vmatprep.subr.mxu0 0.0
    %1774 = vmatpush1.msra.mxu0 0.0
    %1775 = vmatprep.subr.mxu0 0.0
    %1776 = vmatpush1.msra.mxu0 0.0
    %1777 = vmatprep.subr.mxu0 0.0
    %1778 = vmatpush1.msra.mxu0 0.0
    %1779 = vmatprep.subr.mxu0 0.0
    %1780 = vmatpush1.msra.mxu0 0.0
    %1781 = vmatprep.subr.mxu0 0.0
    %1782 = vmatpush1.msra.mxu0 0.0
    %1783 = vmatprep.subr.mxu0 0.0
    %1784 = vmatpush1.msra.mxu0 0.0
    %1785 = vmatprep.subr.mxu0 0.0
    %1786 = vmatpush1.msra.mxu0 0.0
    %1787 = vmatprep.mubr.f32.mxu0 0.0
    %1788 = vmatmul.mubr.f32.gmra.mrb[0].mxu0 %v1717
    %v1789 = vpop.f32.mrb[0].mxu0
    %v1790 = vadd.f32 0.0, %v1789
    %v1791 = vpop.f32.mrb[0].mxu0
    %v1792 = vadd.f32 0.0, %v1791
    %1793 = vdwg.mxu0
    %1794 = vmatprep.subr.mxu0 %v473
    %1795 = vmatpush1.msra.mxu0 %v472
    %1796 = vmatprep.subr.mxu0 %v477
    %1797 = vmatpush1.msra.mxu0 %v476
    %1798 = vmatprep.subr.mxu0 %v481
    %1799 = vmatpush1.msra.mxu0 %v480
    %1800 = vmatprep.subr.mxu0 %v485
    %1801 = vmatpush1.msra.mxu0 %v484
    %1802 = vmatprep.subr.mxu0 %v489
    %1803 = vmatpush1.msra.mxu0 %v488
    %1804 = vmatprep.subr.mxu0 %v493
    %1805 = vmatpush1.msra.mxu0 %v492
    %1806 = vmatprep.subr.mxu0 %v497
    %1807 = vmatpush1.msra.mxu0 %v496
    %1808 = vmatprep.subr.mxu0 %v501
    %1809 = vmatpush1.msra.mxu0 %v500
    %1810 = vmatprep.subr.mxu0 %v505
    %1811 = vmatpush1.msra.mxu0 %v504
    %1812 = vmatprep.subr.mxu0 %v509
    %1813 = vmatpush1.msra.mxu0 %v508
    %1814 = vmatprep.subr.mxu0 %v513
    %1815 = vmatpush1.msra.mxu0 %v512
    %1816 = vmatprep.subr.mxu0 %v517
    %1817 = vmatpush1.msra.mxu0 %v516
    %1818 = vmatprep.subr.mxu0 %v521
    %1819 = vmatpush1.msra.mxu0 %v520
    %1820 = vmatprep.subr.mxu0 %v525
    %1821 = vmatpush1.msra.mxu0 %v524
    %1822 = vmatprep.subr.mxu0 %v529
    %1823 = vmatpush1.msra.mxu0 %v528
    %1824 = vmatprep.subr.mxu0 %v533
    %1825 = vmatpush1.msra.mxu0 %v532
    %1826 = vmatprep.subr.mxu0 0.0
    %1827 = vmatpush1.msra.mxu0 0.0
    %1828 = vmatprep.subr.mxu0 0.0
    %1829 = vmatpush1.msra.mxu0 0.0
    %1830 = vmatprep.subr.mxu0 0.0
    %1831 = vmatpush1.msra.mxu0 0.0
    %1832 = vmatprep.subr.mxu0 0.0
    %1833 = vmatpush1.msra.mxu0 0.0
    %1834 = vmatprep.subr.mxu0 0.0
    %1835 = vmatpush1.msra.mxu0 0.0
    %1836 = vmatprep.subr.mxu0 0.0
    %1837 = vmatpush1.msra.mxu0 0.0
    %1838 = vmatprep.subr.mxu0 0.0
    %1839 = vmatpush1.msra.mxu0 0.0
    %1840 = vmatprep.subr.mxu0 0.0
    %1841 = vmatpush1.msra.mxu0 0.0
    %1842 = vmatprep.subr.mxu0 0.0
    %1843 = vmatpush1.msra.mxu0 0.0
    %1844 = vmatprep.subr.mxu0 0.0
    %1845 = vmatpush1.msra.mxu0 0.0
    %1846 = vmatprep.subr.mxu0 0.0
    %1847 = vmatpush1.msra.mxu0 0.0
    %1848 = vmatprep.subr.mxu0 0.0
    %1849 = vmatpush1.msra.mxu0 0.0
    %1850 = vmatprep.subr.mxu0 0.0
    %1851 = vmatpush1.msra.mxu0 0.0
    %1852 = vmatprep.subr.mxu0 0.0
    %1853 = vmatpush1.msra.mxu0 0.0
    %1854 = vmatprep.subr.mxu0 0.0
    %1855 = vmatpush1.msra.mxu0 0.0
    %1856 = vmatprep.subr.mxu0 0.0
    %1857 = vmatpush1.msra.mxu0 0.0
    %1858 = vmatprep.mubr.f32.mxu0 0.0
    %1859 = vmatmul.mubr.f32.gmra.mrb[0].mxu0 %v1717
    %v1860 = vpop.f32.mrb[0].mxu0
    %v1861 = vadd.f32 0.0, %v1860
    %v1862 = vpop.f32.mrb[0].mxu0
    %v1863 = vadd.f32 0.0, %v1862
    %1864 = vdwg.mxu0
    %v1865 = vadd.f32 %v1719, %v1790
    %v1866 = vadd.f32 %v1720, %v1792
    %v1867 = vadd.f32 %v1721, %v1861
    %v1868 = vadd.f32 %v1722, %v1863
    %v1869 = vmul.f32 %v1865, 0.5
    %v1870 = vtanh.pop %v1869
    %v1871 = vmul.f32 %v1870, 0.5
    %v1872 = vadd.f32 %v1871, 0.5
    %v1873 = vmul.f32 %v1866, 0.5
    %v1874 = vtanh.pop %v1873
    %v1875 = vmul.f32 %v1874, 0.5
    %v1876 = vadd.f32 %v1875, 0.5
    %v1877 = vtanh.pop %v1867
    %v1878 = vmul.f32 %v1868, 0.5
    %v1879 = vtanh.pop %v1878
    %v1880 = vmul.f32 %v1879, 0.5
    %v1881 = vadd.f32 %v1880, 0.5
    %v1882 = vmul.f32 %v1876, %v1715
    %v1883 = vmul.f32 %v1872, %v1877
    %v1884 = vadd.f32 %v1882, %v1883
    %v1885 = vtanh.pop %v1884
    %v1886 = vmul.f32 %v1881, %v1885
    %1887 = vst [vmem:[#allocation4 + $0x38] sm:$0xff] %v1886
    %1888 = vst [vmem:[#allocation2] sm:$0xff] %v1886
    %1889 = vst [vmem:[#allocation3] sm:$0xff] %v1884
    %v1890 = vld [vmem:[#allocation4] sm:$0xff]
    %v1891 = vld [vmem:[#allocation4 + $0x8] sm:$0xff]
    %v1892 = vld [vmem:[#allocation4 + $0x10] sm:$0xff]
    %v1893 = vld [vmem:[#allocation4 + $0x18] sm:$0xff]
    %v1894 = vld [vmem:[#allocation4 + $0x20] sm:$0xff]
    %v1895 = vld [vmem:[#allocation4 + $0x28] sm:$0xff]
    %v1896 = vld [vmem:[#allocation4 + $0x30] sm:$0xff]
    %v1897 = vld [vmem:[#allocation4 + $0x38] sm:$0xff]
    %v1898 = vld [vmem:[#allocation11] sm:$0xff]
    %v1899 = vld [vmem:[#allocation11 + $0x8] sm:$0xff]
    %v1900 = vld [vmem:[#allocation11 + $0x10] sm:$0xff]
    %v1901 = vld [vmem:[#allocation11 + $0x18] sm:$0xff]
    %v1902 = vld [vmem:[#allocation11 + $0x20] sm:$0xff]
    %v1903 = vld [vmem:[#allocation11 + $0x28] sm:$0xff]
    %v1904 = vld [vmem:[#allocation11 + $0x30] sm:$0xff]
    %v1905 = vld [vmem:[#allocation11 + $0x38] sm:$0xff]
    %v1906 = vld [vmem:[#allocation11 + $0x40] sm:$0xff]
    %v1907 = vld [vmem:[#allocation11 + $0x48] sm:$0xff]
    %v1908 = vld [vmem:[#allocation11 + $0x50] sm:$0xff]
    %v1909 = vld [vmem:[#allocation11 + $0x58] sm:$0xff]
    %v1910 = vld [vmem:[#allocation11 + $0x60] sm:$0xff]
    %v1911 = vld [vmem:[#allocation11 + $0x68] sm:$0xff]
    %v1912 = vld [vmem:[#allocation11 + $0x70] sm:$0xff]
    %v1913 = vld [vmem:[#allocation11 + $0x78] sm:$0xff]
    %v1914 = vld [vmem:[#allocation11 + $0x80] sm:$0xff]
    %v1915 = vld [vmem:[#allocation11 + $0x88] sm:$0xff]
    %v1916 = vld [vmem:[#allocation11 + $0x90] sm:$0xff]
    %v1917 = vld [vmem:[#allocation11 + $0x98] sm:$0xff]
    %v1918 = vld [vmem:[#allocation11 + $0xa0] sm:$0xff]
    %v1919 = vld [vmem:[#allocation11 + $0xa8] sm:$0xff]
    %v1920 = vld [vmem:[#allocation11 + $0xb0] sm:$0xff]
    %v1921 = vld [vmem:[#allocation11 + $0xb8] sm:$0xff]
    %v1922 = vld [vmem:[#allocation11 + $0xc0] sm:$0xff]
    %v1923 = vld [vmem:[#allocation11 + $0xc8] sm:$0xff]
    %v1924 = vld [vmem:[#allocation11 + $0xd0] sm:$0xff]
    %v1925 = vld [vmem:[#allocation11 + $0xd8] sm:$0xff]
    %v1926 = vld [vmem:[#allocation11 + $0xe0] sm:$0xff]
    %v1927 = vld [vmem:[#allocation11 + $0xe8] sm:$0xff]
    %v1928 = vld [vmem:[#allocation11 + $0xf0] sm:$0xff]
    %v1929 = vld [vmem:[#allocation11 + $0xf8] sm:$0xff]
    %v1930 = vld [vmem:[#allocation11 + $0x100] sm:$0xff]
    %v1931 = vld [vmem:[#allocation11 + $0x108] sm:$0xff]
    %v1932 = vld [vmem:[#allocation11 + $0x110] sm:$0xff]
    %v1933 = vld [vmem:[#allocation11 + $0x118] sm:$0xff]
    %v1934 = vld [vmem:[#allocation11 + $0x120] sm:$0xff]
    %v1935 = vld [vmem:[#allocation11 + $0x128] sm:$0xff]
    %v1936 = vld [vmem:[#allocation11 + $0x130] sm:$0xff]
    %v1937 = vld [vmem:[#allocation11 + $0x138] sm:$0xff]
    %v1938 = vld [vmem:[#allocation11 + $0x140] sm:$0xff]
    %v1939 = vld [vmem:[#allocation11 + $0x148] sm:$0xff]
    %v1940 = vld [vmem:[#allocation11 + $0x150] sm:$0xff]
    %v1941 = vld [vmem:[#allocation11 + $0x158] sm:$0xff]
    %v1942 = vld [vmem:[#allocation11 + $0x160] sm:$0xff]
    %v1943 = vld [vmem:[#allocation11 + $0x168] sm:$0xff]
    %v1944 = vld [vmem:[#allocation11 + $0x170] sm:$0xff]
    %v1945 = vld [vmem:[#allocation11 + $0x178] sm:$0xff]
    %v1946 = vld [vmem:[#allocation11 + $0x180] sm:$0xff]
    %v1947 = vld [vmem:[#allocation11 + $0x188] sm:$0xff]
    %v1948 = vld [vmem:[#allocation11 + $0x190] sm:$0xff]
    %v1949 = vld [vmem:[#allocation11 + $0x198] sm:$0xff]
    %v1950 = vld [vmem:[#allocation11 + $0x1a0] sm:$0xff]
    %v1951 = vld [vmem:[#allocation11 + $0x1a8] sm:$0xff]
    %v1952 = vld [vmem:[#allocation11 + $0x1b0] sm:$0xff]
    %v1953 = vld [vmem:[#allocation11 + $0x1b8] sm:$0xff]
    %v1954 = vld [vmem:[#allocation11 + $0x1c0] sm:$0xff]
    %v1955 = vld [vmem:[#allocation11 + $0x1c8] sm:$0xff]
    %v1956 = vld [vmem:[#allocation11 + $0x1d0] sm:$0xff]
    %v1957 = vld [vmem:[#allocation11 + $0x1d8] sm:$0xff]
    %v1958 = vld [vmem:[#allocation11 + $0x1e0] sm:$0xff]
    %v1959 = vld [vmem:[#allocation11 + $0x1e8] sm:$0xff]
    %v1960 = vld [vmem:[#allocation11 + $0x1f0] sm:$0xff]
    %v1961 = vld [vmem:[#allocation11 + $0x1f8] sm:$0xff]
    %v1962 = vld [vmem:[#allocation14] sm:$0xf]
    %v1964 = vlaneseq
    %v1965 = vshrl.u32 %v1964, 7
    %v1966 = vsub.s32 0, %v1965
    %v1967 = vrot.slane %v1962, %v1966
    %v1968 = vlaneseq
    %v1969 = vshrl.u32 %v1968, 7
    %v1970 = vsub.s32 1, %v1969
    %v1971 = vrot.slane %v1962, %v1970
    %v1972 = vlaneseq
    %v1973 = vshrl.u32 %v1972, 7
    %v1974 = vsub.s32 2, %v1973
    %v1975 = vrot.slane %v1962, %v1974
    %v1976 = vlaneseq
    %v1977 = vshrl.u32 %v1976, 7
    %v1978 = vsub.s32 3, %v1977
    %v1979 = vrot.slane %v1962, %v1978
    %1984 = vmatprep.subr.mxu0 %v1899
    %1985 = vmatpush1.msra.mxu0 %v1898
    %1986 = vmatprep.subr.mxu0 %v1903
    %1987 = vmatpush1.msra.mxu0 %v1902
    %1988 = vmatprep.subr.mxu0 %v1907
    %1989 = vmatpush1.msra.mxu0 %v1906
    %1990 = vmatprep.subr.mxu0 %v1911
    %1991 = vmatpush1.msra.mxu0 %v1910
    %1992 = vmatprep.subr.mxu0 %v1915
    %1993 = vmatpush1.msra.mxu0 %v1914
    %1994 = vmatprep.subr.mxu0 %v1919
    %1995 = vmatpush1.msra.mxu0 %v1918
    %1996 = vmatprep.subr.mxu0 %v1923
    %1997 = vmatpush1.msra.mxu0 %v1922
    %1998 = vmatprep.subr.mxu0 %v1927
    %1999 = vmatpush1.msra.mxu0 %v1926
    %2000 = vmatprep.subr.mxu0 %v1931
    %2001 = vmatpush1.msra.mxu0 %v1930
    %2002 = vmatprep.subr.mxu0 %v1935
    %2003 = vmatpush1.msra.mxu0 %v1934
    %2004 = vmatprep.subr.mxu0 %v1939
    %2005 = vmatpush1.msra.mxu0 %v1938
    %2006 = vmatprep.subr.mxu0 %v1943
    %2007 = vmatpush1.msra.mxu0 %v1942
    %2008 = vmatprep.subr.mxu0 %v1947
    %2009 = vmatpush1.msra.mxu0 %v1946
    %2010 = vmatprep.subr.mxu0 %v1951
    %2011 = vmatpush1.msra.mxu0 %v1950
    %2012 = vmatprep.subr.mxu0 %v1955
    %2013 = vmatpush1.msra.mxu0 %v1954
    %2014 = vmatprep.subr.mxu0 %v1959
    %2015 = vmatpush1.msra.mxu0 %v1958
    %2016 = vmatprep.subr.mxu0 0.0
    %2017 = vmatpush1.msra.mxu0 0.0
    %2018 = vmatprep.subr.mxu0 0.0
    %2019 = vmatpush1.msra.mxu0 0.0
    %2020 = vmatprep.subr.mxu0 0.0
    %2021 = vmatpush1.msra.mxu0 0.0
    %2022 = vmatprep.subr.mxu0 0.0
    %2023 = vmatpush1.msra.mxu0 0.0
    %2024 = vmatprep.subr.mxu0 0.0
    %2025 = vmatpush1.msra.mxu0 0.0
    %2026 = vmatprep.subr.mxu0 0.0
    %2027 = vmatpush1.msra.mxu0 0.0
    %2028 = vmatprep.subr.mxu0 0.0
    %2029 = vmatpush1.msra.mxu0 0.0
    %2030 = vmatprep.subr.mxu0 0.0
    %2031 = vmatpush1.msra.mxu0 0.0
    %2032 = vmatprep.subr.mxu0 0.0
    %2033 = vmatpush1.msra.mxu0 0.0
    %2034 = vmatprep.subr.mxu0 0.0
    %2035 = vmatpush1.msra.mxu0 0.0
    %2036 = vmatprep.subr.mxu0 0.0
    %2037 = vmatpush1.msra.mxu0 0.0
    %2038 = vmatprep.subr.mxu0 0.0
    %2039 = vmatpush1.msra.mxu0 0.0
    %2040 = vmatprep.subr.mxu0 0.0
    %2041 = vmatpush1.msra.mxu0 0.0
    %2042 = vmatprep.subr.mxu0 0.0
    %2043 = vmatpush1.msra.mxu0 0.0
    %2044 = vmatprep.subr.mxu0 0.0
    %2045 = vmatpush1.msra.mxu0 0.0
    %2046 = vmatprep.subr.mxu0 0.0
    %2047 = vmatpush1.msra.mxu0 0.0
    %2048 = vmatprep.mubr.f32.mxu0 0.0
    %2049 = vmatmul.mubr.f32.gmra.mrb[0].mxu0 %v1890
    %v2050 = vpop.f32.mrb[0].mxu0
    %v2051 = vadd.f32 %v1967, %v2050
    %v2052 = vpop.f32.mrb[0].mxu0
    %v2053 = vadd.f32 %v1971, %v2052
    %2054 = vmatprep.mubr.f32.mxu0 0.0
    %2055 = vmatmul.mubr.f32.gmra.mrb[0].mxu0 %v1891
    %v2056 = vpop.f32.mrb[0].mxu0
    %v2057 = vadd.f32 %v1967, %v2056
    %v2058 = vpop.f32.mrb[0].mxu0
    %v2059 = vadd.f32 %v1971, %v2058
    %2060 = vmatprep.mubr.f32.mxu0 0.0
    %2061 = vmatmul.mubr.f32.gmra.mrb[0].mxu0 %v1892
    %v2062 = vpop.f32.mrb[0].mxu0
    %v2063 = vadd.f32 %v1967, %v2062
    %v2064 = vpop.f32.mrb[0].mxu0
    %v2065 = vadd.f32 %v1971, %v2064
    %2066 = vmatprep.mubr.f32.mxu0 0.0
    %2067 = vmatmul.mubr.f32.gmra.mrb[0].mxu0 %v1893
    %v2068 = vpop.f32.mrb[0].mxu0
    %v2069 = vadd.f32 %v1967, %v2068
    %v2070 = vpop.f32.mrb[0].mxu0
    %v2071 = vadd.f32 %v1971, %v2070
    %2072 = vmatprep.mubr.f32.mxu0 0.0
    %2073 = vmatmul.mubr.f32.gmra.mrb[0].mxu0 %v1894
    %v2074 = vpop.f32.mrb[0].mxu0
    %v2075 = vadd.f32 %v1967, %v2074
    %v2076 = vpop.f32.mrb[0].mxu0
    %v2077 = vadd.f32 %v1971, %v2076
    %2078 = vmatprep.mubr.f32.mxu0 0.0
    %2079 = vmatmul.mubr.f32.gmra.mrb[0].mxu0 %v1895
    %v2080 = vpop.f32.mrb[0].mxu0
    %v2081 = vadd.f32 %v1967, %v2080
    %v2082 = vpop.f32.mrb[0].mxu0
    %v2083 = vadd.f32 %v1971, %v2082
    %2084 = vmatprep.mubr.f32.mxu0 0.0
    %2085 = vmatmul.mubr.f32.gmra.mrb[0].mxu0 %v1896
    %v2086 = vpop.f32.mrb[0].mxu0
    %v2087 = vadd.f32 %v1967, %v2086
    %v2088 = vpop.f32.mrb[0].mxu0
    %v2089 = vadd.f32 %v1971, %v2088
    %2090 = vmatprep.mubr.f32.mxu0 0.0
    %2091 = vmatmul.mubr.f32.gmra.mrb[0].mxu0 %v1897
    %v2092 = vpop.f32.mrb[0].mxu0
    %v2093 = vadd.f32 %v1967, %v2092
    %v2094 = vpop.f32.mrb[0].mxu0
    %v2095 = vadd.f32 %v1971, %v2094
    %2096 = vdwg.mxu0
    %2097 = vmatprep.subr.mxu0 %v1901
    %2098 = vmatpush1.msra.mxu0 %v1900
    %2099 = vmatprep.subr.mxu0 %v1905
    %2100 = vmatpush1.msra.mxu0 %v1904
    %2101 = vmatprep.subr.mxu0 %v1909
    %2102 = vmatpush1.msra.mxu0 %v1908
    %2103 = vmatprep.subr.mxu0 %v1913
    %2104 = vmatpush1.msra.mxu0 %v1912
    %2105 = vmatprep.subr.mxu0 %v1917
    %2106 = vmatpush1.msra.mxu0 %v1916
    %2107 = vmatprep.subr.mxu0 %v1921
    %2108 = vmatpush1.msra.mxu0 %v1920
    %2109 = vmatprep.subr.mxu0 %v1925
    %2110 = vmatpush1.msra.mxu0 %v1924
    %2111 = vmatprep.subr.mxu0 %v1929
    %2112 = vmatpush1.msra.mxu0 %v1928
    %2113 = vmatprep.subr.mxu0 %v1933
    %2114 = vmatpush1.msra.mxu0 %v1932
    %2115 = vmatprep.subr.mxu0 %v1937
    %2116 = vmatpush1.msra.mxu0 %v1936
    %2117 = vmatprep.subr.mxu0 %v1941
    %2118 = vmatpush1.msra.mxu0 %v1940
    %2119 = vmatprep.subr.mxu0 %v1945
    %2120 = vmatpush1.msra.mxu0 %v1944
    %2121 = vmatprep.subr.mxu0 %v1949
    %2122 = vmatpush1.msra.mxu0 %v1948
    %2123 = vmatprep.subr.mxu0 %v1953
    %2124 = vmatpush1.msra.mxu0 %v1952
    %2125 = vmatprep.subr.mxu0 %v1957
    %2126 = vmatpush1.msra.mxu0 %v1956
    %2127 = vmatprep.subr.mxu0 %v1961
    %2128 = vmatpush1.msra.mxu0 %v1960
    %2129 = vmatprep.subr.mxu0 0.0
    %2130 = vmatpush1.msra.mxu0 0.0
    %2131 = vmatprep.subr.mxu0 0.0
    %2132 = vmatpush1.msra.mxu0 0.0
    %2133 = vmatprep.subr.mxu0 0.0
    %2134 = vmatpush1.msra.mxu0 0.0
    %2135 = vmatprep.subr.mxu0 0.0
    %2136 = vmatpush1.msra.mxu0 0.0
    %2137 = vmatprep.subr.mxu0 0.0
    %2138 = vmatpush1.msra.mxu0 0.0
    %2139 = vmatprep.subr.mxu0 0.0
    %2140 = vmatpush1.msra.mxu0 0.0
    %2141 = vmatprep.subr.mxu0 0.0
    %2142 = vmatpush1.msra.mxu0 0.0
    %2143 = vmatprep.subr.mxu0 0.0
    %2144 = vmatpush1.msra.mxu0 0.0
    %2145 = vmatprep.subr.mxu0 0.0
    %2146 = vmatpush1.msra.mxu0 0.0
    %2147 = vmatprep.subr.mxu0 0.0
    %2148 = vmatpush1.msra.mxu0 0.0
    %2149 = vmatprep.subr.mxu0 0.0
    %2150 = vmatpush1.msra.mxu0 0.0
    %2151 = vmatprep.subr.mxu0 0.0
    %2152 = vmatpush1.msra.mxu0 0.0
    %2153 = vmatprep.subr.mxu0 0.0
    %2154 = vmatpush1.msra.mxu0 0.0
    %2155 = vmatprep.subr.mxu0 0.0
    %2156 = vmatpush1.msra.mxu0 0.0
    %2157 = vmatprep.subr.mxu0 0.0
    %2158 = vmatpush1.msra.mxu0 0.0
    %2159 = vmatprep.subr.mxu0 0.0
    %2160 = vmatpush1.msra.mxu0 0.0
    %2161 = vmatprep.mubr.f32.mxu0 0.0
    %2162 = vmatmul.mubr.f32.gmra.mrb[0].mxu0 %v1890
    %v2163 = vpop.f32.mrb[0].mxu0
    %v2164 = vadd.f32 %v1975, %v2163
    %v2165 = vpop.f32.mrb[0].mxu0
    %v2166 = vadd.f32 %v1979, %v2165
    %2167 = vmatprep.mubr.f32.mxu0 0.0
    %2168 = vmatmul.mubr.f32.gmra.mrb[0].mxu0 %v1891
    %v2169 = vpop.f32.mrb[0].mxu0
    %v2170 = vadd.f32 %v1975, %v2169
    %v2171 = vpop.f32.mrb[0].mxu0
    %v2172 = vadd.f32 %v1979, %v2171
    %2173 = vmatprep.mubr.f32.mxu0 0.0
    %2174 = vmatmul.mubr.f32.gmra.mrb[0].mxu0 %v1892
    %v2175 = vpop.f32.mrb[0].mxu0
    %v2176 = vadd.f32 %v1975, %v2175
    %v2177 = vpop.f32.mrb[0].mxu0
    %v2178 = vadd.f32 %v1979, %v2177
    %2179 = vmatprep.mubr.f32.mxu0 0.0
    %2180 = vmatmul.mubr.f32.gmra.mrb[0].mxu0 %v1893
    %v2181 = vpop.f32.mrb[0].mxu0
    %v2182 = vadd.f32 %v1975, %v2181
    %v2183 = vpop.f32.mrb[0].mxu0
    %v2184 = vadd.f32 %v1979, %v2183
    %2185 = vmatprep.mubr.f32.mxu0 0.0
    %2186 = vmatmul.mubr.f32.gmra.mrb[0].mxu0 %v1894
    %v2187 = vpop.f32.mrb[0].mxu0
    %v2188 = vadd.f32 %v1975, %v2187
    %v2189 = vpop.f32.mrb[0].mxu0
    %v2190 = vadd.f32 %v1979, %v2189
    %2191 = vmatprep.mubr.f32.mxu0 0.0
    %2192 = vmatmul.mubr.f32.gmra.mrb[0].mxu0 %v1895
    %v2193 = vpop.f32.mrb[0].mxu0
    %v2194 = vadd.f32 %v1975, %v2193
    %v2195 = vpop.f32.mrb[0].mxu0
    %v2196 = vadd.f32 %v1979, %v2195
    %2197 = vmatprep.mubr.f32.mxu0 0.0
    %2198 = vmatmul.mubr.f32.gmra.mrb[0].mxu0 %v1896
    %v2199 = vpop.f32.mrb[0].mxu0
    %v2200 = vadd.f32 %v1975, %v2199
    %v2201 = vpop.f32.mrb[0].mxu0
    %v2202 = vadd.f32 %v1979, %v2201
    %2203 = vmatprep.mubr.f32.mxu0 0.0
    %2204 = vmatmul.mubr.f32.gmra.mrb[0].mxu0 %v1897
    %v2205 = vpop.f32.mrb[0].mxu0
    %v2206 = vadd.f32 %v1975, %v2205
    %v2207 = vpop.f32.mrb[0].mxu0
    %v2208 = vadd.f32 %v1979, %v2207
    %2209 = vdwg.mxu0
    %2210 = vst [vmem:[#allocation5] sm:$0xff] %v2051
    %2211 = vst [vmem:[#allocation5 + $0x8] sm:$0xff] %v2053
    %2212 = vst [vmem:[#allocation5 + $0x10] sm:$0xff] %v2164
    %2213 = vst [vmem:[#allocation5 + $0x18] sm:$0xff] %v2166
    %2214 = vst [vmem:[#allocation5 + $0x20] sm:$0xff] %v2057
    %2215 = vst [vmem:[#allocation5 + $0x28] sm:$0xff] %v2059
    %2216 = vst [vmem:[#allocation5 + $0x30] sm:$0xff] %v2170
    %2217 = vst [vmem:[#allocation5 + $0x38] sm:$0xff] %v2172
    %2218 = vst [vmem:[#allocation5 + $0x40] sm:$0xff] %v2063
    %2219 = vst [vmem:[#allocation5 + $0x48] sm:$0xff] %v2065
    %2220 = vst [vmem:[#allocation5 + $0x50] sm:$0xff] %v2176
    %2221 = vst [vmem:[#allocation5 + $0x58] sm:$0xff] %v2178
    %2222 = vst [vmem:[#allocation5 + $0x60] sm:$0xff] %v2069
    %2223 = vst [vmem:[#allocation5 + $0x68] sm:$0xff] %v2071
    %2224 = vst [vmem:[#allocation5 + $0x70] sm:$0xff] %v2182
    %2225 = vst [vmem:[#allocation5 + $0x78] sm:$0xff] %v2184
    %2226 = vst [vmem:[#allocation5 + $0x80] sm:$0xff] %v2075
    %2227 = vst [vmem:[#allocation5 + $0x88] sm:$0xff] %v2077
    %2228 = vst [vmem:[#allocation5 + $0x90] sm:$0xff] %v2188
    %2229 = vst [vmem:[#allocation5 + $0x98] sm:$0xff] %v2190
    %2230 = vst [vmem:[#allocation5 + $0xa0] sm:$0xff] %v2081
    %2231 = vst [vmem:[#allocation5 + $0xa8] sm:$0xff] %v2083
    %2232 = vst [vmem:[#allocation5 + $0xb0] sm:$0xff] %v2194
    %2233 = vst [vmem:[#allocation5 + $0xb8] sm:$0xff] %v2196
    %2234 = vst [vmem:[#allocation5 + $0xc0] sm:$0xff] %v2087
    %2235 = vst [vmem:[#allocation5 + $0xc8] sm:$0xff] %v2089
    %2236 = vst [vmem:[#allocation5 + $0xd0] sm:$0xff] %v2200
    %2237 = vst [vmem:[#allocation5 + $0xd8] sm:$0xff] %v2202
    %2238 = vst [vmem:[#allocation5 + $0xe0] sm:$0xff] %v2093
    %2239 = vst [vmem:[#allocation5 + $0xe8] sm:$0xff] %v2095
    %2240 = vst [vmem:[#allocation5 + $0xf0] sm:$0xff] %v2206
    %2241 = vst [vmem:[#allocation5 + $0xf8] sm:$0xff] %v2208
    %v2242 = vld [vmem:[#allocation13] sm:$0xff]
    %v2243 = vld [vmem:[#allocation13 + $0x8] sm:$0xff]
    %v2244 = vld [vmem:[#allocation13 + $0x10] sm:$0xff]
    %v2245 = vld [vmem:[#allocation13 + $0x18] sm:$0xff]
    %v2246 = vld [vmem:[#allocation13 + $0x20] sm:$0xff]
    %v2247 = vld [vmem:[#allocation13 + $0x28] sm:$0xff]
    %v2248 = vld [vmem:[#allocation13 + $0x30] sm:$0xff]
    %v2249 = vld [vmem:[#allocation13 + $0x38] sm:$0xff]
    %v2250 = vld [vmem:[#allocation13 + $0x40] sm:$0xff]
    %v2251 = vld [vmem:[#allocation13 + $0x48] sm:$0xff]
    %v2252 = vld [vmem:[#allocation13 + $0x50] sm:$0xff]
    %v2253 = vld [vmem:[#allocation13 + $0x58] sm:$0xff]
    %v2254 = vld [vmem:[#allocation13 + $0x60] sm:$0xff]
    %v2255 = vld [vmem:[#allocation13 + $0x68] sm:$0xff]
    %v2256 = vld [vmem:[#allocation13 + $0x70] sm:$0xff]
    %v2257 = vld [vmem:[#allocation13 + $0x78] sm:$0xff]
    %v2258 = vld [vmem:[#allocation13 + $0x80] sm:$0xff]
    %v2259 = vld [vmem:[#allocation13 + $0x88] sm:$0xff]
    %v2260 = vld [vmem:[#allocation13 + $0x90] sm:$0xff]
    %v2261 = vld [vmem:[#allocation13 + $0x98] sm:$0xff]
    %v2262 = vld [vmem:[#allocation13 + $0xa0] sm:$0xff]
    %v2263 = vld [vmem:[#allocation13 + $0xa8] sm:$0xff]
    %v2264 = vld [vmem:[#allocation13 + $0xb0] sm:$0xff]
    %v2265 = vld [vmem:[#allocation13 + $0xb8] sm:$0xff]
    %v2266 = vld [vmem:[#allocation13 + $0xc0] sm:$0xff]
    %v2267 = vld [vmem:[#allocation13 + $0xc8] sm:$0xff]
    %v2268 = vld [vmem:[#allocation13 + $0xd0] sm:$0xff]
    %v2269 = vld [vmem:[#allocation13 + $0xd8] sm:$0xff]
    %v2270 = vld [vmem:[#allocation13 + $0xe0] sm:$0xff]
    %v2271 = vld [vmem:[#allocation13 + $0xe8] sm:$0xff]
    %v2272 = vld [vmem:[#allocation13 + $0xf0] sm:$0xff]
    %v2273 = vld [vmem:[#allocation13 + $0xf8] sm:$0xff]
    %v2274 = vld [vmem:[#allocation13 + $0x100] sm:$0xff]
    %v2275 = vld [vmem:[#allocation13 + $0x108] sm:$0xff]
    %v2276 = vld [vmem:[#allocation13 + $0x110] sm:$0xff]
    %v2277 = vld [vmem:[#allocation13 + $0x118] sm:$0xff]
    %v2278 = vld [vmem:[#allocation13 + $0x120] sm:$0xff]
    %v2279 = vld [vmem:[#allocation13 + $0x128] sm:$0xff]
    %v2280 = vld [vmem:[#allocation13 + $0x130] sm:$0xff]
    %v2281 = vld [vmem:[#allocation13 + $0x138] sm:$0xff]
    %v2282 = vld [vmem:[#allocation13 + $0x140] sm:$0xff]
    %v2283 = vld [vmem:[#allocation13 + $0x148] sm:$0xff]
    %v2284 = vld [vmem:[#allocation13 + $0x150] sm:$0xff]
    %v2285 = vld [vmem:[#allocation13 + $0x158] sm:$0xff]
    %v2286 = vld [vmem:[#allocation13 + $0x160] sm:$0xff]
    %v2287 = vld [vmem:[#allocation13 + $0x168] sm:$0xff]
    %v2288 = vld [vmem:[#allocation13 + $0x170] sm:$0xff]
    %v2289 = vld [vmem:[#allocation13 + $0x178] sm:$0xff]
    %v2290 = vld [vmem:[#allocation13 + $0x180] sm:$0xff]
    %v2291 = vld [vmem:[#allocation13 + $0x188] sm:$0xff]
    %v2292 = vld [vmem:[#allocation13 + $0x190] sm:$0xff]
    %v2293 = vld [vmem:[#allocation13 + $0x198] sm:$0xff]
    %v2294 = vld [vmem:[#allocation13 + $0x1a0] sm:$0xff]
    %v2295 = vld [vmem:[#allocation13 + $0x1a8] sm:$0xff]
    %v2296 = vld [vmem:[#allocation13 + $0x1b0] sm:$0xff]
    %v2297 = vld [vmem:[#allocation13 + $0x1b8] sm:$0xff]
    %v2298 = vld [vmem:[#allocation13 + $0x1c0] sm:$0xff]
    %v2299 = vld [vmem:[#allocation13 + $0x1c8] sm:$0xff]
    %v2300 = vld [vmem:[#allocation13 + $0x1d0] sm:$0xff]
    %v2301 = vld [vmem:[#allocation13 + $0x1d8] sm:$0xff]
    %v2302 = vld [vmem:[#allocation13 + $0x1e0] sm:$0xff]
    %v2303 = vld [vmem:[#allocation13 + $0x1e8] sm:$0xff]
    %v2304 = vld [vmem:[#allocation13 + $0x1f0] sm:$0xff]
    %v2305 = vld [vmem:[#allocation13 + $0x1f8] sm:$0xff]
    %s2306 = scalar_lea.vmem [#allocation2], 8
    %v2307 = vld [vmem:[%s2306] sm:$0xff]
    %s2308 = scalar_lea.vmem [#allocation3], 8
    %v2309 = vld [vmem:[%s2308] sm:$0xff]
    %v2310 = vld [vmem:[#allocation5] sm:$0xff]
    %v2311 = vld [vmem:[#allocation5 + $0x8] sm:$0xff]
    %v2312 = vld [vmem:[#allocation5 + $0x10] sm:$0xff]
    %v2313 = vld [vmem:[#allocation5 + $0x18] sm:$0xff]
    %2314 = vmatprep.subr.mxu0 %v2243
    %2315 = vmatpush1.msra.mxu0 %v2242
    %2316 = vmatprep.subr.mxu0 %v2247
    %2317 = vmatpush1.msra.mxu0 %v2246
    %2318 = vmatprep.subr.mxu0 %v2251
    %2319 = vmatpush1.msra.mxu0 %v2250
    %2320 = vmatprep.subr.mxu0 %v2255
    %2321 = vmatpush1.msra.mxu0 %v2254
    %2322 = vmatprep.subr.mxu0 %v2259
    %2323 = vmatpush1.msra.mxu0 %v2258
    %2324 = vmatprep.subr.mxu0 %v2263
    %2325 = vmatpush1.msra.mxu0 %v2262
    %2326 = vmatprep.subr.mxu0 %v2267
    %2327 = vmatpush1.msra.mxu0 %v2266
    %2328 = vmatprep.subr.mxu0 %v2271
    %2329 = vmatpush1.msra.mxu0 %v2270
    %2330 = vmatprep.subr.mxu0 %v2275
    %2331 = vmatpush1.msra.mxu0 %v2274
    %2332 = vmatprep.subr.mxu0 %v2279
    %2333 = vmatpush1.msra.mxu0 %v2278
    %2334 = vmatprep.subr.mxu0 %v2283
    %2335 = vmatpush1.msra.mxu0 %v2282
    %2336 = vmatprep.subr.mxu0 %v2287
    %2337 = vmatpush1.msra.mxu0 %v2286
    %2338 = vmatprep.subr.mxu0 %v2291
    %2339 = vmatpush1.msra.mxu0 %v2290
    %2340 = vmatprep.subr.mxu0 %v2295
    %2341 = vmatpush1.msra.mxu0 %v2294
    %2342 = vmatprep.subr.mxu0 %v2299
    %2343 = vmatpush1.msra.mxu0 %v2298
    %2344 = vmatprep.subr.mxu0 %v2303
    %2345 = vmatpush1.msra.mxu0 %v2302
    %2346 = vmatprep.subr.mxu0 0.0
    %2347 = vmatpush1.msra.mxu0 0.0
    %2348 = vmatprep.subr.mxu0 0.0
    %2349 = vmatpush1.msra.mxu0 0.0
    %2350 = vmatprep.subr.mxu0 0.0
    %2351 = vmatpush1.msra.mxu0 0.0
    %2352 = vmatprep.subr.mxu0 0.0
    %2353 = vmatpush1.msra.mxu0 0.0
    %2354 = vmatprep.subr.mxu0 0.0
    %2355 = vmatpush1.msra.mxu0 0.0
    %2356 = vmatprep.subr.mxu0 0.0
    %2357 = vmatpush1.msra.mxu0 0.0
    %2358 = vmatprep.subr.mxu0 0.0
    %2359 = vmatpush1.msra.mxu0 0.0
    %2360 = vmatprep.subr.mxu0 0.0
    %2361 = vmatpush1.msra.mxu0 0.0
    %2362 = vmatprep.subr.mxu0 0.0
    %2363 = vmatpush1.msra.mxu0 0.0
    %2364 = vmatprep.subr.mxu0 0.0
    %2365 = vmatpush1.msra.mxu0 0.0
    %2366 = vmatprep.subr.mxu0 0.0
    %2367 = vmatpush1.msra.mxu0 0.0
    %2368 = vmatprep.subr.mxu0 0.0
    %2369 = vmatpush1.msra.mxu0 0.0
    %2370 = vmatprep.subr.mxu0 0.0
    %2371 = vmatpush1.msra.mxu0 0.0
    %2372 = vmatprep.subr.mxu0 0.0
    %2373 = vmatpush1.msra.mxu0 0.0
    %2374 = vmatprep.subr.mxu0 0.0
    %2375 = vmatpush1.msra.mxu0 0.0
    %2376 = vmatprep.subr.mxu0 0.0
    %2377 = vmatpush1.msra.mxu0 0.0
    %2378 = vmatprep.mubr.f32.mxu0 0.0
    %2379 = vmatmul.mubr.f32.gmra.mrb[0].mxu0 %v2307
    %v2380 = vpop.f32.mrb[0].mxu0
    %v2381 = vadd.f32 0.0, %v2380
    %v2382 = vpop.f32.mrb[0].mxu0
    %v2383 = vadd.f32 0.0, %v2382
    %2384 = vdwg.mxu0
    %2385 = vmatprep.subr.mxu0 %v2245
    %2386 = vmatpush1.msra.mxu0 %v2244
    %2387 = vmatprep.subr.mxu0 %v2249
    %2388 = vmatpush1.msra.mxu0 %v2248
    %2389 = vmatprep.subr.mxu0 %v2253
    %2390 = vmatpush1.msra.mxu0 %v2252
    %2391 = vmatprep.subr.mxu0 %v2257
    %2392 = vmatpush1.msra.mxu0 %v2256
    %2393 = vmatprep.subr.mxu0 %v2261
    %2394 = vmatpush1.msra.mxu0 %v2260
    %2395 = vmatprep.subr.mxu0 %v2265
    %2396 = vmatpush1.msra.mxu0 %v2264
    %2397 = vmatprep.subr.mxu0 %v2269
    %2398 = vmatpush1.msra.mxu0 %v2268
    %2399 = vmatprep.subr.mxu0 %v2273
    %2400 = vmatpush1.msra.mxu0 %v2272
    %2401 = vmatprep.subr.mxu0 %v2277
    %2402 = vmatpush1.msra.mxu0 %v2276
    %2403 = vmatprep.subr.mxu0 %v2281
    %2404 = vmatpush1.msra.mxu0 %v2280
    %2405 = vmatprep.subr.mxu0 %v2285
    %2406 = vmatpush1.msra.mxu0 %v2284
    %2407 = vmatprep.subr.mxu0 %v2289
    %2408 = vmatpush1.msra.mxu0 %v2288
    %2409 = vmatprep.subr.mxu0 %v2293
    %2410 = vmatpush1.msra.mxu0 %v2292
    %2411 = vmatprep.subr.mxu0 %v2297
    %2412 = vmatpush1.msra.mxu0 %v2296
    %2413 = vmatprep.subr.mxu0 %v2301
    %2414 = vmatpush1.msra.mxu0 %v2300
    %2415 = vmatprep.subr.mxu0 %v2305
    %2416 = vmatpush1.msra.mxu0 %v2304
    %2417 = vmatprep.subr.mxu0 0.0
    %2418 = vmatpush1.msra.mxu0 0.0
    %2419 = vmatprep.subr.mxu0 0.0
    %2420 = vmatpush1.msra.mxu0 0.0
    %2421 = vmatprep.subr.mxu0 0.0
    %2422 = vmatpush1.msra.mxu0 0.0
    %2423 = vmatprep.subr.mxu0 0.0
    %2424 = vmatpush1.msra.mxu0 0.0
    %2425 = vmatprep.subr.mxu0 0.0
    %2426 = vmatpush1.msra.mxu0 0.0
    %2427 = vmatprep.subr.mxu0 0.0
    %2428 = vmatpush1.msra.mxu0 0.0
    %2429 = vmatprep.subr.mxu0 0.0
    %2430 = vmatpush1.msra.mxu0 0.0
    %2431 = vmatprep.subr.mxu0 0.0
    %2432 = vmatpush1.msra.mxu0 0.0
    %2433 = vmatprep.subr.mxu0 0.0
    %2434 = vmatpush1.msra.mxu0 0.0
    %2435 = vmatprep.subr.mxu0 0.0
    %2436 = vmatpush1.msra.mxu0 0.0
    %2437 = vmatprep.subr.mxu0 0.0
    %2438 = vmatpush1.msra.mxu0 0.0
    %2439 = vmatprep.subr.mxu0 0.0
    %2440 = vmatpush1.msra.mxu0 0.0
    %2441 = vmatprep.subr.mxu0 0.0
    %2442 = vmatpush1.msra.mxu0 0.0
    %2443 = vmatprep.subr.mxu0 0.0
    %2444 = vmatpush1.msra.mxu0 0.0
    %2445 = vmatprep.subr.mxu0 0.0
    %2446 = vmatpush1.msra.mxu0 0.0
    %2447 = vmatprep.subr.mxu0 0.0
    %2448 = vmatpush1.msra.mxu0 0.0
    %2449 = vmatprep.mubr.f32.mxu0 0.0
    %2450 = vmatmul.mubr.f32.gmra.mrb[0].mxu0 %v2307
    %v2451 = vpop.f32.mrb[0].mxu0
    %v2452 = vadd.f32 0.0, %v2451
    %v2453 = vpop.f32.mrb[0].mxu0
    %v2454 = vadd.f32 0.0, %v2453
    %2455 = vdwg.mxu0
    %v2456 = vadd.f32 %v2310, %v2381
    %v2457 = vadd.f32 %v2311, %v2383
    %v2458 = vadd.f32 %v2312, %v2452
    %v2459 = vadd.f32 %v2313, %v2454
    %v2460 = vmul.f32 %v2456, 0.5
    %v2461 = vtanh.pop %v2460
    %v2462 = vmul.f32 %v2461, 0.5
    %v2463 = vadd.f32 %v2462, 0.5
    %v2464 = vmul.f32 %v2457, 0.5
    %v2465 = vtanh.pop %v2464
    %v2466 = vmul.f32 %v2465, 0.5
    %v2467 = vadd.f32 %v2466, 0.5
    %v2468 = vtanh.pop %v2458
    %v2469 = vmul.f32 %v2459, 0.5
    %v2470 = vtanh.pop %v2469
    %v2471 = vmul.f32 %v2470, 0.5
    %v2472 = vadd.f32 %v2471, 0.5
    %v2473 = vmul.f32 %v2467, %v2309
    %v2474 = vmul.f32 %v2463, %v2468
    %v2475 = vadd.f32 %v2473, %v2474
    %v2476 = vtanh.pop %v2475
    %v2477 = vmul.f32 %v2472, %v2476
    %v2478 = vld [vmem:[#allocation5 + $0x20] sm:$0xff]
    %v2479 = vld [vmem:[#allocation5 + $0x28] sm:$0xff]
    %v2480 = vld [vmem:[#allocation5 + $0x30] sm:$0xff]
    %v2481 = vld [vmem:[#allocation5 + $0x38] sm:$0xff]
    %2482 = vmatprep.subr.mxu0 %v2243
    %2483 = vmatpush1.msra.mxu0 %v2242
    %2484 = vmatprep.subr.mxu0 %v2247
    %2485 = vmatpush1.msra.mxu0 %v2246
    %2486 = vmatprep.subr.mxu0 %v2251
    %2487 = vmatpush1.msra.mxu0 %v2250
    %2488 = vmatprep.subr.mxu0 %v2255
    %2489 = vmatpush1.msra.mxu0 %v2254
    %2490 = vmatprep.subr.mxu0 %v2259
    %2491 = vmatpush1.msra.mxu0 %v2258
    %2492 = vmatprep.subr.mxu0 %v2263
    %2493 = vmatpush1.msra.mxu0 %v2262
    %2494 = vmatprep.subr.mxu0 %v2267
    %2495 = vmatpush1.msra.mxu0 %v2266
    %2496 = vmatprep.subr.mxu0 %v2271
    %2497 = vmatpush1.msra.mxu0 %v2270
    %2498 = vmatprep.subr.mxu0 %v2275
    %2499 = vmatpush1.msra.mxu0 %v2274
    %2500 = vmatprep.subr.mxu0 %v2279
    %2501 = vmatpush1.msra.mxu0 %v2278
    %2502 = vmatprep.subr.mxu0 %v2283
    %2503 = vmatpush1.msra.mxu0 %v2282
    %2504 = vmatprep.subr.mxu0 %v2287
    %2505 = vmatpush1.msra.mxu0 %v2286
    %2506 = vmatprep.subr.mxu0 %v2291
    %2507 = vmatpush1.msra.mxu0 %v2290
    %2508 = vmatprep.subr.mxu0 %v2295
    %2509 = vmatpush1.msra.mxu0 %v2294
    %2510 = vmatprep.subr.mxu0 %v2299
    %2511 = vmatpush1.msra.mxu0 %v2298
    %2512 = vmatprep.subr.mxu0 %v2303
    %2513 = vmatpush1.msra.mxu0 %v2302
    %2514 = vmatprep.subr.mxu0 0.0
    %2515 = vmatpush1.msra.mxu0 0.0
    %2516 = vmatprep.subr.mxu0 0.0
    %2517 = vmatpush1.msra.mxu0 0.0
    %2518 = vmatprep.subr.mxu0 0.0
    %2519 = vmatpush1.msra.mxu0 0.0
    %2520 = vmatprep.subr.mxu0 0.0
    %2521 = vmatpush1.msra.mxu0 0.0
    %2522 = vmatprep.subr.mxu0 0.0
    %2523 = vmatpush1.msra.mxu0 0.0
    %2524 = vmatprep.subr.mxu0 0.0
    %2525 = vmatpush1.msra.mxu0 0.0
    %2526 = vmatprep.subr.mxu0 0.0
    %2527 = vmatpush1.msra.mxu0 0.0
    %2528 = vmatprep.subr.mxu0 0.0
    %2529 = vmatpush1.msra.mxu0 0.0
    %2530 = vmatprep.subr.mxu0 0.0
    %2531 = vmatpush1.msra.mxu0 0.0
    %2532 = vmatprep.subr.mxu0 0.0
    %2533 = vmatpush1.msra.mxu0 0.0
    %2534 = vmatprep.subr.mxu0 0.0
    %2535 = vmatpush1.msra.mxu0 0.0
    %2536 = vmatprep.subr.mxu0 0.0
    %2537 = vmatpush1.msra.mxu0 0.0
    %2538 = vmatprep.subr.mxu0 0.0
    %2539 = vmatpush1.msra.mxu0 0.0
    %2540 = vmatprep.subr.mxu0 0.0
    %2541 = vmatpush1.msra.mxu0 0.0
    %2542 = vmatprep.subr.mxu0 0.0
    %2543 = vmatpush1.msra.mxu0 0.0
    %2544 = vmatprep.subr.mxu0 0.0
    %2545 = vmatpush1.msra.mxu0 0.0
    %2546 = vmatprep.mubr.f32.mxu0 0.0
    %2547 = vmatmul.mubr.f32.gmra.mrb[0].mxu0 %v2477
    %v2548 = vpop.f32.mrb[0].mxu0
    %v2549 = vadd.f32 0.0, %v2548
    %v2550 = vpop.f32.mrb[0].mxu0
    %v2551 = vadd.f32 0.0, %v2550
    %2552 = vdwg.mxu0
    %2553 = vmatprep.subr.mxu0 %v2245
    %2554 = vmatpush1.msra.mxu0 %v2244
    %2555 = vmatprep.subr.mxu0 %v2249
    %2556 = vmatpush1.msra.mxu0 %v2248
    %2557 = vmatprep.subr.mxu0 %v2253
    %2558 = vmatpush1.msra.mxu0 %v2252
    %2559 = vmatprep.subr.mxu0 %v2257
    %2560 = vmatpush1.msra.mxu0 %v2256
    %2561 = vmatprep.subr.mxu0 %v2261
    %2562 = vmatpush1.msra.mxu0 %v2260
    %2563 = vmatprep.subr.mxu0 %v2265
    %2564 = vmatpush1.msra.mxu0 %v2264
    %2565 = vmatprep.subr.mxu0 %v2269
    %2566 = vmatpush1.msra.mxu0 %v2268
    %2567 = vmatprep.subr.mxu0 %v2273
    %2568 = vmatpush1.msra.mxu0 %v2272
    %2569 = vmatprep.subr.mxu0 %v2277
    %2570 = vmatpush1.msra.mxu0 %v2276
    %2571 = vmatprep.subr.mxu0 %v2281
    %2572 = vmatpush1.msra.mxu0 %v2280
    %2573 = vmatprep.subr.mxu0 %v2285
    %2574 = vmatpush1.msra.mxu0 %v2284
    %2575 = vmatprep.subr.mxu0 %v2289
    %2576 = vmatpush1.msra.mxu0 %v2288
    %2577 = vmatprep.subr.mxu0 %v2293
    %2578 = vmatpush1.msra.mxu0 %v2292
    %2579 = vmatprep.subr.mxu0 %v2297
    %2580 = vmatpush1.msra.mxu0 %v2296
    %2581 = vmatprep.subr.mxu0 %v2301
    %2582 = vmatpush1.msra.mxu0 %v2300
    %2583 = vmatprep.subr.mxu0 %v2305
    %2584 = vmatpush1.msra.mxu0 %v2304
    %2585 = vmatprep.subr.mxu0 0.0
    %2586 = vmatpush1.msra.mxu0 0.0
    %2587 = vmatprep.subr.mxu0 0.0
    %2588 = vmatpush1.msra.mxu0 0.0
    %2589 = vmatprep.subr.mxu0 0.0
    %2590 = vmatpush1.msra.mxu0 0.0
    %2591 = vmatprep.subr.mxu0 0.0
    %2592 = vmatpush1.msra.mxu0 0.0
    %2593 = vmatprep.subr.mxu0 0.0
    %2594 = vmatpush1.msra.mxu0 0.0
    %2595 = vmatprep.subr.mxu0 0.0
    %2596 = vmatpush1.msra.mxu0 0.0
    %2597 = vmatprep.subr.mxu0 0.0
    %2598 = vmatpush1.msra.mxu0 0.0
    %2599 = vmatprep.subr.mxu0 0.0
    %2600 = vmatpush1.msra.mxu0 0.0
    %2601 = vmatprep.subr.mxu0 0.0
    %2602 = vmatpush1.msra.mxu0 0.0
    %2603 = vmatprep.subr.mxu0 0.0
    %2604 = vmatpush1.msra.mxu0 0.0
    %2605 = vmatprep.subr.mxu0 0.0
    %2606 = vmatpush1.msra.mxu0 0.0
    %2607 = vmatprep.subr.mxu0 0.0
    %2608 = vmatpush1.msra.mxu0 0.0
    %2609 = vmatprep.subr.mxu0 0.0
    %2610 = vmatpush1.msra.mxu0 0.0
    %2611 = vmatprep.subr.mxu0 0.0
    %2612 = vmatpush1.msra.mxu0 0.0
    %2613 = vmatprep.subr.mxu0 0.0
    %2614 = vmatpush1.msra.mxu0 0.0
    %2615 = vmatprep.subr.mxu0 0.0
    %2616 = vmatpush1.msra.mxu0 0.0
    %2617 = vmatprep.mubr.f32.mxu0 0.0
    %2618 = vmatmul.mubr.f32.gmra.mrb[0].mxu0 %v2477
    %v2619 = vpop.f32.mrb[0].mxu0
    %v2620 = vadd.f32 0.0, %v2619
    %v2621 = vpop.f32.mrb[0].mxu0
    %v2622 = vadd.f32 0.0, %v2621
    %2623 = vdwg.mxu0
    %v2624 = vadd.f32 %v2478, %v2549
    %v2625 = vadd.f32 %v2479, %v2551
    %v2626 = vadd.f32 %v2480, %v2620
    %v2627 = vadd.f32 %v2481, %v2622
    %v2628 = vmul.f32 %v2624, 0.5
    %v2629 = vtanh.pop %v2628
    %v2630 = vmul.f32 %v2629, 0.5
    %v2631 = vadd.f32 %v2630, 0.5
    %v2632 = vmul.f32 %v2625, 0.5
    %v2633 = vtanh.pop %v2632
    %v2634 = vmul.f32 %v2633, 0.5
    %v2635 = vadd.f32 %v2634, 0.5
    %v2636 = vtanh.pop %v2626
    %v2637 = vmul.f32 %v2627, 0.5
    %v2638 = vtanh.pop %v2637
    %v2639 = vmul.f32 %v2638, 0.5
    %v2640 = vadd.f32 %v2639, 0.5
    %v2641 = vmul.f32 %v2635, %v2475
    %v2642 = vmul.f32 %v2631, %v2636
    %v2643 = vadd.f32 %v2641, %v2642
    %v2644 = vtanh.pop %v2643
    %v2645 = vmul.f32 %v2640, %v2644
    %v2646 = vld [vmem:[#allocation5 + $0x40] sm:$0xff]
    %v2647 = vld [vmem:[#allocation5 + $0x48] sm:$0xff]
    %v2648 = vld [vmem:[#allocation5 + $0x50] sm:$0xff]
    %v2649 = vld [vmem:[#allocation5 + $0x58] sm:$0xff]
    %2650 = vmatprep.subr.mxu0 %v2243
    %2651 = vmatpush1.msra.mxu0 %v2242
    %2652 = vmatprep.subr.mxu0 %v2247
    %2653 = vmatpush1.msra.mxu0 %v2246
    %2654 = vmatprep.subr.mxu0 %v2251
    %2655 = vmatpush1.msra.mxu0 %v2250
    %2656 = vmatprep.subr.mxu0 %v2255
    %2657 = vmatpush1.msra.mxu0 %v2254
    %2658 = vmatprep.subr.mxu0 %v2259
    %2659 = vmatpush1.msra.mxu0 %v2258
    %2660 = vmatprep.subr.mxu0 %v2263
    %2661 = vmatpush1.msra.mxu0 %v2262
    %2662 = vmatprep.subr.mxu0 %v2267
    %2663 = vmatpush1.msra.mxu0 %v2266
    %2664 = vmatprep.subr.mxu0 %v2271
    %2665 = vmatpush1.msra.mxu0 %v2270
    %2666 = vmatprep.subr.mxu0 %v2275
    %2667 = vmatpush1.msra.mxu0 %v2274
    %2668 = vmatprep.subr.mxu0 %v2279
    %2669 = vmatpush1.msra.mxu0 %v2278
    %2670 = vmatprep.subr.mxu0 %v2283
    %2671 = vmatpush1.msra.mxu0 %v2282
    %2672 = vmatprep.subr.mxu0 %v2287
    %2673 = vmatpush1.msra.mxu0 %v2286
    %2674 = vmatprep.subr.mxu0 %v2291
    %2675 = vmatpush1.msra.mxu0 %v2290
    %2676 = vmatprep.subr.mxu0 %v2295
    %2677 = vmatpush1.msra.mxu0 %v2294
    %2678 = vmatprep.subr.mxu0 %v2299
    %2679 = vmatpush1.msra.mxu0 %v2298
    %2680 = vmatprep.subr.mxu0 %v2303
    %2681 = vmatpush1.msra.mxu0 %v2302
    %2682 = vmatprep.subr.mxu0 0.0
    %2683 = vmatpush1.msra.mxu0 0.0
    %2684 = vmatprep.subr.mxu0 0.0
    %2685 = vmatpush1.msra.mxu0 0.0
    %2686 = vmatprep.subr.mxu0 0.0
    %2687 = vmatpush1.msra.mxu0 0.0
    %2688 = vmatprep.subr.mxu0 0.0
    %2689 = vmatpush1.msra.mxu0 0.0
    %2690 = vmatprep.subr.mxu0 0.0
    %2691 = vmatpush1.msra.mxu0 0.0
    %2692 = vmatprep.subr.mxu0 0.0
    %2693 = vmatpush1.msra.mxu0 0.0
    %2694 = vmatprep.subr.mxu0 0.0
    %2695 = vmatpush1.msra.mxu0 0.0
    %2696 = vmatprep.subr.mxu0 0.0
    %2697 = vmatpush1.msra.mxu0 0.0
    %2698 = vmatprep.subr.mxu0 0.0
    %2699 = vmatpush1.msra.mxu0 0.0
    %2700 = vmatprep.subr.mxu0 0.0
    %2701 = vmatpush1.msra.mxu0 0.0
    %2702 = vmatprep.subr.mxu0 0.0
    %2703 = vmatpush1.msra.mxu0 0.0
    %2704 = vmatprep.subr.mxu0 0.0
    %2705 = vmatpush1.msra.mxu0 0.0
    %2706 = vmatprep.subr.mxu0 0.0
    %2707 = vmatpush1.msra.mxu0 0.0
    %2708 = vmatprep.subr.mxu0 0.0
    %2709 = vmatpush1.msra.mxu0 0.0
    %2710 = vmatprep.subr.mxu0 0.0
    %2711 = vmatpush1.msra.mxu0 0.0
    %2712 = vmatprep.subr.mxu0 0.0
    %2713 = vmatpush1.msra.mxu0 0.0
    %2714 = vmatprep.mubr.f32.mxu0 0.0
    %2715 = vmatmul.mubr.f32.gmra.mrb[0].mxu0 %v2645
    %v2716 = vpop.f32.mrb[0].mxu0
    %v2717 = vadd.f32 0.0, %v2716
    %v2718 = vpop.f32.mrb[0].mxu0
    %v2719 = vadd.f32 0.0, %v2718
    %2720 = vdwg.mxu0
    %2721 = vmatprep.subr.mxu0 %v2245
    %2722 = vmatpush1.msra.mxu0 %v2244
    %2723 = vmatprep.subr.mxu0 %v2249
    %2724 = vmatpush1.msra.mxu0 %v2248
    %2725 = vmatprep.subr.mxu0 %v2253
    %2726 = vmatpush1.msra.mxu0 %v2252
    %2727 = vmatprep.subr.mxu0 %v2257
    %2728 = vmatpush1.msra.mxu0 %v2256
    %2729 = vmatprep.subr.mxu0 %v2261
    %2730 = vmatpush1.msra.mxu0 %v2260
    %2731 = vmatprep.subr.mxu0 %v2265
    %2732 = vmatpush1.msra.mxu0 %v2264
    %2733 = vmatprep.subr.mxu0 %v2269
    %2734 = vmatpush1.msra.mxu0 %v2268
    %2735 = vmatprep.subr.mxu0 %v2273
    %2736 = vmatpush1.msra.mxu0 %v2272
    %2737 = vmatprep.subr.mxu0 %v2277
    %2738 = vmatpush1.msra.mxu0 %v2276
    %2739 = vmatprep.subr.mxu0 %v2281
    %2740 = vmatpush1.msra.mxu0 %v2280
    %2741 = vmatprep.subr.mxu0 %v2285
    %2742 = vmatpush1.msra.mxu0 %v2284
    %2743 = vmatprep.subr.mxu0 %v2289
    %2744 = vmatpush1.msra.mxu0 %v2288
    %2745 = vmatprep.subr.mxu0 %v2293
    %2746 = vmatpush1.msra.mxu0 %v2292
    %2747 = vmatprep.subr.mxu0 %v2297
    %2748 = vmatpush1.msra.mxu0 %v2296
    %2749 = vmatprep.subr.mxu0 %v2301
    %2750 = vmatpush1.msra.mxu0 %v2300
    %2751 = vmatprep.subr.mxu0 %v2305
    %2752 = vmatpush1.msra.mxu0 %v2304
    %2753 = vmatprep.subr.mxu0 0.0
    %2754 = vmatpush1.msra.mxu0 0.0
    %2755 = vmatprep.subr.mxu0 0.0
    %2756 = vmatpush1.msra.mxu0 0.0
    %2757 = vmatprep.subr.mxu0 0.0
    %2758 = vmatpush1.msra.mxu0 0.0
    %2759 = vmatprep.subr.mxu0 0.0
    %2760 = vmatpush1.msra.mxu0 0.0
    %2761 = vmatprep.subr.mxu0 0.0
    %2762 = vmatpush1.msra.mxu0 0.0
    %2763 = vmatprep.subr.mxu0 0.0
    %2764 = vmatpush1.msra.mxu0 0.0
    %2765 = vmatprep.subr.mxu0 0.0
    %2766 = vmatpush1.msra.mxu0 0.0
    %2767 = vmatprep.subr.mxu0 0.0
    %2768 = vmatpush1.msra.mxu0 0.0
    %2769 = vmatprep.subr.mxu0 0.0
    %2770 = vmatpush1.msra.mxu0 0.0
    %2771 = vmatprep.subr.mxu0 0.0
    %2772 = vmatpush1.msra.mxu0 0.0
    %2773 = vmatprep.subr.mxu0 0.0
    %2774 = vmatpush1.msra.mxu0 0.0
    %2775 = vmatprep.subr.mxu0 0.0
    %2776 = vmatpush1.msra.mxu0 0.0
    %2777 = vmatprep.subr.mxu0 0.0
    %2778 = vmatpush1.msra.mxu0 0.0
    %2779 = vmatprep.subr.mxu0 0.0
    %2780 = vmatpush1.msra.mxu0 0.0
    %2781 = vmatprep.subr.mxu0 0.0
    %2782 = vmatpush1.msra.mxu0 0.0
    %2783 = vmatprep.subr.mxu0 0.0
    %2784 = vmatpush1.msra.mxu0 0.0
    %2785 = vmatprep.mubr.f32.mxu0 0.0
    %2786 = vmatmul.mubr.f32.gmra.mrb[0].mxu0 %v2645
    %v2787 = vpop.f32.mrb[0].mxu0
    %v2788 = vadd.f32 0.0, %v2787
    %v2789 = vpop.f32.mrb[0].mxu0
    %v2790 = vadd.f32 0.0, %v2789
    %2791 = vdwg.mxu0
    %v2792 = vadd.f32 %v2646, %v2717
    %v2793 = vadd.f32 %v2647, %v2719
    %v2794 = vadd.f32 %v2648, %v2788
    %v2795 = vadd.f32 %v2649, %v2790
    %v2796 = vmul.f32 %v2792, 0.5
    %v2797 = vtanh.pop %v2796
    %v2798 = vmul.f32 %v2797, 0.5
    %v2799 = vadd.f32 %v2798, 0.5
    %v2800 = vmul.f32 %v2793, 0.5
    %v2801 = vtanh.pop %v2800
    %v2802 = vmul.f32 %v2801, 0.5
    %v2803 = vadd.f32 %v2802, 0.5
    %v2804 = vtanh.pop %v2794
    %v2805 = vmul.f32 %v2795, 0.5
    %v2806 = vtanh.pop %v2805
    %v2807 = vmul.f32 %v2806, 0.5
    %v2808 = vadd.f32 %v2807, 0.5
    %v2809 = vmul.f32 %v2803, %v2643
    %v2810 = vmul.f32 %v2799, %v2804
    %v2811 = vadd.f32 %v2809, %v2810
    %v2812 = vtanh.pop %v2811
    %v2813 = vmul.f32 %v2808, %v2812
    %v2814 = vld [vmem:[#allocation5 + $0x60] sm:$0xff]
    %v2815 = vld [vmem:[#allocation5 + $0x68] sm:$0xff]
    %v2816 = vld [vmem:[#allocation5 + $0x70] sm:$0xff]
    %v2817 = vld [vmem:[#allocation5 + $0x78] sm:$0xff]
    %2818 = vmatprep.subr.mxu0 %v2243
    %2819 = vmatpush1.msra.mxu0 %v2242
    %2820 = vmatprep.subr.mxu0 %v2247
    %2821 = vmatpush1.msra.mxu0 %v2246
    %2822 = vmatprep.subr.mxu0 %v2251
    %2823 = vmatpush1.msra.mxu0 %v2250
    %2824 = vmatprep.subr.mxu0 %v2255
    %2825 = vmatpush1.msra.mxu0 %v2254
    %2826 = vmatprep.subr.mxu0 %v2259
    %2827 = vmatpush1.msra.mxu0 %v2258
    %2828 = vmatprep.subr.mxu0 %v2263
    %2829 = vmatpush1.msra.mxu0 %v2262
    %2830 = vmatprep.subr.mxu0 %v2267
    %2831 = vmatpush1.msra.mxu0 %v2266
    %2832 = vmatprep.subr.mxu0 %v2271
    %2833 = vmatpush1.msra.mxu0 %v2270
    %2834 = vmatprep.subr.mxu0 %v2275
    %2835 = vmatpush1.msra.mxu0 %v2274
    %2836 = vmatprep.subr.mxu0 %v2279
    %2837 = vmatpush1.msra.mxu0 %v2278
    %2838 = vmatprep.subr.mxu0 %v2283
    %2839 = vmatpush1.msra.mxu0 %v2282
    %2840 = vmatprep.subr.mxu0 %v2287
    %2841 = vmatpush1.msra.mxu0 %v2286
    %2842 = vmatprep.subr.mxu0 %v2291
    %2843 = vmatpush1.msra.mxu0 %v2290
    %2844 = vmatprep.subr.mxu0 %v2295
    %2845 = vmatpush1.msra.mxu0 %v2294
    %2846 = vmatprep.subr.mxu0 %v2299
    %2847 = vmatpush1.msra.mxu0 %v2298
    %2848 = vmatprep.subr.mxu0 %v2303
    %2849 = vmatpush1.msra.mxu0 %v2302
    %2850 = vmatprep.subr.mxu0 0.0
    %2851 = vmatpush1.msra.mxu0 0.0
    %2852 = vmatprep.subr.mxu0 0.0
    %2853 = vmatpush1.msra.mxu0 0.0
    %2854 = vmatprep.subr.mxu0 0.0
    %2855 = vmatpush1.msra.mxu0 0.0
    %2856 = vmatprep.subr.mxu0 0.0
    %2857 = vmatpush1.msra.mxu0 0.0
    %2858 = vmatprep.subr.mxu0 0.0
    %2859 = vmatpush1.msra.mxu0 0.0
    %2860 = vmatprep.subr.mxu0 0.0
    %2861 = vmatpush1.msra.mxu0 0.0
    %2862 = vmatprep.subr.mxu0 0.0
    %2863 = vmatpush1.msra.mxu0 0.0
    %2864 = vmatprep.subr.mxu0 0.0
    %2865 = vmatpush1.msra.mxu0 0.0
    %2866 = vmatprep.subr.mxu0 0.0
    %2867 = vmatpush1.msra.mxu0 0.0
    %2868 = vmatprep.subr.mxu0 0.0
    %2869 = vmatpush1.msra.mxu0 0.0
    %2870 = vmatprep.subr.mxu0 0.0
    %2871 = vmatpush1.msra.mxu0 0.0
    %2872 = vmatprep.subr.mxu0 0.0
    %2873 = vmatpush1.msra.mxu0 0.0
    %2874 = vmatprep.subr.mxu0 0.0
    %2875 = vmatpush1.msra.mxu0 0.0
    %2876 = vmatprep.subr.mxu0 0.0
    %2877 = vmatpush1.msra.mxu0 0.0
    %2878 = vmatprep.subr.mxu0 0.0
    %2879 = vmatpush1.msra.mxu0 0.0
    %2880 = vmatprep.subr.mxu0 0.0
    %2881 = vmatpush1.msra.mxu0 0.0
    %2882 = vmatprep.mubr.f32.mxu0 0.0
    %2883 = vmatmul.mubr.f32.gmra.mrb[0].mxu0 %v2813
    %v2884 = vpop.f32.mrb[0].mxu0
    %v2885 = vadd.f32 0.0, %v2884
    %v2886 = vpop.f32.mrb[0].mxu0
    %v2887 = vadd.f32 0.0, %v2886
    %2888 = vdwg.mxu0
    %2889 = vmatprep.subr.mxu0 %v2245
    %2890 = vmatpush1.msra.mxu0 %v2244
    %2891 = vmatprep.subr.mxu0 %v2249
    %2892 = vmatpush1.msra.mxu0 %v2248
    %2893 = vmatprep.subr.mxu0 %v2253
    %2894 = vmatpush1.msra.mxu0 %v2252
    %2895 = vmatprep.subr.mxu0 %v2257
    %2896 = vmatpush1.msra.mxu0 %v2256
    %2897 = vmatprep.subr.mxu0 %v2261
    %2898 = vmatpush1.msra.mxu0 %v2260
    %2899 = vmatprep.subr.mxu0 %v2265
    %2900 = vmatpush1.msra.mxu0 %v2264
    %2901 = vmatprep.subr.mxu0 %v2269
    %2902 = vmatpush1.msra.mxu0 %v2268
    %2903 = vmatprep.subr.mxu0 %v2273
    %2904 = vmatpush1.msra.mxu0 %v2272
    %2905 = vmatprep.subr.mxu0 %v2277
    %2906 = vmatpush1.msra.mxu0 %v2276
    %2907 = vmatprep.subr.mxu0 %v2281
    %2908 = vmatpush1.msra.mxu0 %v2280
    %2909 = vmatprep.subr.mxu0 %v2285
    %2910 = vmatpush1.msra.mxu0 %v2284
    %2911 = vmatprep.subr.mxu0 %v2289
    %2912 = vmatpush1.msra.mxu0 %v2288
    %2913 = vmatprep.subr.mxu0 %v2293
    %2914 = vmatpush1.msra.mxu0 %v2292
    %2915 = vmatprep.subr.mxu0 %v2297
    %2916 = vmatpush1.msra.mxu0 %v2296
    %2917 = vmatprep.subr.mxu0 %v2301
    %2918 = vmatpush1.msra.mxu0 %v2300
    %2919 = vmatprep.subr.mxu0 %v2305
    %2920 = vmatpush1.msra.mxu0 %v2304
    %2921 = vmatprep.subr.mxu0 0.0
    %2922 = vmatpush1.msra.mxu0 0.0
    %2923 = vmatprep.subr.mxu0 0.0
    %2924 = vmatpush1.msra.mxu0 0.0
    %2925 = vmatprep.subr.mxu0 0.0
    %2926 = vmatpush1.msra.mxu0 0.0
    %2927 = vmatprep.subr.mxu0 0.0
    %2928 = vmatpush1.msra.mxu0 0.0
    %2929 = vmatprep.subr.mxu0 0.0
    %2930 = vmatpush1.msra.mxu0 0.0
    %2931 = vmatprep.subr.mxu0 0.0
    %2932 = vmatpush1.msra.mxu0 0.0
    %2933 = vmatprep.subr.mxu0 0.0
    %2934 = vmatpush1.msra.mxu0 0.0
    %2935 = vmatprep.subr.mxu0 0.0
    %2936 = vmatpush1.msra.mxu0 0.0
    %2937 = vmatprep.subr.mxu0 0.0
    %2938 = vmatpush1.msra.mxu0 0.0
    %2939 = vmatprep.subr.mxu0 0.0
    %2940 = vmatpush1.msra.mxu0 0.0
    %2941 = vmatprep.subr.mxu0 0.0
    %2942 = vmatpush1.msra.mxu0 0.0
    %2943 = vmatprep.subr.mxu0 0.0
    %2944 = vmatpush1.msra.mxu0 0.0
    %2945 = vmatprep.subr.mxu0 0.0
    %2946 = vmatpush1.msra.mxu0 0.0
    %2947 = vmatprep.subr.mxu0 0.0
    %2948 = vmatpush1.msra.mxu0 0.0
    %2949 = vmatprep.subr.mxu0 0.0
    %2950 = vmatpush1.msra.mxu0 0.0
    %2951 = vmatprep.subr.mxu0 0.0
    %2952 = vmatpush1.msra.mxu0 0.0
    %2953 = vmatprep.mubr.f32.mxu0 0.0
    %2954 = vmatmul.mubr.f32.gmra.mrb[0].mxu0 %v2813
    %v2955 = vpop.f32.mrb[0].mxu0
    %v2956 = vadd.f32 0.0, %v2955
    %v2957 = vpop.f32.mrb[0].mxu0
    %v2958 = vadd.f32 0.0, %v2957
    %2959 = vdwg.mxu0
    %v2960 = vadd.f32 %v2814, %v2885
    %v2961 = vadd.f32 %v2815, %v2887
    %v2962 = vadd.f32 %v2816, %v2956
    %v2963 = vadd.f32 %v2817, %v2958
    %v2964 = vmul.f32 %v2960, 0.5
    %v2965 = vtanh.pop %v2964
    %v2966 = vmul.f32 %v2965, 0.5
    %v2967 = vadd.f32 %v2966, 0.5
    %v2968 = vmul.f32 %v2961, 0.5
    %v2969 = vtanh.pop %v2968
    %v2970 = vmul.f32 %v2969, 0.5
    %v2971 = vadd.f32 %v2970, 0.5
    %v2972 = vtanh.pop %v2962
    %v2973 = vmul.f32 %v2963, 0.5
    %v2974 = vtanh.pop %v2973
    %v2975 = vmul.f32 %v2974, 0.5
    %v2976 = vadd.f32 %v2975, 0.5
    %v2977 = vmul.f32 %v2971, %v2811
    %v2978 = vmul.f32 %v2967, %v2972
    %v2979 = vadd.f32 %v2977, %v2978
    %v2980 = vtanh.pop %v2979
    %v2981 = vmul.f32 %v2976, %v2980
    %v2982 = vld [vmem:[#allocation5 + $0x80] sm:$0xff]
    %v2983 = vld [vmem:[#allocation5 + $0x88] sm:$0xff]
    %v2984 = vld [vmem:[#allocation5 + $0x90] sm:$0xff]
    %v2985 = vld [vmem:[#allocation5 + $0x98] sm:$0xff]
    %2986 = vmatprep.subr.mxu0 %v2243
    %2987 = vmatpush1.msra.mxu0 %v2242
    %2988 = vmatprep.subr.mxu0 %v2247
    %2989 = vmatpush1.msra.mxu0 %v2246
    %2990 = vmatprep.subr.mxu0 %v2251
    %2991 = vmatpush1.msra.mxu0 %v2250
    %2992 = vmatprep.subr.mxu0 %v2255
    %2993 = vmatpush1.msra.mxu0 %v2254
    %2994 = vmatprep.subr.mxu0 %v2259
    %2995 = vmatpush1.msra.mxu0 %v2258
    %2996 = vmatprep.subr.mxu0 %v2263
    %2997 = vmatpush1.msra.mxu0 %v2262
    %2998 = vmatprep.subr.mxu0 %v2267
    %2999 = vmatpush1.msra.mxu0 %v2266
    %3000 = vmatprep.subr.mxu0 %v2271
    %3001 = vmatpush1.msra.mxu0 %v2270
    %3002 = vmatprep.subr.mxu0 %v2275
    %3003 = vmatpush1.msra.mxu0 %v2274
    %3004 = vmatprep.subr.mxu0 %v2279
    %3005 = vmatpush1.msra.mxu0 %v2278
    %3006 = vmatprep.subr.mxu0 %v2283
    %3007 = vmatpush1.msra.mxu0 %v2282
    %3008 = vmatprep.subr.mxu0 %v2287
    %3009 = vmatpush1.msra.mxu0 %v2286
    %3010 = vmatprep.subr.mxu0 %v2291
    %3011 = vmatpush1.msra.mxu0 %v2290
    %3012 = vmatprep.subr.mxu0 %v2295
    %3013 = vmatpush1.msra.mxu0 %v2294
    %3014 = vmatprep.subr.mxu0 %v2299
    %3015 = vmatpush1.msra.mxu0 %v2298
    %3016 = vmatprep.subr.mxu0 %v2303
    %3017 = vmatpush1.msra.mxu0 %v2302
    %3018 = vmatprep.subr.mxu0 0.0
    %3019 = vmatpush1.msra.mxu0 0.0
    %3020 = vmatprep.subr.mxu0 0.0
    %3021 = vmatpush1.msra.mxu0 0.0
    %3022 = vmatprep.subr.mxu0 0.0
    %3023 = vmatpush1.msra.mxu0 0.0
    %3024 = vmatprep.subr.mxu0 0.0
    %3025 = vmatpush1.msra.mxu0 0.0
    %3026 = vmatprep.subr.mxu0 0.0
    %3027 = vmatpush1.msra.mxu0 0.0
    %3028 = vmatprep.subr.mxu0 0.0
    %3029 = vmatpush1.msra.mxu0 0.0
    %3030 = vmatprep.subr.mxu0 0.0
    %3031 = vmatpush1.msra.mxu0 0.0
    %3032 = vmatprep.subr.mxu0 0.0
    %3033 = vmatpush1.msra.mxu0 0.0
    %3034 = vmatprep.subr.mxu0 0.0
    %3035 = vmatpush1.msra.mxu0 0.0
    %3036 = vmatprep.subr.mxu0 0.0
    %3037 = vmatpush1.msra.mxu0 0.0
    %3038 = vmatprep.subr.mxu0 0.0
    %3039 = vmatpush1.msra.mxu0 0.0
    %3040 = vmatprep.subr.mxu0 0.0
    %3041 = vmatpush1.msra.mxu0 0.0
    %3042 = vmatprep.subr.mxu0 0.0
    %3043 = vmatpush1.msra.mxu0 0.0
    %3044 = vmatprep.subr.mxu0 0.0
    %3045 = vmatpush1.msra.mxu0 0.0
    %3046 = vmatprep.subr.mxu0 0.0
    %3047 = vmatpush1.msra.mxu0 0.0
    %3048 = vmatprep.subr.mxu0 0.0
    %3049 = vmatpush1.msra.mxu0 0.0
    %3050 = vmatprep.mubr.f32.mxu0 0.0
    %3051 = vmatmul.mubr.f32.gmra.mrb[0].mxu0 %v2981
    %v3052 = vpop.f32.mrb[0].mxu0
    %v3053 = vadd.f32 0.0, %v3052
    %v3054 = vpop.f32.mrb[0].mxu0
    %v3055 = vadd.f32 0.0, %v3054
    %3056 = vdwg.mxu0
    %3057 = vmatprep.subr.mxu0 %v2245
    %3058 = vmatpush1.msra.mxu0 %v2244
    %3059 = vmatprep.subr.mxu0 %v2249
    %3060 = vmatpush1.msra.mxu0 %v2248
    %3061 = vmatprep.subr.mxu0 %v2253
    %3062 = vmatpush1.msra.mxu0 %v2252
    %3063 = vmatprep.subr.mxu0 %v2257
    %3064 = vmatpush1.msra.mxu0 %v2256
    %3065 = vmatprep.subr.mxu0 %v2261
    %3066 = vmatpush1.msra.mxu0 %v2260
    %3067 = vmatprep.subr.mxu0 %v2265
    %3068 = vmatpush1.msra.mxu0 %v2264
    %3069 = vmatprep.subr.mxu0 %v2269
    %3070 = vmatpush1.msra.mxu0 %v2268
    %3071 = vmatprep.subr.mxu0 %v2273
    %3072 = vmatpush1.msra.mxu0 %v2272
    %3073 = vmatprep.subr.mxu0 %v2277
    %3074 = vmatpush1.msra.mxu0 %v2276
    %3075 = vmatprep.subr.mxu0 %v2281
    %3076 = vmatpush1.msra.mxu0 %v2280
    %3077 = vmatprep.subr.mxu0 %v2285
    %3078 = vmatpush1.msra.mxu0 %v2284
    %3079 = vmatprep.subr.mxu0 %v2289
    %3080 = vmatpush1.msra.mxu0 %v2288
    %3081 = vmatprep.subr.mxu0 %v2293
    %3082 = vmatpush1.msra.mxu0 %v2292
    %3083 = vmatprep.subr.mxu0 %v2297
    %3084 = vmatpush1.msra.mxu0 %v2296
    %3085 = vmatprep.subr.mxu0 %v2301
    %3086 = vmatpush1.msra.mxu0 %v2300
    %3087 = vmatprep.subr.mxu0 %v2305
    %3088 = vmatpush1.msra.mxu0 %v2304
    %3089 = vmatprep.subr.mxu0 0.0
    %3090 = vmatpush1.msra.mxu0 0.0
    %3091 = vmatprep.subr.mxu0 0.0
    %3092 = vmatpush1.msra.mxu0 0.0
    %3093 = vmatprep.subr.mxu0 0.0
    %3094 = vmatpush1.msra.mxu0 0.0
    %3095 = vmatprep.subr.mxu0 0.0
    %3096 = vmatpush1.msra.mxu0 0.0
    %3097 = vmatprep.subr.mxu0 0.0
    %3098 = vmatpush1.msra.mxu0 0.0
    %3099 = vmatprep.subr.mxu0 0.0
    %3100 = vmatpush1.msra.mxu0 0.0
    %3101 = vmatprep.subr.mxu0 0.0
    %3102 = vmatpush1.msra.mxu0 0.0
    %3103 = vmatprep.subr.mxu0 0.0
    %3104 = vmatpush1.msra.mxu0 0.0
    %3105 = vmatprep.subr.mxu0 0.0
    %3106 = vmatpush1.msra.mxu0 0.0
    %3107 = vmatprep.subr.mxu0 0.0
    %3108 = vmatpush1.msra.mxu0 0.0
    %3109 = vmatprep.subr.mxu0 0.0
    %3110 = vmatpush1.msra.mxu0 0.0
    %3111 = vmatprep.subr.mxu0 0.0
    %3112 = vmatpush1.msra.mxu0 0.0
    %3113 = vmatprep.subr.mxu0 0.0
    %3114 = vmatpush1.msra.mxu0 0.0
    %3115 = vmatprep.subr.mxu0 0.0
    %3116 = vmatpush1.msra.mxu0 0.0
    %3117 = vmatprep.subr.mxu0 0.0
    %3118 = vmatpush1.msra.mxu0 0.0
    %3119 = vmatprep.subr.mxu0 0.0
    %3120 = vmatpush1.msra.mxu0 0.0
    %3121 = vmatprep.mubr.f32.mxu0 0.0
    %3122 = vmatmul.mubr.f32.gmra.mrb[0].mxu0 %v2981
    %v3123 = vpop.f32.mrb[0].mxu0
    %v3124 = vadd.f32 0.0, %v3123
    %v3125 = vpop.f32.mrb[0].mxu0
    %v3126 = vadd.f32 0.0, %v3125
    %3127 = vdwg.mxu0
    %v3128 = vadd.f32 %v2982, %v3053
    %v3129 = vadd.f32 %v2983, %v3055
    %v3130 = vadd.f32 %v2984, %v3124
    %v3131 = vadd.f32 %v2985, %v3126
    %v3132 = vmul.f32 %v3128, 0.5
    %v3133 = vtanh.pop %v3132
    %v3134 = vmul.f32 %v3133, 0.5
    %v3135 = vadd.f32 %v3134, 0.5
    %v3136 = vmul.f32 %v3129, 0.5
    %v3137 = vtanh.pop %v3136
    %v3138 = vmul.f32 %v3137, 0.5
    %v3139 = vadd.f32 %v3138, 0.5
    %v3140 = vtanh.pop %v3130
    %v3141 = vmul.f32 %v3131, 0.5
    %v3142 = vtanh.pop %v3141
    %v3143 = vmul.f32 %v3142, 0.5
    %v3144 = vadd.f32 %v3143, 0.5
    %v3145 = vmul.f32 %v3139, %v2979
    %v3146 = vmul.f32 %v3135, %v3140
    %v3147 = vadd.f32 %v3145, %v3146
    %v3148 = vtanh.pop %v3147
    %v3149 = vmul.f32 %v3144, %v3148
    %v3150 = vld [vmem:[#allocation5 + $0xa0] sm:$0xff]
    %v3151 = vld [vmem:[#allocation5 + $0xa8] sm:$0xff]
    %v3152 = vld [vmem:[#allocation5 + $0xb0] sm:$0xff]
    %v3153 = vld [vmem:[#allocation5 + $0xb8] sm:$0xff]
    %3154 = vmatprep.subr.mxu0 %v2243
    %3155 = vmatpush1.msra.mxu0 %v2242
    %3156 = vmatprep.subr.mxu0 %v2247
    %3157 = vmatpush1.msra.mxu0 %v2246
    %3158 = vmatprep.subr.mxu0 %v2251
    %3159 = vmatpush1.msra.mxu0 %v2250
    %3160 = vmatprep.subr.mxu0 %v2255
    %3161 = vmatpush1.msra.mxu0 %v2254
    %3162 = vmatprep.subr.mxu0 %v2259
    %3163 = vmatpush1.msra.mxu0 %v2258
    %3164 = vmatprep.subr.mxu0 %v2263
    %3165 = vmatpush1.msra.mxu0 %v2262
    %3166 = vmatprep.subr.mxu0 %v2267
    %3167 = vmatpush1.msra.mxu0 %v2266
    %3168 = vmatprep.subr.mxu0 %v2271
    %3169 = vmatpush1.msra.mxu0 %v2270
    %3170 = vmatprep.subr.mxu0 %v2275
    %3171 = vmatpush1.msra.mxu0 %v2274
    %3172 = vmatprep.subr.mxu0 %v2279
    %3173 = vmatpush1.msra.mxu0 %v2278
    %3174 = vmatprep.subr.mxu0 %v2283
    %3175 = vmatpush1.msra.mxu0 %v2282
    %3176 = vmatprep.subr.mxu0 %v2287
    %3177 = vmatpush1.msra.mxu0 %v2286
    %3178 = vmatprep.subr.mxu0 %v2291
    %3179 = vmatpush1.msra.mxu0 %v2290
    %3180 = vmatprep.subr.mxu0 %v2295
    %3181 = vmatpush1.msra.mxu0 %v2294
    %3182 = vmatprep.subr.mxu0 %v2299
    %3183 = vmatpush1.msra.mxu0 %v2298
    %3184 = vmatprep.subr.mxu0 %v2303
    %3185 = vmatpush1.msra.mxu0 %v2302
    %3186 = vmatprep.subr.mxu0 0.0
    %3187 = vmatpush1.msra.mxu0 0.0
    %3188 = vmatprep.subr.mxu0 0.0
    %3189 = vmatpush1.msra.mxu0 0.0
    %3190 = vmatprep.subr.mxu0 0.0
    %3191 = vmatpush1.msra.mxu0 0.0
    %3192 = vmatprep.subr.mxu0 0.0
    %3193 = vmatpush1.msra.mxu0 0.0
    %3194 = vmatprep.subr.mxu0 0.0
    %3195 = vmatpush1.msra.mxu0 0.0
    %3196 = vmatprep.subr.mxu0 0.0
    %3197 = vmatpush1.msra.mxu0 0.0
    %3198 = vmatprep.subr.mxu0 0.0
    %3199 = vmatpush1.msra.mxu0 0.0
    %3200 = vmatprep.subr.mxu0 0.0
    %3201 = vmatpush1.msra.mxu0 0.0
    %3202 = vmatprep.subr.mxu0 0.0
    %3203 = vmatpush1.msra.mxu0 0.0
    %3204 = vmatprep.subr.mxu0 0.0
    %3205 = vmatpush1.msra.mxu0 0.0
    %3206 = vmatprep.subr.mxu0 0.0
    %3207 = vmatpush1.msra.mxu0 0.0
    %3208 = vmatprep.subr.mxu0 0.0
    %3209 = vmatpush1.msra.mxu0 0.0
    %3210 = vmatprep.subr.mxu0 0.0
    %3211 = vmatpush1.msra.mxu0 0.0
    %3212 = vmatprep.subr.mxu0 0.0
    %3213 = vmatpush1.msra.mxu0 0.0
    %3214 = vmatprep.subr.mxu0 0.0
    %3215 = vmatpush1.msra.mxu0 0.0
    %3216 = vmatprep.subr.mxu0 0.0
    %3217 = vmatpush1.msra.mxu0 0.0
    %3218 = vmatprep.mubr.f32.mxu0 0.0
    %3219 = vmatmul.mubr.f32.gmra.mrb[0].mxu0 %v3149
    %v3220 = vpop.f32.mrb[0].mxu0
    %v3221 = vadd.f32 0.0, %v3220
    %v3222 = vpop.f32.mrb[0].mxu0
    %v3223 = vadd.f32 0.0, %v3222
    %3224 = vdwg.mxu0
    %3225 = vmatprep.subr.mxu0 %v2245
    %3226 = vmatpush1.msra.mxu0 %v2244
    %3227 = vmatprep.subr.mxu0 %v2249
    %3228 = vmatpush1.msra.mxu0 %v2248
    %3229 = vmatprep.subr.mxu0 %v2253
    %3230 = vmatpush1.msra.mxu0 %v2252
    %3231 = vmatprep.subr.mxu0 %v2257
    %3232 = vmatpush1.msra.mxu0 %v2256
    %3233 = vmatprep.subr.mxu0 %v2261
    %3234 = vmatpush1.msra.mxu0 %v2260
    %3235 = vmatprep.subr.mxu0 %v2265
    %3236 = vmatpush1.msra.mxu0 %v2264
    %3237 = vmatprep.subr.mxu0 %v2269
    %3238 = vmatpush1.msra.mxu0 %v2268
    %3239 = vmatprep.subr.mxu0 %v2273
    %3240 = vmatpush1.msra.mxu0 %v2272
    %3241 = vmatprep.subr.mxu0 %v2277
    %3242 = vmatpush1.msra.mxu0 %v2276
    %3243 = vmatprep.subr.mxu0 %v2281
    %3244 = vmatpush1.msra.mxu0 %v2280
    %3245 = vmatprep.subr.mxu0 %v2285
    %3246 = vmatpush1.msra.mxu0 %v2284
    %3247 = vmatprep.subr.mxu0 %v2289
    %3248 = vmatpush1.msra.mxu0 %v2288
    %3249 = vmatprep.subr.mxu0 %v2293
    %3250 = vmatpush1.msra.mxu0 %v2292
    %3251 = vmatprep.subr.mxu0 %v2297
    %3252 = vmatpush1.msra.mxu0 %v2296
    %3253 = vmatprep.subr.mxu0 %v2301
    %3254 = vmatpush1.msra.mxu0 %v2300
    %3255 = vmatprep.subr.mxu0 %v2305
    %3256 = vmatpush1.msra.mxu0 %v2304
    %3257 = vmatprep.subr.mxu0 0.0
    %3258 = vmatpush1.msra.mxu0 0.0
    %3259 = vmatprep.subr.mxu0 0.0
    %3260 = vmatpush1.msra.mxu0 0.0
    %3261 = vmatprep.subr.mxu0 0.0
    %3262 = vmatpush1.msra.mxu0 0.0
    %3263 = vmatprep.subr.mxu0 0.0
    %3264 = vmatpush1.msra.mxu0 0.0
    %3265 = vmatprep.subr.mxu0 0.0
    %3266 = vmatpush1.msra.mxu0 0.0
    %3267 = vmatprep.subr.mxu0 0.0
    %3268 = vmatpush1.msra.mxu0 0.0
    %3269 = vmatprep.subr.mxu0 0.0
    %3270 = vmatpush1.msra.mxu0 0.0
    %3271 = vmatprep.subr.mxu0 0.0
    %3272 = vmatpush1.msra.mxu0 0.0
    %3273 = vmatprep.subr.mxu0 0.0
    %3274 = vmatpush1.msra.mxu0 0.0
    %3275 = vmatprep.subr.mxu0 0.0
    %3276 = vmatpush1.msra.mxu0 0.0
    %3277 = vmatprep.subr.mxu0 0.0
    %3278 = vmatpush1.msra.mxu0 0.0
    %3279 = vmatprep.subr.mxu0 0.0
    %3280 = vmatpush1.msra.mxu0 0.0
    %3281 = vmatprep.subr.mxu0 0.0
    %3282 = vmatpush1.msra.mxu0 0.0
    %3283 = vmatprep.subr.mxu0 0.0
    %3284 = vmatpush1.msra.mxu0 0.0
    %3285 = vmatprep.subr.mxu0 0.0
    %3286 = vmatpush1.msra.mxu0 0.0
    %3287 = vmatprep.subr.mxu0 0.0
    %3288 = vmatpush1.msra.mxu0 0.0
    %3289 = vmatprep.mubr.f32.mxu0 0.0
    %3290 = vmatmul.mubr.f32.gmra.mrb[0].mxu0 %v3149
    %v3291 = vpop.f32.mrb[0].mxu0
    %v3292 = vadd.f32 0.0, %v3291
    %v3293 = vpop.f32.mrb[0].mxu0
    %v3294 = vadd.f32 0.0, %v3293
    %3295 = vdwg.mxu0
    %v3296 = vadd.f32 %v3150, %v3221
    %v3297 = vadd.f32 %v3151, %v3223
    %v3298 = vadd.f32 %v3152, %v3292
    %v3299 = vadd.f32 %v3153, %v3294
    %v3300 = vmul.f32 %v3296, 0.5
    %v3301 = vtanh.pop %v3300
    %v3302 = vmul.f32 %v3301, 0.5
    %v3303 = vadd.f32 %v3302, 0.5
    %v3304 = vmul.f32 %v3297, 0.5
    %v3305 = vtanh.pop %v3304
    %v3306 = vmul.f32 %v3305, 0.5
    %v3307 = vadd.f32 %v3306, 0.5
    %v3308 = vtanh.pop %v3298
    %v3309 = vmul.f32 %v3299, 0.5
    %v3310 = vtanh.pop %v3309
    %v3311 = vmul.f32 %v3310, 0.5
    %v3312 = vadd.f32 %v3311, 0.5
    %v3313 = vmul.f32 %v3307, %v3147
    %v3314 = vmul.f32 %v3303, %v3308
    %v3315 = vadd.f32 %v3313, %v3314
    %v3316 = vtanh.pop %v3315
    %v3317 = vmul.f32 %v3312, %v3316
    %v3318 = vld [vmem:[#allocation5 + $0xc0] sm:$0xff]
    %v3319 = vld [vmem:[#allocation5 + $0xc8] sm:$0xff]
    %v3320 = vld [vmem:[#allocation5 + $0xd0] sm:$0xff]
    %v3321 = vld [vmem:[#allocation5 + $0xd8] sm:$0xff]
    %3322 = vmatprep.subr.mxu0 %v2243
    %3323 = vmatpush1.msra.mxu0 %v2242
    %3324 = vmatprep.subr.mxu0 %v2247
    %3325 = vmatpush1.msra.mxu0 %v2246
    %3326 = vmatprep.subr.mxu0 %v2251
    %3327 = vmatpush1.msra.mxu0 %v2250
    %3328 = vmatprep.subr.mxu0 %v2255
    %3329 = vmatpush1.msra.mxu0 %v2254
    %3330 = vmatprep.subr.mxu0 %v2259
    %3331 = vmatpush1.msra.mxu0 %v2258
    %3332 = vmatprep.subr.mxu0 %v2263
    %3333 = vmatpush1.msra.mxu0 %v2262
    %3334 = vmatprep.subr.mxu0 %v2267
    %3335 = vmatpush1.msra.mxu0 %v2266
    %3336 = vmatprep.subr.mxu0 %v2271
    %3337 = vmatpush1.msra.mxu0 %v2270
    %3338 = vmatprep.subr.mxu0 %v2275
    %3339 = vmatpush1.msra.mxu0 %v2274
    %3340 = vmatprep.subr.mxu0 %v2279
    %3341 = vmatpush1.msra.mxu0 %v2278
    %3342 = vmatprep.subr.mxu0 %v2283
    %3343 = vmatpush1.msra.mxu0 %v2282
    %3344 = vmatprep.subr.mxu0 %v2287
    %3345 = vmatpush1.msra.mxu0 %v2286
    %3346 = vmatprep.subr.mxu0 %v2291
    %3347 = vmatpush1.msra.mxu0 %v2290
    %3348 = vmatprep.subr.mxu0 %v2295
    %3349 = vmatpush1.msra.mxu0 %v2294
    %3350 = vmatprep.subr.mxu0 %v2299
    %3351 = vmatpush1.msra.mxu0 %v2298
    %3352 = vmatprep.subr.mxu0 %v2303
    %3353 = vmatpush1.msra.mxu0 %v2302
    %3354 = vmatprep.subr.mxu0 0.0
    %3355 = vmatpush1.msra.mxu0 0.0
    %3356 = vmatprep.subr.mxu0 0.0
    %3357 = vmatpush1.msra.mxu0 0.0
    %3358 = vmatprep.subr.mxu0 0.0
    %3359 = vmatpush1.msra.mxu0 0.0
    %3360 = vmatprep.subr.mxu0 0.0
    %3361 = vmatpush1.msra.mxu0 0.0
    %3362 = vmatprep.subr.mxu0 0.0
    %3363 = vmatpush1.msra.mxu0 0.0
    %3364 = vmatprep.subr.mxu0 0.0
    %3365 = vmatpush1.msra.mxu0 0.0
    %3366 = vmatprep.subr.mxu0 0.0
    %3367 = vmatpush1.msra.mxu0 0.0
    %3368 = vmatprep.subr.mxu0 0.0
    %3369 = vmatpush1.msra.mxu0 0.0
    %3370 = vmatprep.subr.mxu0 0.0
    %3371 = vmatpush1.msra.mxu0 0.0
    %3372 = vmatprep.subr.mxu0 0.0
    %3373 = vmatpush1.msra.mxu0 0.0
    %3374 = vmatprep.subr.mxu0 0.0
    %3375 = vmatpush1.msra.mxu0 0.0
    %3376 = vmatprep.subr.mxu0 0.0
    %3377 = vmatpush1.msra.mxu0 0.0
    %3378 = vmatprep.subr.mxu0 0.0
    %3379 = vmatpush1.msra.mxu0 0.0
    %3380 = vmatprep.subr.mxu0 0.0
    %3381 = vmatpush1.msra.mxu0 0.0
    %3382 = vmatprep.subr.mxu0 0.0
    %3383 = vmatpush1.msra.mxu0 0.0
    %3384 = vmatprep.subr.mxu0 0.0
    %3385 = vmatpush1.msra.mxu0 0.0
    %3386 = vmatprep.mubr.f32.mxu0 0.0
    %3387 = vmatmul.mubr.f32.gmra.mrb[0].mxu0 %v3317
    %v3388 = vpop.f32.mrb[0].mxu0
    %v3389 = vadd.f32 0.0, %v3388
    %v3390 = vpop.f32.mrb[0].mxu0
    %v3391 = vadd.f32 0.0, %v3390
    %3392 = vdwg.mxu0
    %3393 = vmatprep.subr.mxu0 %v2245
    %3394 = vmatpush1.msra.mxu0 %v2244
    %3395 = vmatprep.subr.mxu0 %v2249
    %3396 = vmatpush1.msra.mxu0 %v2248
    %3397 = vmatprep.subr.mxu0 %v2253
    %3398 = vmatpush1.msra.mxu0 %v2252
    %3399 = vmatprep.subr.mxu0 %v2257
    %3400 = vmatpush1.msra.mxu0 %v2256
    %3401 = vmatprep.subr.mxu0 %v2261
    %3402 = vmatpush1.msra.mxu0 %v2260
    %3403 = vmatprep.subr.mxu0 %v2265
    %3404 = vmatpush1.msra.mxu0 %v2264
    %3405 = vmatprep.subr.mxu0 %v2269
    %3406 = vmatpush1.msra.mxu0 %v2268
    %3407 = vmatprep.subr.mxu0 %v2273
    %3408 = vmatpush1.msra.mxu0 %v2272
    %3409 = vmatprep.subr.mxu0 %v2277
    %3410 = vmatpush1.msra.mxu0 %v2276
    %3411 = vmatprep.subr.mxu0 %v2281
    %3412 = vmatpush1.msra.mxu0 %v2280
    %3413 = vmatprep.subr.mxu0 %v2285
    %3414 = vmatpush1.msra.mxu0 %v2284
    %3415 = vmatprep.subr.mxu0 %v2289
    %3416 = vmatpush1.msra.mxu0 %v2288
    %3417 = vmatprep.subr.mxu0 %v2293
    %3418 = vmatpush1.msra.mxu0 %v2292
    %3419 = vmatprep.subr.mxu0 %v2297
    %3420 = vmatpush1.msra.mxu0 %v2296
    %3421 = vmatprep.subr.mxu0 %v2301
    %3422 = vmatpush1.msra.mxu0 %v2300
    %3423 = vmatprep.subr.mxu0 %v2305
    %3424 = vmatpush1.msra.mxu0 %v2304
    %3425 = vmatprep.subr.mxu0 0.0
    %3426 = vmatpush1.msra.mxu0 0.0
    %3427 = vmatprep.subr.mxu0 0.0
    %3428 = vmatpush1.msra.mxu0 0.0
    %3429 = vmatprep.subr.mxu0 0.0
    %3430 = vmatpush1.msra.mxu0 0.0
    %3431 = vmatprep.subr.mxu0 0.0
    %3432 = vmatpush1.msra.mxu0 0.0
    %3433 = vmatprep.subr.mxu0 0.0
    %3434 = vmatpush1.msra.mxu0 0.0
    %3435 = vmatprep.subr.mxu0 0.0
    %3436 = vmatpush1.msra.mxu0 0.0
    %3437 = vmatprep.subr.mxu0 0.0
    %3438 = vmatpush1.msra.mxu0 0.0
    %3439 = vmatprep.subr.mxu0 0.0
    %3440 = vmatpush1.msra.mxu0 0.0
    %3441 = vmatprep.subr.mxu0 0.0
    %3442 = vmatpush1.msra.mxu0 0.0
    %3443 = vmatprep.subr.mxu0 0.0
    %3444 = vmatpush1.msra.mxu0 0.0
    %3445 = vmatprep.subr.mxu0 0.0
    %3446 = vmatpush1.msra.mxu0 0.0
    %3447 = vmatprep.subr.mxu0 0.0
    %3448 = vmatpush1.msra.mxu0 0.0
    %3449 = vmatprep.subr.mxu0 0.0
    %3450 = vmatpush1.msra.mxu0 0.0
    %3451 = vmatprep.subr.mxu0 0.0
    %3452 = vmatpush1.msra.mxu0 0.0
    %3453 = vmatprep.subr.mxu0 0.0
    %3454 = vmatpush1.msra.mxu0 0.0
    %3455 = vmatprep.subr.mxu0 0.0
    %3456 = vmatpush1.msra.mxu0 0.0
    %3457 = vmatprep.mubr.f32.mxu0 0.0
    %3458 = vmatmul.mubr.f32.gmra.mrb[0].mxu0 %v3317
    %v3459 = vpop.f32.mrb[0].mxu0
    %v3460 = vadd.f32 0.0, %v3459
    %v3461 = vpop.f32.mrb[0].mxu0
    %v3462 = vadd.f32 0.0, %v3461
    %3463 = vdwg.mxu0
    %v3464 = vadd.f32 %v3318, %v3389
    %v3465 = vadd.f32 %v3319, %v3391
    %v3466 = vadd.f32 %v3320, %v3460
    %v3467 = vadd.f32 %v3321, %v3462
    %v3468 = vmul.f32 %v3464, 0.5
    %v3469 = vtanh.pop %v3468
    %v3470 = vmul.f32 %v3469, 0.5
    %v3471 = vadd.f32 %v3470, 0.5
    %v3472 = vmul.f32 %v3465, 0.5
    %v3473 = vtanh.pop %v3472
    %v3474 = vmul.f32 %v3473, 0.5
    %v3475 = vadd.f32 %v3474, 0.5
    %v3476 = vtanh.pop %v3466
    %v3477 = vmul.f32 %v3467, 0.5
    %v3478 = vtanh.pop %v3477
    %v3479 = vmul.f32 %v3478, 0.5
    %v3480 = vadd.f32 %v3479, 0.5
    %v3481 = vmul.f32 %v3475, %v3315
    %v3482 = vmul.f32 %v3471, %v3476
    %v3483 = vadd.f32 %v3481, %v3482
    %v3484 = vtanh.pop %v3483
    %v3485 = vmul.f32 %v3480, %v3484
    %v3486 = vld [vmem:[#allocation5 + $0xe0] sm:$0xff]
    %v3487 = vld [vmem:[#allocation5 + $0xe8] sm:$0xff]
    %v3488 = vld [vmem:[#allocation5 + $0xf0] sm:$0xff]
    %v3489 = vld [vmem:[#allocation5 + $0xf8] sm:$0xff]
    %3490 = vmatprep.subr.mxu0 %v2243
    %3491 = vmatpush1.msra.mxu0 %v2242
    %3492 = vmatprep.subr.mxu0 %v2247
    %3493 = vmatpush1.msra.mxu0 %v2246
    %3494 = vmatprep.subr.mxu0 %v2251
    %3495 = vmatpush1.msra.mxu0 %v2250
    %3496 = vmatprep.subr.mxu0 %v2255
    %3497 = vmatpush1.msra.mxu0 %v2254
    %3498 = vmatprep.subr.mxu0 %v2259
    %3499 = vmatpush1.msra.mxu0 %v2258
    %3500 = vmatprep.subr.mxu0 %v2263
    %3501 = vmatpush1.msra.mxu0 %v2262
    %3502 = vmatprep.subr.mxu0 %v2267
    %3503 = vmatpush1.msra.mxu0 %v2266
    %3504 = vmatprep.subr.mxu0 %v2271
    %3505 = vmatpush1.msra.mxu0 %v2270
    %3506 = vmatprep.subr.mxu0 %v2275
    %3507 = vmatpush1.msra.mxu0 %v2274
    %3508 = vmatprep.subr.mxu0 %v2279
    %3509 = vmatpush1.msra.mxu0 %v2278
    %3510 = vmatprep.subr.mxu0 %v2283
    %3511 = vmatpush1.msra.mxu0 %v2282
    %3512 = vmatprep.subr.mxu0 %v2287
    %3513 = vmatpush1.msra.mxu0 %v2286
    %3514 = vmatprep.subr.mxu0 %v2291
    %3515 = vmatpush1.msra.mxu0 %v2290
    %3516 = vmatprep.subr.mxu0 %v2295
    %3517 = vmatpush1.msra.mxu0 %v2294
    %3518 = vmatprep.subr.mxu0 %v2299
    %3519 = vmatpush1.msra.mxu0 %v2298
    %3520 = vmatprep.subr.mxu0 %v2303
    %3521 = vmatpush1.msra.mxu0 %v2302
    %3522 = vmatprep.subr.mxu0 0.0
    %3523 = vmatpush1.msra.mxu0 0.0
    %3524 = vmatprep.subr.mxu0 0.0
    %3525 = vmatpush1.msra.mxu0 0.0
    %3526 = vmatprep.subr.mxu0 0.0
    %3527 = vmatpush1.msra.mxu0 0.0
    %3528 = vmatprep.subr.mxu0 0.0
    %3529 = vmatpush1.msra.mxu0 0.0
    %3530 = vmatprep.subr.mxu0 0.0
    %3531 = vmatpush1.msra.mxu0 0.0
    %3532 = vmatprep.subr.mxu0 0.0
    %3533 = vmatpush1.msra.mxu0 0.0
    %3534 = vmatprep.subr.mxu0 0.0
    %3535 = vmatpush1.msra.mxu0 0.0
    %3536 = vmatprep.subr.mxu0 0.0
    %3537 = vmatpush1.msra.mxu0 0.0
    %3538 = vmatprep.subr.mxu0 0.0
    %3539 = vmatpush1.msra.mxu0 0.0
    %3540 = vmatprep.subr.mxu0 0.0
    %3541 = vmatpush1.msra.mxu0 0.0
    %3542 = vmatprep.subr.mxu0 0.0
    %3543 = vmatpush1.msra.mxu0 0.0
    %3544 = vmatprep.subr.mxu0 0.0
    %3545 = vmatpush1.msra.mxu0 0.0
    %3546 = vmatprep.subr.mxu0 0.0
    %3547 = vmatpush1.msra.mxu0 0.0
    %3548 = vmatprep.subr.mxu0 0.0
    %3549 = vmatpush1.msra.mxu0 0.0
    %3550 = vmatprep.subr.mxu0 0.0
    %3551 = vmatpush1.msra.mxu0 0.0
    %3552 = vmatprep.subr.mxu0 0.0
    %3553 = vmatpush1.msra.mxu0 0.0
    %3554 = vmatprep.mubr.f32.mxu0 0.0
    %3555 = vmatmul.mubr.f32.gmra.mrb[0].mxu0 %v3485
    %v3556 = vpop.f32.mrb[0].mxu0
    %v3557 = vadd.f32 0.0, %v3556
    %v3558 = vpop.f32.mrb[0].mxu0
    %v3559 = vadd.f32 0.0, %v3558
    %3560 = vdwg.mxu0
    %3561 = vmatprep.subr.mxu0 %v2245
    %3562 = vmatpush1.msra.mxu0 %v2244
    %3563 = vmatprep.subr.mxu0 %v2249
    %3564 = vmatpush1.msra.mxu0 %v2248
    %3565 = vmatprep.subr.mxu0 %v2253
    %3566 = vmatpush1.msra.mxu0 %v2252
    %3567 = vmatprep.subr.mxu0 %v2257
    %3568 = vmatpush1.msra.mxu0 %v2256
    %3569 = vmatprep.subr.mxu0 %v2261
    %3570 = vmatpush1.msra.mxu0 %v2260
    %3571 = vmatprep.subr.mxu0 %v2265
    %3572 = vmatpush1.msra.mxu0 %v2264
    %3573 = vmatprep.subr.mxu0 %v2269
    %3574 = vmatpush1.msra.mxu0 %v2268
    %3575 = vmatprep.subr.mxu0 %v2273
    %3576 = vmatpush1.msra.mxu0 %v2272
    %3577 = vmatprep.subr.mxu0 %v2277
    %3578 = vmatpush1.msra.mxu0 %v2276
    %3579 = vmatprep.subr.mxu0 %v2281
    %3580 = vmatpush1.msra.mxu0 %v2280
    %3581 = vmatprep.subr.mxu0 %v2285
    %3582 = vmatpush1.msra.mxu0 %v2284
    %3583 = vmatprep.subr.mxu0 %v2289
    %3584 = vmatpush1.msra.mxu0 %v2288
    %3585 = vmatprep.subr.mxu0 %v2293
    %3586 = vmatpush1.msra.mxu0 %v2292
    %3587 = vmatprep.subr.mxu0 %v2297
    %3588 = vmatpush1.msra.mxu0 %v2296
    %3589 = vmatprep.subr.mxu0 %v2301
    %3590 = vmatpush1.msra.mxu0 %v2300
    %3591 = vmatprep.subr.mxu0 %v2305
    %3592 = vmatpush1.msra.mxu0 %v2304
    %3593 = vmatprep.subr.mxu0 0.0
    %3594 = vmatpush1.msra.mxu0 0.0
    %3595 = vmatprep.subr.mxu0 0.0
    %3596 = vmatpush1.msra.mxu0 0.0
    %3597 = vmatprep.subr.mxu0 0.0
    %3598 = vmatpush1.msra.mxu0 0.0
    %3599 = vmatprep.subr.mxu0 0.0
    %3600 = vmatpush1.msra.mxu0 0.0
    %3601 = vmatprep.subr.mxu0 0.0
    %3602 = vmatpush1.msra.mxu0 0.0
    %3603 = vmatprep.subr.mxu0 0.0
    %3604 = vmatpush1.msra.mxu0 0.0
    %3605 = vmatprep.subr.mxu0 0.0
    %3606 = vmatpush1.msra.mxu0 0.0
    %3607 = vmatprep.subr.mxu0 0.0
    %3608 = vmatpush1.msra.mxu0 0.0
    %3609 = vmatprep.subr.mxu0 0.0
    %3610 = vmatpush1.msra.mxu0 0.0
    %3611 = vmatprep.subr.mxu0 0.0
    %3612 = vmatpush1.msra.mxu0 0.0
    %3613 = vmatprep.subr.mxu0 0.0
    %3614 = vmatpush1.msra.mxu0 0.0
    %3615 = vmatprep.subr.mxu0 0.0
    %3616 = vmatpush1.msra.mxu0 0.0
    %3617 = vmatprep.subr.mxu0 0.0
    %3618 = vmatpush1.msra.mxu0 0.0
    %3619 = vmatprep.subr.mxu0 0.0
    %3620 = vmatpush1.msra.mxu0 0.0
    %3621 = vmatprep.subr.mxu0 0.0
    %3622 = vmatpush1.msra.mxu0 0.0
    %3623 = vmatprep.subr.mxu0 0.0
    %3624 = vmatpush1.msra.mxu0 0.0
    %3625 = vmatprep.mubr.f32.mxu0 0.0
    %3626 = vmatmul.mubr.f32.gmra.mrb[0].mxu0 %v3485
    %v3627 = vpop.f32.mrb[0].mxu0
    %v3628 = vadd.f32 0.0, %v3627
    %v3629 = vpop.f32.mrb[0].mxu0
    %v3630 = vadd.f32 0.0, %v3629
    %3631 = vdwg.mxu0
    %v3632 = vadd.f32 %v3486, %v3557
    %v3633 = vadd.f32 %v3487, %v3559
    %v3634 = vadd.f32 %v3488, %v3628
    %v3635 = vadd.f32 %v3489, %v3630
    %v3636 = vmul.f32 %v3632, 0.5
    %v3637 = vtanh.pop %v3636
    %v3638 = vmul.f32 %v3637, 0.5
    %v3639 = vadd.f32 %v3638, 0.5
    %v3640 = vmul.f32 %v3633, 0.5
    %v3641 = vtanh.pop %v3640
    %v3642 = vmul.f32 %v3641, 0.5
    %v3643 = vadd.f32 %v3642, 0.5
    %v3644 = vtanh.pop %v3634
    %v3645 = vmul.f32 %v3635, 0.5
    %v3646 = vtanh.pop %v3645
    %v3647 = vmul.f32 %v3646, 0.5
    %v3648 = vadd.f32 %v3647, 0.5
    %v3649 = vmul.f32 %v3643, %v3483
    %v3650 = vmul.f32 %v3639, %v3644
    %v3651 = vadd.f32 %v3649, %v3650
    %v3652 = vtanh.pop %v3651
    %v3653 = vmul.f32 %v3648, %v3652
    %3654 = vst [vmem:[%s2306] sm:$0xff] %v3653
    %3655 = vst [vmem:[%s2308] sm:$0xff] %v3651
    // Predicated region
    $region66: #{trans_lstm_forward.1} parent=1 // pred_check
      %p3656 = pneg %p110
    $region67: #{trans_lstm_forward.1} parent=1 // pred_check_branch
      %3658 = sbr.rel (%p3656) target = $region69
    $region68: #{trans_lstm_forward.1} parent=1 // pred_region
      %v3659 = vld [vmem:[%s2306] sm:$0xff]
      %v3660 = vld [vmem:[%s7] sm:$0xff]
      %v3661 = vld [vmem:[%s7 + $0x8] sm:$0xff]
      %v3662 = vld [vmem:[%s7 + $0x10] sm:$0xff]
      %v3663 = vld [vmem:[%s7 + $0x18] sm:$0xff]
      %v3664 = vld [vmem:[%s7 + $0x20] sm:$0xff]
      %v3665 = vld [vmem:[%s7 + $0x28] sm:$0xff]
      %v3666 = vld [vmem:[%s7 + $0x30] sm:$0xff]
      %v3667 = vld [vmem:[%s7 + $0x38] sm:$0xff]
      %v3668 = vld [vmem:[%s7 + $0x40] sm:$0xff]
      %v3669 = vld [vmem:[%s7 + $0x48] sm:$0xff]
      %v3670 = vld [vmem:[%s7 + $0x50] sm:$0xff]
      %v3671 = vld [vmem:[%s7 + $0x58] sm:$0xff]
      %v3672 = vld [vmem:[%s7 + $0x60] sm:$0xff]
      %v3673 = vld [vmem:[%s7 + $0x68] sm:$0xff]
      %v3674 = vld [vmem:[%s7 + $0x70] sm:$0xff]
      %v3675 = vld [vmem:[%s7 + $0x78] sm:$0xff]
      %v3676 = vld [vmem:[%s8] sm:$0x1]
      %v3678 = vlaneseq
      %v3679 = vshrl.u32 %v3678, 7
      %v3680 = vsub.s32 0, %v3679
      %v3681 = vrot.slane %v3676, %v3680
      %3683 = vmatprep.subr.mxu0 0.0
      %3684 = vmatpush1.msra.mxu0 %v3660
      %3685 = vmatprep.subr.mxu0 0.0
      %3686 = vmatpush1.msra.mxu0 %v3661
      %3687 = vmatprep.subr.mxu0 0.0
      %3688 = vmatpush1.msra.mxu0 %v3662
      %3689 = vmatprep.subr.mxu0 0.0
      %3690 = vmatpush1.msra.mxu0 %v3663
      %3691 = vmatprep.subr.mxu0 0.0
      %3692 = vmatpush1.msra.mxu0 %v3664
      %3693 = vmatprep.subr.mxu0 0.0
      %3694 = vmatpush1.msra.mxu0 %v3665
      %3695 = vmatprep.subr.mxu0 0.0
      %3696 = vmatpush1.msra.mxu0 %v3666
      %3697 = vmatprep.subr.mxu0 0.0
      %3698 = vmatpush1.msra.mxu0 %v3667
      %3699 = vmatprep.subr.mxu0 0.0
      %3700 = vmatpush1.msra.mxu0 %v3668
      %3701 = vmatprep.subr.mxu0 0.0
      %3702 = vmatpush1.msra.mxu0 %v3669
      %3703 = vmatprep.subr.mxu0 0.0
      %3704 = vmatpush1.msra.mxu0 %v3670
      %3705 = vmatprep.subr.mxu0 0.0
      %3706 = vmatpush1.msra.mxu0 %v3671
      %3707 = vmatprep.subr.mxu0 0.0
      %3708 = vmatpush1.msra.mxu0 %v3672
      %3709 = vmatprep.subr.mxu0 0.0
      %3710 = vmatpush1.msra.mxu0 %v3673
      %3711 = vmatprep.subr.mxu0 0.0
      %3712 = vmatpush1.msra.mxu0 %v3674
      %3713 = vmatprep.subr.mxu0 0.0
      %3714 = vmatpush1.msra.mxu0 %v3675
      %3715 = vmatprep.subr.mxu0 0.0
      %3716 = vmatpush1.msra.mxu0 0.0
      %3717 = vmatprep.subr.mxu0 0.0
      %3718 = vmatpush1.msra.mxu0 0.0
      %3719 = vmatprep.subr.mxu0 0.0
      %3720 = vmatpush1.msra.mxu0 0.0
      %3721 = vmatprep.subr.mxu0 0.0
      %3722 = vmatpush1.msra.mxu0 0.0
      %3723 = vmatprep.subr.mxu0 0.0
      %3724 = vmatpush1.msra.mxu0 0.0
      %3725 = vmatprep.subr.mxu0 0.0
      %3726 = vmatpush1.msra.mxu0 0.0
      %3727 = vmatprep.subr.mxu0 0.0
      %3728 = vmatpush1.msra.mxu0 0.0
      %3729 = vmatprep.subr.mxu0 0.0
      %3730 = vmatpush1.msra.mxu0 0.0
      %3731 = vmatprep.subr.mxu0 0.0
      %3732 = vmatpush1.msra.mxu0 0.0
      %3733 = vmatprep.subr.mxu0 0.0
      %3734 = vmatpush1.msra.mxu0 0.0
      %3735 = vmatprep.subr.mxu0 0.0
      %3736 = vmatpush1.msra.mxu0 0.0
      %3737 = vmatprep.subr.mxu0 0.0
      %3738 = vmatpush1.msra.mxu0 0.0
      %3739 = vmatprep.subr.mxu0 0.0
      %3740 = vmatpush1.msra.mxu0 0.0
      %3741 = vmatprep.subr.mxu0 0.0
      %3742 = vmatpush1.msra.mxu0 0.0
      %3743 = vmatprep.subr.mxu0 0.0
      %3744 = vmatpush1.msra.mxu0 0.0
      %3745 = vmatprep.subr.mxu0 0.0
      %3746 = vmatpush1.msra.mxu0 0.0
      %3747 = vmatprep.mubr.f32.mxu0 0.0
      %3748 = vmatmul.mubr.f32.gmra.mrb[0].mxu0 %v3659
      %v3749 = vpop.f32.mrb[0].mxu0
      %v3750 = vadd.f32 %v3681, %v3749
      %v3751 = vpop.f32.mrb[0].mxu0
      %3752 = vdwg.mxu0
      %3753 = vst [vmem:[%s9] sm:$0xff] %v3750
    $region69: #{trans_lstm_forward.1} parent=1 // pred_fallthru
      _
    // Predicated region
    $region70: #{trans_lstm_forward.1} parent=1 // pred_check
      _
    $region71: #{trans_lstm_forward.1} parent=1 // pred_check_branch
      %3755 = sbr.rel (0) target = $region73
    $region72: #{trans_lstm_forward.1} parent=1 // pred_region
      _
    $region73: #{trans_lstm_forward.1} parent=1 // pred_fallthru
      _
    // Predicated region
    $region74: #{trans_lstm_forward.1} parent=1 // pred_check
      _
    $region75: #{trans_lstm_forward.1} parent=1 // pred_check_branch
      %3757 = sbr.rel (0) target = $region77
    $region76: #{trans_lstm_forward.1} parent=1 // pred_region
      _
    $region77: #{trans_lstm_forward.1} parent=1 // pred_fallthru
      _
    %3758 = vsyncpa [#allocation7], 1
    %3759 = vsyncpa [#allocation9], 1
    %3760 = vsyncpa [#allocation12], 1
    %3761 = vsyncpa [#allocation15], 1

</llo_original>
